<compile_context>
chip_gen: v5e
topology: v5e:2x2
jax: 0.10.0
libtpu: 0.0.40
codegen_flags: <defaults>
</compile_context>

<pallas_src>
from typing import NamedTuple

import jax
import jax.numpy as jnp
from jax.experimental import pallas as pl
from jax.experimental.pallas import tpu as pltpu


def _round_up(x, m):
    return ((x + m - 1) // m) * m


def _make_embed_kernel(kc, nchunks, precision):
    """Kernel factory: gather TB rows via chunked one-hot MXU matmuls.

    idx_ref:   (TB, 1)    int32 indices for this block
    table_ref: (Vp, Dp)   full padded table, single VMEM-resident copy
    out_ref:   (TB, Dp)   gathered embeddings
    acc_ref:   (TB, Dp)   f32 accumulator scratch
    """

    def kernel(idx_ref, table_ref, out_ref, acc_ref):
        tb = idx_ref.shape[0]
        idx = idx_ref[...]                                          # (TB, 1)
        # Per-chunk column iota, built once per grid step (not per chunk).
        col = jax.lax.broadcasted_iota(jnp.int32, (tb, kc), 1)      # (TB, KC)

        if nchunks == 1:
            onehot = (col == idx).astype(table_ref.dtype)           # (TB, KC)
            out_ref[...] = jnp.dot(
                onehot, table_ref[...],
                preferred_element_type=jnp.float32,
                precision=precision,
            ).astype(out_ref.dtype)
            return

        acc_ref[...] = jnp.zeros_like(acc_ref)

        def chunk(k, carry):
            off = pl.multiple_of(k * kc, kc)
            onehot = (col == (idx - off)).astype(table_ref.dtype)   # (TB, KC)
            acc_ref[...] += jnp.dot(
                onehot, table_ref[pl.ds(off, kc), :],
                preferred_element_type=jnp.float32,
                precision=precision,
            )
            return carry

        jax.lax.fori_loop(0, nchunks, chunk, 0, unroll=nchunks <= 8)
        out_ref[...] = acc_ref[...].astype(out_ref.dtype)

    return kernel


class PreparedUserTable(NamedTuple):
    table_p: jax.Array   # (v_pad, d_pad) padded (and optionally recast) table
    num_rows: int        # original num_users + 1
    dim: int             # original embedding_dim


def prepare_user_embedding_table(table, *, dtype=None):
    """Pad (and optionally cast) the table ONCE, outside the forward pass.

    Vocab is padded to a multiple of 256 (MXU contraction granularity on
    v6e/v7x, harmless on v5e); embedding dim to a multiple of 128 (lane-dense
    stores).  Skipped entirely when already aligned.
    """
    v, d = table.shape
    if dtype is not None and table.dtype != dtype:
        table = table.astype(dtype)
    v_pad = _round_up(v, 256)
    d_pad = _round_up(d, 128)
    if (v_pad, d_pad) == (v, d):
        table_p = table
    else:
        table_p = jnp.zeros((v_pad, d_pad), table.dtype).at[:v, :d].set(table)
    return PreparedUserTable(table_p, v, d)


def user_embeddings_forward(table, user_idx, *, tb=512):
    """table: [num_users+1, D] array or PreparedUserTable; user_idx: int array
    of any shape -> [..., D].

    OOB semantics: indices outside [0, num_users] yield a zero embedding
    (all-zero one-hot row); PyTorch raises instead.
    """
    prepared = (table if isinstance(table, PreparedUserTable)
                else prepare_user_embedding_table(table))
    table_p, v, d = prepared
    v_pad, d_pad = table_p.shape

    idx_shape = user_idx.shape
    flat_idx = user_idx.reshape(-1).astype(jnp.int32)
    n = flat_idx.shape[0]
    n_pad = _round_up(max(n, 1), tb)
    idx_2d = jnp.zeros((n_pad, 1), jnp.int32).at[:n, 0].set(flat_idx)

    # Vocab chunking along the contraction axis.
    kc = 512 if (v_pad % 512 == 0) else 256
    nchunks = v_pad // kc

    # Exact gather needs full f32 matmul precision; bf16 tables are exact
    # by construction under one-hot selection.
    precision = (jax.lax.Precision.HIGHEST
                 if table_p.dtype == jnp.float32 else None)

    # Explicit scoped-VMEM budget: table (single copy) + output double buffer
    # + index double buffer + f32 accumulator + one-hot chunk, +25% headroom,
    # floored at the 32 MiB default, capped at physical VMEM.
    itemsize = jnp.dtype(table_p.dtype).itemsize
    vmem_bytes = (
        v_pad * d_pad * itemsize
        + 2 * tb * d_pad * itemsize
        + 2 * tb * 4
        + tb * d_pad * 4
        + tb * kc * 4
    )
    vmem_limit = min(max(int(vmem_bytes * 1.25) + (1 << 20), 32 << 20), 128 << 20)

    out = pl.pallas_call(
        _make_embed_kernel(kc, nchunks, precision),
        out_shape=jax.ShapeDtypeStruct((n_pad, d_pad), table_p.dtype),
        grid_spec=pltpu.PrefetchScalarGridSpec(
            num_scalar_prefetch=0,
            grid=(n_pad // tb,),
            in_specs=[
                # Per-block index column (last dim == full array extent).
                pl.BlockSpec((tb, 1), lambda i: (i, 0)),
                # Whole table as a single VMEM-resident, non-pipelined operand
                # (one copy; no double-buffering of a never-refetched block).
                pl.BlockSpec(memory_space=pltpu.MemorySpace.VMEM),
            ],
            out_specs=pl.BlockSpec((tb, d_pad), lambda i: (i, 0)),
            scratch_shapes=[pltpu.VMEM((tb, d_pad), jnp.float32)],
        ),
        compiler_params=pltpu.CompilerParams(
            dimension_semantics=("parallel",),
            vmem_limit_bytes=vmem_limit,
        ),
    )(idx_2d, table_p)

    return out[:n, :d].reshape(*idx_shape, d)


def init_user_embedding_table(key, num_users, embedding_dim):
    """nn.Embedding default init N(0,1), with padding_idx=0 row zeroed."""
    tbl = jax.random.normal(key, (num_users + 1, embedding_dim),
                            dtype=jnp.float32)
    return tbl.at[0].set(0.0)


if __name__ == "__main__":
    num_users = 16
    embedding_dim = 128
    batch, seq = 2, 8

    key = jax.random.PRNGKey(0)
    k_table, k_idx = jax.random.split(key)

    table = init_user_embedding_table(k_table, num_users, embedding_dim)
    # indices in [0, num_users]; include some 0s to exercise padding_idx
    user_idx = jax.random.randint(k_idx, (batch, seq), 0, num_users + 1,
                                  dtype=jnp.int32)

    # Hoisted table prep (padding done once, not per forward call).
    prepared = prepare_user_embedding_table(table)

    out = user_embeddings_forward(prepared, user_idx)
    out = jax.block_until_ready(out)

    # correctness check vs. plain JAX gather (one-hot matmul at HIGHEST
    # precision is exact for f32 tables)
    ref = table[user_idx]
    assert out.shape == (batch, seq, embedding_dim)
    assert jnp.allclose(out, ref), "mismatch vs reference embedding lookup"
    # padding rows are exactly zero
    assert bool(jnp.all(jnp.where(user_idx[..., None] == 0, out == 0.0, True)))

    print("KERNEL_OK")
</pallas_src>

<mosaic_0001>
module attributes {stable_mosaic.version = 11 : i64} {
  func.func @kernel(%arg0: i32, %arg1: memref<512x1xi32, #tpu.memory_space<vmem>>, %arg2: memref<256x128xf32, #tpu.memory_space<vmem>>, %arg3: memref<512x128xf32, #tpu.memory_space<vmem>>, %arg4: memref<512x128xf32, #tpu.memory_space<vmem>>) attributes {dimension_semantics = [#tpu.dimension_semantics<parallel>], iteration_bounds = array<i64: 1>, scalar_prefetch = 0 : i64, scratch_operands = 1 : i64, tpu.core_type = #tpu.core_type<tc>, window_params = [{transform_indices = @transform_0, window_bounds = array<i64: 512, 1>}, {pipeline_mode = #tpu.pipeline_mode<synchronous>, transform_indices = @transform_1, window_bounds = array<i64: 256, 128>}, {transform_indices = @transform_2, window_bounds = array<i64: 512, 128>}]} {
    %c0 = arith.constant 0 : index
    %c0_0 = arith.constant 0 : index
    %0 = vector.load %arg1[%c0, %c0_0] : memref<512x1xi32, #tpu.memory_space<vmem>>, vector<512x1xi32>
    %1 = tpu.iota {dimensions = array<i32: 1>} : vector<512x256xi32>
    %2 = vector.broadcast %0 : vector<512x1xi32> to vector<512x256xi32>
    %3 = arith.cmpi eq, %1, %2 : vector<512x256xi32>
    %4 = arith.extui %3 : vector<512x256xi1> to vector<512x256xi32>
    %5 = arith.sitofp %4 : vector<512x256xi32> to vector<512x256xf32>
    %c0_1 = arith.constant 0 : index
    %c0_2 = arith.constant 0 : index
    %6 = vector.load %arg2[%c0_1, %c0_2] : memref<256x128xf32, #tpu.memory_space<vmem>>, vector<256x128xf32>
    %cst = arith.constant dense<0.000000e+00> : vector<512x128xf32>
    %7 = tpu.matmul %5, %6, %cst {dimension_numbers = #tpu.dot_dimension_numbers<[1], [0], [0], [1], [0, 0, 1, 1], [], []>, precision = #tpu.contract_precision<fp32>} : vector<512x256xf32>, vector<256x128xf32>, vector<512x128xf32> -> vector<512x128xf32>
    %c0_3 = arith.constant 0 : index
    %c0_4 = arith.constant 0 : index
    %8 = vector.load %arg3[%c0_3, %c0_4] : memref<512x128xf32, #tpu.memory_space<vmem>>, vector<512x128xf32>
    tpu.vector_store %arg3[%c0_3, %c0_4], %7 {strides = array<i32>} : memref<512x128xf32, #tpu.memory_space<vmem>>, vector<512x128xf32>,
    return
  }
  func.func @transform_0(%arg0: i32) -> (i32, i32) {
    %c0_i32 = arith.constant 0 : i32
    %c0_i32_0 = arith.constant 0 : i32
    return %arg0, %c0_i32 : i32, i32
  }
  func.func @transform_1(%arg0: i32) -> (i32, i32) {
    %c0_i32 = arith.constant 0 : i32
    %c0_i32_0 = arith.constant 0 : i32
    %c0_i32_1 = arith.constant 0 : i32
    return %c0_i32, %c0_i32_0 : i32, i32
  }
  func.func @transform_2(%arg0: i32) -> (i32, i32) {
    %c0_i32 = arith.constant 0 : i32
    %c0_i32_0 = arith.constant 0 : i32
    return %arg0, %c0_i32 : i32, i32
  }
}

</mosaic_0001>

<llo_original>
// kernel: tpu_custom_call.1
$region0: #{tpu_custom_call.1}
  #allocation0 [shape = 'u32[]', space=smem, size = 0x4, offset = 0x4, fixed_abs, tag = 'smem constant byte address 0x4 - core index']
  #allocation1 [shape = 'u32[72,128]{1,0:T(1,128)}', space=vmem, size = 0x9000, scoped, tag = 'internal scratch']
  #allocation2 [shape = 'f32[512,128]{1,0:T(8,128)}', space=vmem, size = 0x40000, scoped, tag = 'scratch operand']
  %s0 = inlined_call_operand.vmem [shape: s32[512,1], index: 0, kind: input, shape index: {}]
  %s1 = inlined_call_operand.vmem [shape: f32[256,128], index: 1, kind: input, shape index: {}]
  %s2 = inlined_call_operand.hbm [shape: f32[512,128], index: 2, kind: output, shape index: {}]
  %s3 = sld [smem:[#allocation0]]
  $region18: #{tpu_custom_call.1} parent=0
    _
  %s5 = ssub.s32 1, %s3
  %s6 = scalar_select 0, %s5, %s3
  $region1: #{tpu_custom_call.1} parent=0
    #allocation3 [shape = 'u8[262144]{0}', space=vmem, size = 0x40000, scoped, tag = 'output window, operand 0, single buffered']
    #allocation4 [shape = 's32[1]{0}', space=sflag, size = 0x4, scoped, tag = 'scoped memory for tpu_custom_call.1']
    %7 = vsyncpa [#allocation4], 0
    // Predicated region
    $region2: #{tpu_custom_call.1} parent=1 // pred_check
      _
    $region3: #{tpu_custom_call.1} parent=1 // pred_check_branch
      %9 = sbr.rel (0) target = $region5
    $region4: #{tpu_custom_call.1} parent=1 // pred_region
      _
    $region5: #{tpu_custom_call.1} parent=1 // pred_fallthru
      _
    // Predicated region
    $region6: #{tpu_custom_call.1} parent=1 // pred_check
      _
    $region7: #{tpu_custom_call.1} parent=1 // pred_check_branch
      %11 = sbr.rel (0) target = $region9
    $region8: #{tpu_custom_call.1} parent=1 // pred_region
      _
    $region9: #{tpu_custom_call.1} parent=1 // pred_fallthru
      _
    %v12 = vld [vmem:[%s0] sm:$0xff]
    %v13 = vld [vmem:[%s0 + $0x8] sm:$0xff]
    %v14 = vld [vmem:[%s0 + $0x10] sm:$0xff]
    %v15 = vld [vmem:[%s0 + $0x18] sm:$0xff]
    %v16 = vld [vmem:[%s0 + $0x20] sm:$0xff]
    %v17 = vld [vmem:[%s0 + $0x28] sm:$0xff]
    %v18 = vld [vmem:[%s0 + $0x30] sm:$0xff]
    %v19 = vld [vmem:[%s0 + $0x38] sm:$0xff]
    %v20 = vld [vmem:[%s0 + $0x40] sm:$0xff]
    %v21 = vld [vmem:[%s0 + $0x48] sm:$0xff]
    %v22 = vld [vmem:[%s0 + $0x50] sm:$0xff]
    %v23 = vld [vmem:[%s0 + $0x58] sm:$0xff]
    %v24 = vld [vmem:[%s0 + $0x60] sm:$0xff]
    %v25 = vld [vmem:[%s0 + $0x68] sm:$0xff]
    %v26 = vld [vmem:[%s0 + $0x70] sm:$0xff]
    %v27 = vld [vmem:[%s0 + $0x78] sm:$0xff]
    %v28 = vld [vmem:[%s0 + $0x80] sm:$0xff]
    %v29 = vld [vmem:[%s0 + $0x88] sm:$0xff]
    %v30 = vld [vmem:[%s0 + $0x90] sm:$0xff]
    %v31 = vld [vmem:[%s0 + $0x98] sm:$0xff]
    %v32 = vld [vmem:[%s0 + $0xa0] sm:$0xff]
    %v33 = vld [vmem:[%s0 + $0xa8] sm:$0xff]
    %v34 = vld [vmem:[%s0 + $0xb0] sm:$0xff]
    %v35 = vld [vmem:[%s0 + $0xb8] sm:$0xff]
    %v36 = vld [vmem:[%s0 + $0xc0] sm:$0xff]
    %v37 = vld [vmem:[%s0 + $0xc8] sm:$0xff]
    %v38 = vld [vmem:[%s0 + $0xd0] sm:$0xff]
    %v39 = vld [vmem:[%s0 + $0xd8] sm:$0xff]
    %v40 = vld [vmem:[%s0 + $0xe0] sm:$0xff]
    %v41 = vld [vmem:[%s0 + $0xe8] sm:$0xff]
    %v42 = vld [vmem:[%s0 + $0xf0] sm:$0xff]
    %v43 = vld [vmem:[%s0 + $0xf8] sm:$0xff]
    %v44 = vld [vmem:[%s0 + $0x100] sm:$0xff]
    %v45 = vld [vmem:[%s0 + $0x108] sm:$0xff]
    %v46 = vld [vmem:[%s0 + $0x110] sm:$0xff]
    %v47 = vld [vmem:[%s0 + $0x118] sm:$0xff]
    %v48 = vld [vmem:[%s0 + $0x120] sm:$0xff]
    %v49 = vld [vmem:[%s0 + $0x128] sm:$0xff]
    %v50 = vld [vmem:[%s0 + $0x130] sm:$0xff]
    %v51 = vld [vmem:[%s0 + $0x138] sm:$0xff]
    %v52 = vld [vmem:[%s0 + $0x140] sm:$0xff]
    %v53 = vld [vmem:[%s0 + $0x148] sm:$0xff]
    %v54 = vld [vmem:[%s0 + $0x150] sm:$0xff]
    %v55 = vld [vmem:[%s0 + $0x158] sm:$0xff]
    %v56 = vld [vmem:[%s0 + $0x160] sm:$0xff]
    %v57 = vld [vmem:[%s0 + $0x168] sm:$0xff]
    %v58 = vld [vmem:[%s0 + $0x170] sm:$0xff]
    %v59 = vld [vmem:[%s0 + $0x178] sm:$0xff]
    %v60 = vld [vmem:[%s0 + $0x180] sm:$0xff]
    %v61 = vld [vmem:[%s0 + $0x188] sm:$0xff]
    %v62 = vld [vmem:[%s0 + $0x190] sm:$0xff]
    %v63 = vld [vmem:[%s0 + $0x198] sm:$0xff]
    %v64 = vld [vmem:[%s0 + $0x1a0] sm:$0xff]
    %v65 = vld [vmem:[%s0 + $0x1a8] sm:$0xff]
    %v66 = vld [vmem:[%s0 + $0x1b0] sm:$0xff]
    %v67 = vld [vmem:[%s0 + $0x1b8] sm:$0xff]
    %v68 = vld [vmem:[%s0 + $0x1c0] sm:$0xff]
    %v69 = vld [vmem:[%s0 + $0x1c8] sm:$0xff]
    %v70 = vld [vmem:[%s0 + $0x1d0] sm:$0xff]
    %v71 = vld [vmem:[%s0 + $0x1d8] sm:$0xff]
    %v72 = vld [vmem:[%s0 + $0x1e0] sm:$0xff]
    %v73 = vld [vmem:[%s0 + $0x1e8] sm:$0xff]
    %v74 = vld [vmem:[%s0 + $0x1f0] sm:$0xff]
    %v75 = vld [vmem:[%s0 + $0x1f8] sm:$0xff]
    %v76 = vlaneseq
    %v77 = vand.u32 %v76, 127
    %v78 = vadd.s32 %v77, 128
    %79 = vset.pattern.permute.xlu0 0
    %80 = vperm.xlu0 %79, %v12
    %v81 = vpop.permute.xlu0 %80
    %82 = vset.pattern.permute.xlu0 0
    %83 = vperm.xlu0 %82, %v13
    %v84 = vpop.permute.xlu0 %83
    %85 = vset.pattern.permute.xlu0 0
    %86 = vperm.xlu0 %85, %v14
    %v87 = vpop.permute.xlu0 %86
    %88 = vset.pattern.permute.xlu0 0
    %89 = vperm.xlu0 %88, %v15
    %v90 = vpop.permute.xlu0 %89
    %91 = vset.pattern.permute.xlu0 0
    %92 = vperm.xlu0 %91, %v16
    %v93 = vpop.permute.xlu0 %92
    %94 = vset.pattern.permute.xlu0 0
    %95 = vperm.xlu0 %94, %v17
    %v96 = vpop.permute.xlu0 %95
    %97 = vset.pattern.permute.xlu0 0
    %98 = vperm.xlu0 %97, %v18
    %v99 = vpop.permute.xlu0 %98
    %100 = vset.pattern.permute.xlu0 0
    %101 = vperm.xlu0 %100, %v19
    %v102 = vpop.permute.xlu0 %101
    %103 = vset.pattern.permute.xlu0 0
    %104 = vperm.xlu0 %103, %v20
    %v105 = vpop.permute.xlu0 %104
    %106 = vset.pattern.permute.xlu0 0
    %107 = vperm.xlu0 %106, %v21
    %v108 = vpop.permute.xlu0 %107
    %109 = vset.pattern.permute.xlu0 0
    %110 = vperm.xlu0 %109, %v22
    %v111 = vpop.permute.xlu0 %110
    %112 = vset.pattern.permute.xlu0 0
    %113 = vperm.xlu0 %112, %v23
    %v114 = vpop.permute.xlu0 %113
    %115 = vset.pattern.permute.xlu0 0
    %116 = vperm.xlu0 %115, %v24
    %v117 = vpop.permute.xlu0 %116
    %118 = vset.pattern.permute.xlu0 0
    %119 = vperm.xlu0 %118, %v25
    %v120 = vpop.permute.xlu0 %119
    %121 = vset.pattern.permute.xlu0 0
    %122 = vperm.xlu0 %121, %v26
    %v123 = vpop.permute.xlu0 %122
    %124 = vset.pattern.permute.xlu0 0
    %125 = vperm.xlu0 %124, %v27
    %v126 = vpop.permute.xlu0 %125
    %127 = vset.pattern.permute.xlu0 0
    %128 = vperm.xlu0 %127, %v28
    %v129 = vpop.permute.xlu0 %128
    %130 = vset.pattern.permute.xlu0 0
    %131 = vperm.xlu0 %130, %v29
    %v132 = vpop.permute.xlu0 %131
    %133 = vset.pattern.permute.xlu0 0
    %134 = vperm.xlu0 %133, %v30
    %v135 = vpop.permute.xlu0 %134
    %136 = vset.pattern.permute.xlu0 0
    %137 = vperm.xlu0 %136, %v31
    %v138 = vpop.permute.xlu0 %137
    %139 = vset.pattern.permute.xlu0 0
    %140 = vperm.xlu0 %139, %v32
    %v141 = vpop.permute.xlu0 %140
    %142 = vset.pattern.permute.xlu0 0
    %143 = vperm.xlu0 %142, %v33
    %v144 = vpop.permute.xlu0 %143
    %145 = vset.pattern.permute.xlu0 0
    %146 = vperm.xlu0 %145, %v34
    %v147 = vpop.permute.xlu0 %146
    %148 = vset.pattern.permute.xlu0 0
    %149 = vperm.xlu0 %148, %v35
    %v150 = vpop.permute.xlu0 %149
    %151 = vset.pattern.permute.xlu0 0
    %152 = vperm.xlu0 %151, %v36
    %v153 = vpop.permute.xlu0 %152
    %154 = vset.pattern.permute.xlu0 0
    %155 = vperm.xlu0 %154, %v37
    %v156 = vpop.permute.xlu0 %155
    %157 = vset.pattern.permute.xlu0 0
    %158 = vperm.xlu0 %157, %v38
    %v159 = vpop.permute.xlu0 %158
    %160 = vset.pattern.permute.xlu0 0
    %161 = vperm.xlu0 %160, %v39
    %v162 = vpop.permute.xlu0 %161
    %163 = vset.pattern.permute.xlu0 0
    %164 = vperm.xlu0 %163, %v40
    %v165 = vpop.permute.xlu0 %164
    %166 = vset.pattern.permute.xlu0 0
    %167 = vperm.xlu0 %166, %v41
    %v168 = vpop.permute.xlu0 %167
    %169 = vset.pattern.permute.xlu0 0
    %170 = vperm.xlu0 %169, %v42
    %v171 = vpop.permute.xlu0 %170
    %172 = vset.pattern.permute.xlu0 0
    %173 = vperm.xlu0 %172, %v43
    %v174 = vpop.permute.xlu0 %173
    %175 = vset.pattern.permute.xlu0 0
    %176 = vperm.xlu0 %175, %v44
    %v177 = vpop.permute.xlu0 %176
    %178 = vset.pattern.permute.xlu0 0
    %179 = vperm.xlu0 %178, %v45
    %v180 = vpop.permute.xlu0 %179
    %181 = vset.pattern.permute.xlu0 0
    %182 = vperm.xlu0 %181, %v46
    %v183 = vpop.permute.xlu0 %182
    %184 = vset.pattern.permute.xlu0 0
    %185 = vperm.xlu0 %184, %v47
    %v186 = vpop.permute.xlu0 %185
    %187 = vset.pattern.permute.xlu0 0
    %188 = vperm.xlu0 %187, %v48
    %v189 = vpop.permute.xlu0 %188
    %190 = vset.pattern.permute.xlu0 0
    %191 = vperm.xlu0 %190, %v49
    %v192 = vpop.permute.xlu0 %191
    %193 = vset.pattern.permute.xlu0 0
    %194 = vperm.xlu0 %193, %v50
    %v195 = vpop.permute.xlu0 %194
    %196 = vset.pattern.permute.xlu0 0
    %197 = vperm.xlu0 %196, %v51
    %v198 = vpop.permute.xlu0 %197
    %199 = vset.pattern.permute.xlu0 0
    %200 = vperm.xlu0 %199, %v52
    %v201 = vpop.permute.xlu0 %200
    %202 = vset.pattern.permute.xlu0 0
    %203 = vperm.xlu0 %202, %v53
    %v204 = vpop.permute.xlu0 %203
    %205 = vset.pattern.permute.xlu0 0
    %206 = vperm.xlu0 %205, %v54
    %v207 = vpop.permute.xlu0 %206
    %208 = vset.pattern.permute.xlu0 0
    %209 = vperm.xlu0 %208, %v55
    %v210 = vpop.permute.xlu0 %209
    %211 = vset.pattern.permute.xlu0 0
    %212 = vperm.xlu0 %211, %v56
    %v213 = vpop.permute.xlu0 %212
    %214 = vset.pattern.permute.xlu0 0
    %215 = vperm.xlu0 %214, %v57
    %v216 = vpop.permute.xlu0 %215
    %217 = vset.pattern.permute.xlu0 0
    %218 = vperm.xlu0 %217, %v58
    %v219 = vpop.permute.xlu0 %218
    %220 = vset.pattern.permute.xlu0 0
    %221 = vperm.xlu0 %220, %v59
    %v222 = vpop.permute.xlu0 %221
    %223 = vset.pattern.permute.xlu0 0
    %224 = vperm.xlu0 %223, %v60
    %v225 = vpop.permute.xlu0 %224
    %226 = vset.pattern.permute.xlu0 0
    %227 = vperm.xlu0 %226, %v61
    %v228 = vpop.permute.xlu0 %227
    %229 = vset.pattern.permute.xlu0 0
    %230 = vperm.xlu0 %229, %v62
    %v231 = vpop.permute.xlu0 %230
    %232 = vset.pattern.permute.xlu0 0
    %233 = vperm.xlu0 %232, %v63
    %v234 = vpop.permute.xlu0 %233
    %235 = vset.pattern.permute.xlu0 0
    %236 = vperm.xlu0 %235, %v64
    %v237 = vpop.permute.xlu0 %236
    %238 = vset.pattern.permute.xlu0 0
    %239 = vperm.xlu0 %238, %v65
    %v240 = vpop.permute.xlu0 %239
    %241 = vset.pattern.permute.xlu0 0
    %242 = vperm.xlu0 %241, %v66
    %v243 = vpop.permute.xlu0 %242
    %244 = vset.pattern.permute.xlu0 0
    %245 = vperm.xlu0 %244, %v67
    %v246 = vpop.permute.xlu0 %245
    %247 = vset.pattern.permute.xlu0 0
    %248 = vperm.xlu0 %247, %v68
    %v249 = vpop.permute.xlu0 %248
    %250 = vset.pattern.permute.xlu0 0
    %251 = vperm.xlu0 %250, %v69
    %v252 = vpop.permute.xlu0 %251
    %253 = vset.pattern.permute.xlu0 0
    %254 = vperm.xlu0 %253, %v70
    %v255 = vpop.permute.xlu0 %254
    %256 = vset.pattern.permute.xlu0 0
    %257 = vperm.xlu0 %256, %v71
    %v258 = vpop.permute.xlu0 %257
    %259 = vset.pattern.permute.xlu0 0
    %260 = vperm.xlu0 %259, %v72
    %v261 = vpop.permute.xlu0 %260
    %262 = vset.pattern.permute.xlu0 0
    %263 = vperm.xlu0 %262, %v73
    %v264 = vpop.permute.xlu0 %263
    %265 = vset.pattern.permute.xlu0 0
    %266 = vperm.xlu0 %265, %v74
    %v267 = vpop.permute.xlu0 %266
    %268 = vset.pattern.permute.xlu0 0
    %269 = vperm.xlu0 %268, %v75
    %v270 = vpop.permute.xlu0 %269
    %vm271 = vcmp.eq.s32.totalorder %v77, %v81
    %vm272 = vcmp.eq.s32.totalorder %v78, %v81
    %vm273 = vcmp.eq.s32.totalorder %v77, %v84
    %vm274 = vcmp.eq.s32.totalorder %v78, %v84
    %vm275 = vcmp.eq.s32.totalorder %v77, %v87
    %vm276 = vcmp.eq.s32.totalorder %v78, %v87
    %vm277 = vcmp.eq.s32.totalorder %v77, %v90
    %vm278 = vcmp.eq.s32.totalorder %v78, %v90
    %vm279 = vcmp.eq.s32.totalorder %v77, %v93
    %vm280 = vcmp.eq.s32.totalorder %v78, %v93
    %vm281 = vcmp.eq.s32.totalorder %v77, %v96
    %vm282 = vcmp.eq.s32.totalorder %v78, %v96
    %vm283 = vcmp.eq.s32.totalorder %v77, %v99
    %vm284 = vcmp.eq.s32.totalorder %v78, %v99
    %vm285 = vcmp.eq.s32.totalorder %v77, %v102
    %vm286 = vcmp.eq.s32.totalorder %v78, %v102
    %vm287 = vcmp.eq.s32.totalorder %v77, %v105
    %vm288 = vcmp.eq.s32.totalorder %v78, %v105
    %vm289 = vcmp.eq.s32.totalorder %v77, %v108
    %vm290 = vcmp.eq.s32.totalorder %v78, %v108
    %vm291 = vcmp.eq.s32.totalorder %v77, %v111
    %vm292 = vcmp.eq.s32.totalorder %v78, %v111
    %vm293 = vcmp.eq.s32.totalorder %v77, %v114
    %vm294 = vcmp.eq.s32.totalorder %v78, %v114
    %vm295 = vcmp.eq.s32.totalorder %v77, %v117
    %vm296 = vcmp.eq.s32.totalorder %v78, %v117
    %vm297 = vcmp.eq.s32.totalorder %v77, %v120
    %vm298 = vcmp.eq.s32.totalorder %v78, %v120
    %vm299 = vcmp.eq.s32.totalorder %v77, %v123
    %vm300 = vcmp.eq.s32.totalorder %v78, %v123
    %vm301 = vcmp.eq.s32.totalorder %v77, %v126
    %vm302 = vcmp.eq.s32.totalorder %v78, %v126
    %vm303 = vcmp.eq.s32.totalorder %v77, %v129
    %vm304 = vcmp.eq.s32.totalorder %v78, %v129
    %vm305 = vcmp.eq.s32.totalorder %v77, %v132
    %vm306 = vcmp.eq.s32.totalorder %v78, %v132
    %vm307 = vcmp.eq.s32.totalorder %v77, %v135
    %vm308 = vcmp.eq.s32.totalorder %v78, %v135
    %vm309 = vcmp.eq.s32.totalorder %v77, %v138
    %vm310 = vcmp.eq.s32.totalorder %v78, %v138
    %vm311 = vcmp.eq.s32.totalorder %v77, %v141
    %vm312 = vcmp.eq.s32.totalorder %v78, %v141
    %vm313 = vcmp.eq.s32.totalorder %v77, %v144
    %vm314 = vcmp.eq.s32.totalorder %v78, %v144
    %vm315 = vcmp.eq.s32.totalorder %v77, %v147
    %vm316 = vcmp.eq.s32.totalorder %v78, %v147
    %vm317 = vcmp.eq.s32.totalorder %v77, %v150
    %vm318 = vcmp.eq.s32.totalorder %v78, %v150
    %vm319 = vcmp.eq.s32.totalorder %v77, %v153
    %vm320 = vcmp.eq.s32.totalorder %v78, %v153
    %vm321 = vcmp.eq.s32.totalorder %v77, %v156
    %vm322 = vcmp.eq.s32.totalorder %v78, %v156
    %vm323 = vcmp.eq.s32.totalorder %v77, %v159
    %vm324 = vcmp.eq.s32.totalorder %v78, %v159
    %vm325 = vcmp.eq.s32.totalorder %v77, %v162
    %vm326 = vcmp.eq.s32.totalorder %v78, %v162
    %vm327 = vcmp.eq.s32.totalorder %v77, %v165
    %vm328 = vcmp.eq.s32.totalorder %v78, %v165
    %vm329 = vcmp.eq.s32.totalorder %v77, %v168
    %vm330 = vcmp.eq.s32.totalorder %v78, %v168
    %vm331 = vcmp.eq.s32.totalorder %v77, %v171
    %vm332 = vcmp.eq.s32.totalorder %v78, %v171
    %vm333 = vcmp.eq.s32.totalorder %v77, %v174
    %vm334 = vcmp.eq.s32.totalorder %v78, %v174
    %vm335 = vcmp.eq.s32.totalorder %v77, %v177
    %vm336 = vcmp.eq.s32.totalorder %v78, %v177
    %vm337 = vcmp.eq.s32.totalorder %v77, %v180
    %vm338 = vcmp.eq.s32.totalorder %v78, %v180
    %vm339 = vcmp.eq.s32.totalorder %v77, %v183
    %vm340 = vcmp.eq.s32.totalorder %v78, %v183
    %vm341 = vcmp.eq.s32.totalorder %v77, %v186
    %vm342 = vcmp.eq.s32.totalorder %v78, %v186
    %vm343 = vcmp.eq.s32.totalorder %v77, %v189
    %vm344 = vcmp.eq.s32.totalorder %v78, %v189
    %vm345 = vcmp.eq.s32.totalorder %v77, %v192
    %vm346 = vcmp.eq.s32.totalorder %v78, %v192
    %vm347 = vcmp.eq.s32.totalorder %v77, %v195
    %vm348 = vcmp.eq.s32.totalorder %v78, %v195
    %vm349 = vcmp.eq.s32.totalorder %v77, %v198
    %vm350 = vcmp.eq.s32.totalorder %v78, %v198
    %vm351 = vcmp.eq.s32.totalorder %v77, %v201
    %vm352 = vcmp.eq.s32.totalorder %v78, %v201
    %vm353 = vcmp.eq.s32.totalorder %v77, %v204
    %vm354 = vcmp.eq.s32.totalorder %v78, %v204
    %vm355 = vcmp.eq.s32.totalorder %v77, %v207
    %vm356 = vcmp.eq.s32.totalorder %v78, %v207
    %vm357 = vcmp.eq.s32.totalorder %v77, %v210
    %vm358 = vcmp.eq.s32.totalorder %v78, %v210
    %vm359 = vcmp.eq.s32.totalorder %v77, %v213
    %vm360 = vcmp.eq.s32.totalorder %v78, %v213
    %vm361 = vcmp.eq.s32.totalorder %v77, %v216
    %vm362 = vcmp.eq.s32.totalorder %v78, %v216
    %vm363 = vcmp.eq.s32.totalorder %v77, %v219
    %vm364 = vcmp.eq.s32.totalorder %v78, %v219
    %vm365 = vcmp.eq.s32.totalorder %v77, %v222
    %vm366 = vcmp.eq.s32.totalorder %v78, %v222
    %vm367 = vcmp.eq.s32.totalorder %v77, %v225
    %vm368 = vcmp.eq.s32.totalorder %v78, %v225
    %vm369 = vcmp.eq.s32.totalorder %v77, %v228
    %vm370 = vcmp.eq.s32.totalorder %v78, %v228
    %vm371 = vcmp.eq.s32.totalorder %v77, %v231
    %vm372 = vcmp.eq.s32.totalorder %v78, %v231
    %vm373 = vcmp.eq.s32.totalorder %v77, %v234
    %vm374 = vcmp.eq.s32.totalorder %v78, %v234
    %vm375 = vcmp.eq.s32.totalorder %v77, %v237
    %vm376 = vcmp.eq.s32.totalorder %v78, %v237
    %vm377 = vcmp.eq.s32.totalorder %v77, %v240
    %vm378 = vcmp.eq.s32.totalorder %v78, %v240
    %vm379 = vcmp.eq.s32.totalorder %v77, %v243
    %vm380 = vcmp.eq.s32.totalorder %v78, %v243
    %vm381 = vcmp.eq.s32.totalorder %v77, %v246
    %vm382 = vcmp.eq.s32.totalorder %v78, %v246
    %vm383 = vcmp.eq.s32.totalorder %v77, %v249
    %vm384 = vcmp.eq.s32.totalorder %v78, %v249
    %vm385 = vcmp.eq.s32.totalorder %v77, %v252
    %vm386 = vcmp.eq.s32.totalorder %v78, %v252
    %vm387 = vcmp.eq.s32.totalorder %v77, %v255
    %vm388 = vcmp.eq.s32.totalorder %v78, %v255
    %vm389 = vcmp.eq.s32.totalorder %v77, %v258
    %vm390 = vcmp.eq.s32.totalorder %v78, %v258
    %vm391 = vcmp.eq.s32.totalorder %v77, %v261
    %vm392 = vcmp.eq.s32.totalorder %v78, %v261
    %vm393 = vcmp.eq.s32.totalorder %v77, %v264
    %vm394 = vcmp.eq.s32.totalorder %v78, %v264
    %vm395 = vcmp.eq.s32.totalorder %v77, %v267
    %vm396 = vcmp.eq.s32.totalorder %v78, %v267
    %vm397 = vcmp.eq.s32.totalorder %v77, %v270
    %vm398 = vcmp.eq.s32.totalorder %v78, %v270
    %v399 = vsel %vm271, 1, 0
    %v400 = vsel %vm272, 1, 0
    %v401 = vsel %vm273, 1, 0
    %v402 = vsel %vm274, 1, 0
    %v403 = vsel %vm275, 1, 0
    %v404 = vsel %vm276, 1, 0
    %v405 = vsel %vm277, 1, 0
    %v406 = vsel %vm278, 1, 0
    %v407 = vsel %vm279, 1, 0
    %v408 = vsel %vm280, 1, 0
    %v409 = vsel %vm281, 1, 0
    %v410 = vsel %vm282, 1, 0
    %v411 = vsel %vm283, 1, 0
    %v412 = vsel %vm284, 1, 0
    %v413 = vsel %vm285, 1, 0
    %v414 = vsel %vm286, 1, 0
    %v415 = vsel %vm287, 1, 0
    %v416 = vsel %vm288, 1, 0
    %v417 = vsel %vm289, 1, 0
    %v418 = vsel %vm290, 1, 0
    %v419 = vsel %vm291, 1, 0
    %v420 = vsel %vm292, 1, 0
    %v421 = vsel %vm293, 1, 0
    %v422 = vsel %vm294, 1, 0
    %v423 = vsel %vm295, 1, 0
    %v424 = vsel %vm296, 1, 0
    %v425 = vsel %vm297, 1, 0
    %v426 = vsel %vm298, 1, 0
    %v427 = vsel %vm299, 1, 0
    %v428 = vsel %vm300, 1, 0
    %v429 = vsel %vm301, 1, 0
    %v430 = vsel %vm302, 1, 0
    %v431 = vsel %vm303, 1, 0
    %v432 = vsel %vm304, 1, 0
    %v433 = vsel %vm305, 1, 0
    %v434 = vsel %vm306, 1, 0
    %v435 = vsel %vm307, 1, 0
    %v436 = vsel %vm308, 1, 0
    %v437 = vsel %vm309, 1, 0
    %v438 = vsel %vm310, 1, 0
    %v439 = vsel %vm311, 1, 0
    %v440 = vsel %vm312, 1, 0
    %v441 = vsel %vm313, 1, 0
    %v442 = vsel %vm314, 1, 0
    %v443 = vsel %vm315, 1, 0
    %v444 = vsel %vm316, 1, 0
    %v445 = vsel %vm317, 1, 0
    %v446 = vsel %vm318, 1, 0
    %v447 = vsel %vm319, 1, 0
    %v448 = vsel %vm320, 1, 0
    %v449 = vsel %vm321, 1, 0
    %v450 = vsel %vm322, 1, 0
    %v451 = vsel %vm323, 1, 0
    %v452 = vsel %vm324, 1, 0
    %v453 = vsel %vm325, 1, 0
    %v454 = vsel %vm326, 1, 0
    %v455 = vsel %vm327, 1, 0
    %v456 = vsel %vm328, 1, 0
    %v457 = vsel %vm329, 1, 0
    %v458 = vsel %vm330, 1, 0
    %v459 = vsel %vm331, 1, 0
    %v460 = vsel %vm332, 1, 0
    %v461 = vsel %vm333, 1, 0
    %v462 = vsel %vm334, 1, 0
    %v463 = vsel %vm335, 1, 0
    %v464 = vsel %vm336, 1, 0
    %v465 = vsel %vm337, 1, 0
    %v466 = vsel %vm338, 1, 0
    %v467 = vsel %vm339, 1, 0
    %v468 = vsel %vm340, 1, 0
    %v469 = vsel %vm341, 1, 0
    %v470 = vsel %vm342, 1, 0
    %v471 = vsel %vm343, 1, 0
    %v472 = vsel %vm344, 1, 0
    %v473 = vsel %vm345, 1, 0
    %v474 = vsel %vm346, 1, 0
    %v475 = vsel %vm347, 1, 0
    %v476 = vsel %vm348, 1, 0
    %v477 = vsel %vm349, 1, 0
    %v478 = vsel %vm350, 1, 0
    %v479 = vsel %vm351, 1, 0
    %v480 = vsel %vm352, 1, 0
    %v481 = vsel %vm353, 1, 0
    %v482 = vsel %vm354, 1, 0
    %v483 = vsel %vm355, 1, 0
    %v484 = vsel %vm356, 1, 0
    %v485 = vsel %vm357, 1, 0
    %v486 = vsel %vm358, 1, 0
    %v487 = vsel %vm359, 1, 0
    %v488 = vsel %vm360, 1, 0
    %v489 = vsel %vm361, 1, 0
    %v490 = vsel %vm362, 1, 0
    %v491 = vsel %vm363, 1, 0
    %v492 = vsel %vm364, 1, 0
    %v493 = vsel %vm365, 1, 0
    %v494 = vsel %vm366, 1, 0
    %v495 = vsel %vm367, 1, 0
    %v496 = vsel %vm368, 1, 0
    %v497 = vsel %vm369, 1, 0
    %v498 = vsel %vm370, 1, 0
    %v499 = vsel %vm371, 1, 0
    %v500 = vsel %vm372, 1, 0
    %v501 = vsel %vm373, 1, 0
    %v502 = vsel %vm374, 1, 0
    %v503 = vsel %vm375, 1, 0
    %v504 = vsel %vm376, 1, 0
    %v505 = vsel %vm377, 1, 0
    %v506 = vsel %vm378, 1, 0
    %v507 = vsel %vm379, 1, 0
    %v508 = vsel %vm380, 1, 0
    %v509 = vsel %vm381, 1, 0
    %v510 = vsel %vm382, 1, 0
    %v511 = vsel %vm383, 1, 0
    %v512 = vsel %vm384, 1, 0
    %v513 = vsel %vm385, 1, 0
    %v514 = vsel %vm386, 1, 0
    %v515 = vsel %vm387, 1, 0
    %v516 = vsel %vm388, 1, 0
    %v517 = vsel %vm389, 1, 0
    %v518 = vsel %vm390, 1, 0
    %v519 = vsel %vm391, 1, 0
    %v520 = vsel %vm392, 1, 0
    %v521 = vsel %vm393, 1, 0
    %v522 = vsel %vm394, 1, 0
    %v523 = vsel %vm395, 1, 0
    %v524 = vsel %vm396, 1, 0
    %v525 = vsel %vm397, 1, 0
    %v526 = vsel %vm398, 1, 0
    %v527 = vcvt.s32.f32 %v399
    %v528 = vcvt.s32.f32 %v400
    %v529 = vcvt.s32.f32 %v401
    %v530 = vcvt.s32.f32 %v402
    %v531 = vcvt.s32.f32 %v403
    %v532 = vcvt.s32.f32 %v404
    %v533 = vcvt.s32.f32 %v405
    %v534 = vcvt.s32.f32 %v406
    %v535 = vcvt.s32.f32 %v407
    %v536 = vcvt.s32.f32 %v408
    %v537 = vcvt.s32.f32 %v409
    %v538 = vcvt.s32.f32 %v410
    %v539 = vcvt.s32.f32 %v411
    %v540 = vcvt.s32.f32 %v412
    %v541 = vcvt.s32.f32 %v413
    %v542 = vcvt.s32.f32 %v414
    %v543 = vcvt.s32.f32 %v415
    %v544 = vcvt.s32.f32 %v416
    %v545 = vcvt.s32.f32 %v417
    %v546 = vcvt.s32.f32 %v418
    %v547 = vcvt.s32.f32 %v419
    %v548 = vcvt.s32.f32 %v420
    %v549 = vcvt.s32.f32 %v421
    %v550 = vcvt.s32.f32 %v422
    %v551 = vcvt.s32.f32 %v423
    %v552 = vcvt.s32.f32 %v424
    %v553 = vcvt.s32.f32 %v425
    %v554 = vcvt.s32.f32 %v426
    %v555 = vcvt.s32.f32 %v427
    %v556 = vcvt.s32.f32 %v428
    %v557 = vcvt.s32.f32 %v429
    %v558 = vcvt.s32.f32 %v430
    %v559 = vcvt.s32.f32 %v431
    %v560 = vcvt.s32.f32 %v432
    %v561 = vcvt.s32.f32 %v433
    %v562 = vcvt.s32.f32 %v434
    %v563 = vcvt.s32.f32 %v435
    %v564 = vcvt.s32.f32 %v436
    %v565 = vcvt.s32.f32 %v437
    %v566 = vcvt.s32.f32 %v438
    %v567 = vcvt.s32.f32 %v439
    %v568 = vcvt.s32.f32 %v440
    %v569 = vcvt.s32.f32 %v441
    %v570 = vcvt.s32.f32 %v442
    %v571 = vcvt.s32.f32 %v443
    %v572 = vcvt.s32.f32 %v444
    %v573 = vcvt.s32.f32 %v445
    %v574 = vcvt.s32.f32 %v446
    %v575 = vcvt.s32.f32 %v447
    %v576 = vcvt.s32.f32 %v448
    %v577 = vcvt.s32.f32 %v449
    %v578 = vcvt.s32.f32 %v450
    %v579 = vcvt.s32.f32 %v451
    %v580 = vcvt.s32.f32 %v452
    %v581 = vcvt.s32.f32 %v453
    %v582 = vcvt.s32.f32 %v454
    %v583 = vcvt.s32.f32 %v455
    %v584 = vcvt.s32.f32 %v456
    %v585 = vcvt.s32.f32 %v457
    %v586 = vcvt.s32.f32 %v458
    %v587 = vcvt.s32.f32 %v459
    %v588 = vcvt.s32.f32 %v460
    %v589 = vcvt.s32.f32 %v461
    %v590 = vcvt.s32.f32 %v462
    %v591 = vcvt.s32.f32 %v463
    %v592 = vcvt.s32.f32 %v464
    %v593 = vcvt.s32.f32 %v465
    %v594 = vcvt.s32.f32 %v466
    %v595 = vcvt.s32.f32 %v467
    %v596 = vcvt.s32.f32 %v468
    %v597 = vcvt.s32.f32 %v469
    %v598 = vcvt.s32.f32 %v470
    %v599 = vcvt.s32.f32 %v471
    %v600 = vcvt.s32.f32 %v472
    %v601 = vcvt.s32.f32 %v473
    %v602 = vcvt.s32.f32 %v474
    %v603 = vcvt.s32.f32 %v475
    %v604 = vcvt.s32.f32 %v476
    %v605 = vcvt.s32.f32 %v477
    %v606 = vcvt.s32.f32 %v478
    %v607 = vcvt.s32.f32 %v479
    %v608 = vcvt.s32.f32 %v480
    %v609 = vcvt.s32.f32 %v481
    %v610 = vcvt.s32.f32 %v482
    %v611 = vcvt.s32.f32 %v483
    %v612 = vcvt.s32.f32 %v484
    %v613 = vcvt.s32.f32 %v485
    %v614 = vcvt.s32.f32 %v486
    %v615 = vcvt.s32.f32 %v487
    %v616 = vcvt.s32.f32 %v488
    %v617 = vcvt.s32.f32 %v489
    %v618 = vcvt.s32.f32 %v490
    %v619 = vcvt.s32.f32 %v491
    %v620 = vcvt.s32.f32 %v492
    %v621 = vcvt.s32.f32 %v493
    %v622 = vcvt.s32.f32 %v494
    %v623 = vcvt.s32.f32 %v495
    %v624 = vcvt.s32.f32 %v496
    %v625 = vcvt.s32.f32 %v497
    %v626 = vcvt.s32.f32 %v498
    %v627 = vcvt.s32.f32 %v499
    %v628 = vcvt.s32.f32 %v500
    %v629 = vcvt.s32.f32 %v501
    %v630 = vcvt.s32.f32 %v502
    %v631 = vcvt.s32.f32 %v503
    %v632 = vcvt.s32.f32 %v504
    %v633 = vcvt.s32.f32 %v505
    %v634 = vcvt.s32.f32 %v506
    %v635 = vcvt.s32.f32 %v507
    %v636 = vcvt.s32.f32 %v508
    %v637 = vcvt.s32.f32 %v509
    %v638 = vcvt.s32.f32 %v510
    %v639 = vcvt.s32.f32 %v511
    %v640 = vcvt.s32.f32 %v512
    %v641 = vcvt.s32.f32 %v513
    %v642 = vcvt.s32.f32 %v514
    %v643 = vcvt.s32.f32 %v515
    %v644 = vcvt.s32.f32 %v516
    %v645 = vcvt.s32.f32 %v517
    %v646 = vcvt.s32.f32 %v518
    %v647 = vcvt.s32.f32 %v519
    %v648 = vcvt.s32.f32 %v520
    %v649 = vcvt.s32.f32 %v521
    %v650 = vcvt.s32.f32 %v522
    %v651 = vcvt.s32.f32 %v523
    %v652 = vcvt.s32.f32 %v524
    %v653 = vcvt.s32.f32 %v525
    %v654 = vcvt.s32.f32 %v526
    %v655 = vld [vmem:[%s1] sm:$0xff]
    %v656 = vld [vmem:[%s1 + $0x8] sm:$0xff]
    %v657 = vld [vmem:[%s1 + $0x10] sm:$0xff]
    %v658 = vld [vmem:[%s1 + $0x18] sm:$0xff]
    %v659 = vld [vmem:[%s1 + $0x20] sm:$0xff]
    %v660 = vld [vmem:[%s1 + $0x28] sm:$0xff]
    %v661 = vld [vmem:[%s1 + $0x30] sm:$0xff]
    %v662 = vld [vmem:[%s1 + $0x38] sm:$0xff]
    %v663 = vld [vmem:[%s1 + $0x40] sm:$0xff]
    %v664 = vld [vmem:[%s1 + $0x48] sm:$0xff]
    %v665 = vld [vmem:[%s1 + $0x50] sm:$0xff]
    %v666 = vld [vmem:[%s1 + $0x58] sm:$0xff]
    %v667 = vld [vmem:[%s1 + $0x60] sm:$0xff]
    %v668 = vld [vmem:[%s1 + $0x68] sm:$0xff]
    %v669 = vld [vmem:[%s1 + $0x70] sm:$0xff]
    %v670 = vld [vmem:[%s1 + $0x78] sm:$0xff]
    %v671 = vld [vmem:[%s1 + $0x80] sm:$0xff]
    %v672 = vld [vmem:[%s1 + $0x88] sm:$0xff]
    %v673 = vld [vmem:[%s1 + $0x90] sm:$0xff]
    %v674 = vld [vmem:[%s1 + $0x98] sm:$0xff]
    %v675 = vld [vmem:[%s1 + $0xa0] sm:$0xff]
    %v676 = vld [vmem:[%s1 + $0xa8] sm:$0xff]
    %v677 = vld [vmem:[%s1 + $0xb0] sm:$0xff]
    %v678 = vld [vmem:[%s1 + $0xb8] sm:$0xff]
    %v679 = vld [vmem:[%s1 + $0xc0] sm:$0xff]
    %v680 = vld [vmem:[%s1 + $0xc8] sm:$0xff]
    %v681 = vld [vmem:[%s1 + $0xd0] sm:$0xff]
    %v682 = vld [vmem:[%s1 + $0xd8] sm:$0xff]
    %v683 = vld [vmem:[%s1 + $0xe0] sm:$0xff]
    %v684 = vld [vmem:[%s1 + $0xe8] sm:$0xff]
    %v685 = vld [vmem:[%s1 + $0xf0] sm:$0xff]
    %v686 = vld [vmem:[%s1 + $0xf8] sm:$0xff]
    %v687 = vand.u32 %v670, 4294901760
    %688 = vmatpush.msra.mxu0 %v687
    %v689 = vand.u32 %v669, 4294901760
    %690 = vmatpush.msra.mxu0 %v689
    %v691 = vand.u32 %v668, 4294901760
    %692 = vmatpush.msra.mxu0 %v691
    %v693 = vand.u32 %v667, 4294901760
    %694 = vmatpush.msra.mxu0 %v693
    %v695 = vand.u32 %v666, 4294901760
    %696 = vmatpush.msra.mxu0 %v695
    %v697 = vand.u32 %v665, 4294901760
    %698 = vmatpush.msra.mxu0 %v697
    %v699 = vand.u32 %v664, 4294901760
    %700 = vmatpush.msra.mxu0 %v699
    %v701 = vand.u32 %v663, 4294901760
    %702 = vmatpush.msra.mxu0 %v701
    %v703 = vand.u32 %v662, 4294901760
    %704 = vmatpush.msra.mxu0 %v703
    %v705 = vand.u32 %v661, 4294901760
    %706 = vmatpush.msra.mxu0 %v705
    %v707 = vand.u32 %v660, 4294901760
    %708 = vmatpush.msra.mxu0 %v707
    %v709 = vand.u32 %v659, 4294901760
    %710 = vmatpush.msra.mxu0 %v709
    %v711 = vand.u32 %v658, 4294901760
    %712 = vmatpush.msra.mxu0 %v711
    %v713 = vand.u32 %v657, 4294901760
    %714 = vmatpush.msra.mxu0 %v713
    %v715 = vand.u32 %v656, 4294901760
    %716 = vmatpush.msra.mxu0 %v715
    %v717 = vand.u32 %v655, 4294901760
    %718 = vmatpush.msra.mxu0 %v717
    %v719 = vand.u32 %v527, 4294901760
    %v720 = vsub.f32 %v527, %v719
    %v721 = vand.u32 %v720, 4294901760
    %v722 = vsub.f32 %v720, %v721
    %v723 = vand.u32 %v722, 4294901760
    %724 = vmatmul.f32.gmra.mxu0 %v723
    %v725 = vpop.f32.mrf.mxu0
    %v726 = vadd.f32 0.0, %v725
    %v727 = vand.u32 %v529, 4294901760
    %v728 = vsub.f32 %v529, %v727
    %v729 = vand.u32 %v728, 4294901760
    %v730 = vsub.f32 %v728, %v729
    %v731 = vand.u32 %v730, 4294901760
    %732 = vmatmul.f32.gmra.mxu0 %v731
    %v733 = vpop.f32.mrf.mxu0
    %v734 = vadd.f32 0.0, %v733
    %v735 = vand.u32 %v531, 4294901760
    %v736 = vsub.f32 %v531, %v735
    %v737 = vand.u32 %v736, 4294901760
    %v738 = vsub.f32 %v736, %v737
    %v739 = vand.u32 %v738, 4294901760
    %740 = vmatmul.f32.gmra.mxu0 %v739
    %v741 = vpop.f32.mrf.mxu0
    %v742 = vadd.f32 0.0, %v741
    %v743 = vand.u32 %v533, 4294901760
    %v744 = vsub.f32 %v533, %v743
    %v745 = vand.u32 %v744, 4294901760
    %v746 = vsub.f32 %v744, %v745
    %v747 = vand.u32 %v746, 4294901760
    %748 = vmatmul.f32.gmra.mxu0 %v747
    %v749 = vpop.f32.mrf.mxu0
    %v750 = vadd.f32 0.0, %v749
    %v751 = vand.u32 %v535, 4294901760
    %v752 = vsub.f32 %v535, %v751
    %v753 = vand.u32 %v752, 4294901760
    %v754 = vsub.f32 %v752, %v753
    %v755 = vand.u32 %v754, 4294901760
    %756 = vmatmul.f32.gmra.mxu0 %v755
    %v757 = vpop.f32.mrf.mxu0
    %v758 = vadd.f32 0.0, %v757
    %v759 = vand.u32 %v537, 4294901760
    %v760 = vsub.f32 %v537, %v759
    %v761 = vand.u32 %v760, 4294901760
    %v762 = vsub.f32 %v760, %v761
    %v763 = vand.u32 %v762, 4294901760
    %764 = vmatmul.f32.gmra.mxu0 %v763
    %v765 = vpop.f32.mrf.mxu0
    %v766 = vadd.f32 0.0, %v765
    %v767 = vand.u32 %v539, 4294901760
    %v768 = vsub.f32 %v539, %v767
    %v769 = vand.u32 %v768, 4294901760
    %v770 = vsub.f32 %v768, %v769
    %v771 = vand.u32 %v770, 4294901760
    %772 = vmatmul.f32.gmra.mxu0 %v771
    %v773 = vpop.f32.mrf.mxu0
    %v774 = vadd.f32 0.0, %v773
    %v775 = vand.u32 %v541, 4294901760
    %v776 = vsub.f32 %v541, %v775
    %v777 = vand.u32 %v776, 4294901760
    %v778 = vsub.f32 %v776, %v777
    %v779 = vand.u32 %v778, 4294901760
    %780 = vmatmul.f32.gmra.mxu0 %v779
    %v781 = vpop.f32.mrf.mxu0
    %v782 = vadd.f32 0.0, %v781
    %v783 = vand.u32 %v543, 4294901760
    %v784 = vsub.f32 %v543, %v783
    %v785 = vand.u32 %v784, 4294901760
    %v786 = vsub.f32 %v784, %v785
    %v787 = vand.u32 %v786, 4294901760
    %788 = vmatmul.f32.gmra.mxu0 %v787
    %v789 = vpop.f32.mrf.mxu0
    %v790 = vadd.f32 0.0, %v789
    %v791 = vand.u32 %v545, 4294901760
    %v792 = vsub.f32 %v545, %v791
    %v793 = vand.u32 %v792, 4294901760
    %v794 = vsub.f32 %v792, %v793
    %v795 = vand.u32 %v794, 4294901760
    %796 = vmatmul.f32.gmra.mxu0 %v795
    %v797 = vpop.f32.mrf.mxu0
    %v798 = vadd.f32 0.0, %v797
    %v799 = vand.u32 %v547, 4294901760
    %v800 = vsub.f32 %v547, %v799
    %v801 = vand.u32 %v800, 4294901760
    %v802 = vsub.f32 %v800, %v801
    %v803 = vand.u32 %v802, 4294901760
    %804 = vmatmul.f32.gmra.mxu0 %v803
    %v805 = vpop.f32.mrf.mxu0
    %v806 = vadd.f32 0.0, %v805
    %v807 = vand.u32 %v549, 4294901760
    %v808 = vsub.f32 %v549, %v807
    %v809 = vand.u32 %v808, 4294901760
    %v810 = vsub.f32 %v808, %v809
    %v811 = vand.u32 %v810, 4294901760
    %812 = vmatmul.f32.gmra.mxu0 %v811
    %v813 = vpop.f32.mrf.mxu0
    %v814 = vadd.f32 0.0, %v813
    %v815 = vand.u32 %v551, 4294901760
    %v816 = vsub.f32 %v551, %v815
    %v817 = vand.u32 %v816, 4294901760
    %v818 = vsub.f32 %v816, %v817
    %v819 = vand.u32 %v818, 4294901760
    %820 = vmatmul.f32.gmra.mxu0 %v819
    %v821 = vpop.f32.mrf.mxu0
    %v822 = vadd.f32 0.0, %v821
    %v823 = vand.u32 %v553, 4294901760
    %v824 = vsub.f32 %v553, %v823
    %v825 = vand.u32 %v824, 4294901760
    %v826 = vsub.f32 %v824, %v825
    %v827 = vand.u32 %v826, 4294901760
    %828 = vmatmul.f32.gmra.mxu0 %v827
    %v829 = vpop.f32.mrf.mxu0
    %v830 = vadd.f32 0.0, %v829
    %v831 = vand.u32 %v555, 4294901760
    %v832 = vsub.f32 %v555, %v831
    %v833 = vand.u32 %v832, 4294901760
    %v834 = vsub.f32 %v832, %v833
    %v835 = vand.u32 %v834, 4294901760
    %836 = vmatmul.f32.gmra.mxu0 %v835
    %v837 = vpop.f32.mrf.mxu0
    %v838 = vadd.f32 0.0, %v837
    %v839 = vand.u32 %v557, 4294901760
    %v840 = vsub.f32 %v557, %v839
    %v841 = vand.u32 %v840, 4294901760
    %v842 = vsub.f32 %v840, %v841
    %v843 = vand.u32 %v842, 4294901760
    %844 = vmatmul.f32.gmra.mxu0 %v843
    %v845 = vpop.f32.mrf.mxu0
    %v846 = vadd.f32 0.0, %v845
    %v847 = vand.u32 %v559, 4294901760
    %v848 = vsub.f32 %v559, %v847
    %v849 = vand.u32 %v848, 4294901760
    %v850 = vsub.f32 %v848, %v849
    %v851 = vand.u32 %v850, 4294901760
    %852 = vmatmul.f32.gmra.mxu0 %v851
    %v853 = vpop.f32.mrf.mxu0
    %v854 = vadd.f32 0.0, %v853
    %v855 = vand.u32 %v561, 4294901760
    %v856 = vsub.f32 %v561, %v855
    %v857 = vand.u32 %v856, 4294901760
    %v858 = vsub.f32 %v856, %v857
    %v859 = vand.u32 %v858, 4294901760
    %860 = vmatmul.f32.gmra.mxu0 %v859
    %v861 = vpop.f32.mrf.mxu0
    %v862 = vadd.f32 0.0, %v861
    %v863 = vand.u32 %v563, 4294901760
    %v864 = vsub.f32 %v563, %v863
    %v865 = vand.u32 %v864, 4294901760
    %v866 = vsub.f32 %v864, %v865
    %v867 = vand.u32 %v866, 4294901760
    %868 = vmatmul.f32.gmra.mxu0 %v867
    %v869 = vpop.f32.mrf.mxu0
    %v870 = vadd.f32 0.0, %v869
    %v871 = vand.u32 %v565, 4294901760
    %v872 = vsub.f32 %v565, %v871
    %v873 = vand.u32 %v872, 4294901760
    %v874 = vsub.f32 %v872, %v873
    %v875 = vand.u32 %v874, 4294901760
    %876 = vmatmul.f32.gmra.mxu0 %v875
    %v877 = vpop.f32.mrf.mxu0
    %v878 = vadd.f32 0.0, %v877
    %v879 = vand.u32 %v567, 4294901760
    %v880 = vsub.f32 %v567, %v879
    %v881 = vand.u32 %v880, 4294901760
    %v882 = vsub.f32 %v880, %v881
    %v883 = vand.u32 %v882, 4294901760
    %884 = vmatmul.f32.gmra.mxu0 %v883
    %v885 = vpop.f32.mrf.mxu0
    %v886 = vadd.f32 0.0, %v885
    %v887 = vand.u32 %v569, 4294901760
    %v888 = vsub.f32 %v569, %v887
    %v889 = vand.u32 %v888, 4294901760
    %v890 = vsub.f32 %v888, %v889
    %v891 = vand.u32 %v890, 4294901760
    %892 = vmatmul.f32.gmra.mxu0 %v891
    %v893 = vpop.f32.mrf.mxu0
    %v894 = vadd.f32 0.0, %v893
    %v895 = vand.u32 %v571, 4294901760
    %v896 = vsub.f32 %v571, %v895
    %v897 = vand.u32 %v896, 4294901760
    %v898 = vsub.f32 %v896, %v897
    %v899 = vand.u32 %v898, 4294901760
    %900 = vmatmul.f32.gmra.mxu0 %v899
    %v901 = vpop.f32.mrf.mxu0
    %v902 = vadd.f32 0.0, %v901
    %v903 = vand.u32 %v573, 4294901760
    %v904 = vsub.f32 %v573, %v903
    %v905 = vand.u32 %v904, 4294901760
    %v906 = vsub.f32 %v904, %v905
    %v907 = vand.u32 %v906, 4294901760
    %908 = vmatmul.f32.gmra.mxu0 %v907
    %v909 = vpop.f32.mrf.mxu0
    %v910 = vadd.f32 0.0, %v909
    %v911 = vand.u32 %v575, 4294901760
    %v912 = vsub.f32 %v575, %v911
    %v913 = vand.u32 %v912, 4294901760
    %v914 = vsub.f32 %v912, %v913
    %v915 = vand.u32 %v914, 4294901760
    %916 = vmatmul.f32.gmra.mxu0 %v915
    %v917 = vpop.f32.mrf.mxu0
    %v918 = vadd.f32 0.0, %v917
    %v919 = vand.u32 %v577, 4294901760
    %v920 = vsub.f32 %v577, %v919
    %v921 = vand.u32 %v920, 4294901760
    %v922 = vsub.f32 %v920, %v921
    %v923 = vand.u32 %v922, 4294901760
    %924 = vmatmul.f32.gmra.mxu0 %v923
    %v925 = vpop.f32.mrf.mxu0
    %v926 = vadd.f32 0.0, %v925
    %v927 = vand.u32 %v579, 4294901760
    %v928 = vsub.f32 %v579, %v927
    %v929 = vand.u32 %v928, 4294901760
    %v930 = vsub.f32 %v928, %v929
    %v931 = vand.u32 %v930, 4294901760
    %932 = vmatmul.f32.gmra.mxu0 %v931
    %v933 = vpop.f32.mrf.mxu0
    %v934 = vadd.f32 0.0, %v933
    %v935 = vand.u32 %v581, 4294901760
    %v936 = vsub.f32 %v581, %v935
    %v937 = vand.u32 %v936, 4294901760
    %v938 = vsub.f32 %v936, %v937
    %v939 = vand.u32 %v938, 4294901760
    %940 = vmatmul.f32.gmra.mxu0 %v939
    %v941 = vpop.f32.mrf.mxu0
    %v942 = vadd.f32 0.0, %v941
    %v943 = vand.u32 %v583, 4294901760
    %v944 = vsub.f32 %v583, %v943
    %v945 = vand.u32 %v944, 4294901760
    %v946 = vsub.f32 %v944, %v945
    %v947 = vand.u32 %v946, 4294901760
    %948 = vmatmul.f32.gmra.mxu0 %v947
    %v949 = vpop.f32.mrf.mxu0
    %v950 = vadd.f32 0.0, %v949
    %v951 = vand.u32 %v585, 4294901760
    %v952 = vsub.f32 %v585, %v951
    %v953 = vand.u32 %v952, 4294901760
    %v954 = vsub.f32 %v952, %v953
    %v955 = vand.u32 %v954, 4294901760
    %956 = vmatmul.f32.gmra.mxu0 %v955
    %v957 = vpop.f32.mrf.mxu0
    %v958 = vadd.f32 0.0, %v957
    %v959 = vand.u32 %v587, 4294901760
    %v960 = vsub.f32 %v587, %v959
    %v961 = vand.u32 %v960, 4294901760
    %v962 = vsub.f32 %v960, %v961
    %v963 = vand.u32 %v962, 4294901760
    %964 = vmatmul.f32.gmra.mxu0 %v963
    %v965 = vpop.f32.mrf.mxu0
    %v966 = vadd.f32 0.0, %v965
    %v967 = vand.u32 %v589, 4294901760
    %v968 = vsub.f32 %v589, %v967
    %v969 = vand.u32 %v968, 4294901760
    %v970 = vsub.f32 %v968, %v969
    %v971 = vand.u32 %v970, 4294901760
    %972 = vmatmul.f32.gmra.mxu0 %v971
    %v973 = vpop.f32.mrf.mxu0
    %v974 = vadd.f32 0.0, %v973
    %v975 = vand.u32 %v591, 4294901760
    %v976 = vsub.f32 %v591, %v975
    %v977 = vand.u32 %v976, 4294901760
    %v978 = vsub.f32 %v976, %v977
    %v979 = vand.u32 %v978, 4294901760
    %980 = vmatmul.f32.gmra.mxu0 %v979
    %v981 = vpop.f32.mrf.mxu0
    %v982 = vadd.f32 0.0, %v981
    %v983 = vand.u32 %v593, 4294901760
    %v984 = vsub.f32 %v593, %v983
    %v985 = vand.u32 %v984, 4294901760
    %v986 = vsub.f32 %v984, %v985
    %v987 = vand.u32 %v986, 4294901760
    %988 = vmatmul.f32.gmra.mxu0 %v987
    %v989 = vpop.f32.mrf.mxu0
    %v990 = vadd.f32 0.0, %v989
    %v991 = vand.u32 %v595, 4294901760
    %v992 = vsub.f32 %v595, %v991
    %v993 = vand.u32 %v992, 4294901760
    %v994 = vsub.f32 %v992, %v993
    %v995 = vand.u32 %v994, 4294901760
    %996 = vmatmul.f32.gmra.mxu0 %v995
    %v997 = vpop.f32.mrf.mxu0
    %v998 = vadd.f32 0.0, %v997
    %v999 = vand.u32 %v597, 4294901760
    %v1000 = vsub.f32 %v597, %v999
    %v1001 = vand.u32 %v1000, 4294901760
    %v1002 = vsub.f32 %v1000, %v1001
    %v1003 = vand.u32 %v1002, 4294901760
    %1004 = vmatmul.f32.gmra.mxu0 %v1003
    %v1005 = vpop.f32.mrf.mxu0
    %v1006 = vadd.f32 0.0, %v1005
    %v1007 = vand.u32 %v599, 4294901760
    %v1008 = vsub.f32 %v599, %v1007
    %v1009 = vand.u32 %v1008, 4294901760
    %v1010 = vsub.f32 %v1008, %v1009
    %v1011 = vand.u32 %v1010, 4294901760
    %1012 = vmatmul.f32.gmra.mxu0 %v1011
    %v1013 = vpop.f32.mrf.mxu0
    %v1014 = vadd.f32 0.0, %v1013
    %v1015 = vand.u32 %v601, 4294901760
    %v1016 = vsub.f32 %v601, %v1015
    %v1017 = vand.u32 %v1016, 4294901760
    %v1018 = vsub.f32 %v1016, %v1017
    %v1019 = vand.u32 %v1018, 4294901760
    %1020 = vmatmul.f32.gmra.mxu0 %v1019
    %v1021 = vpop.f32.mrf.mxu0
    %v1022 = vadd.f32 0.0, %v1021
    %v1023 = vand.u32 %v603, 4294901760
    %v1024 = vsub.f32 %v603, %v1023
    %v1025 = vand.u32 %v1024, 4294901760
    %v1026 = vsub.f32 %v1024, %v1025
    %v1027 = vand.u32 %v1026, 4294901760
    %1028 = vmatmul.f32.gmra.mxu0 %v1027
    %v1029 = vpop.f32.mrf.mxu0
    %v1030 = vadd.f32 0.0, %v1029
    %v1031 = vand.u32 %v605, 4294901760
    %v1032 = vsub.f32 %v605, %v1031
    %v1033 = vand.u32 %v1032, 4294901760
    %v1034 = vsub.f32 %v1032, %v1033
    %v1035 = vand.u32 %v1034, 4294901760
    %1036 = vmatmul.f32.gmra.mxu0 %v1035
    %v1037 = vpop.f32.mrf.mxu0
    %v1038 = vadd.f32 0.0, %v1037
    %v1039 = vand.u32 %v607, 4294901760
    %v1040 = vsub.f32 %v607, %v1039
    %v1041 = vand.u32 %v1040, 4294901760
    %v1042 = vsub.f32 %v1040, %v1041
    %v1043 = vand.u32 %v1042, 4294901760
    %1044 = vmatmul.f32.gmra.mxu0 %v1043
    %v1045 = vpop.f32.mrf.mxu0
    %v1046 = vadd.f32 0.0, %v1045
    %v1047 = vand.u32 %v609, 4294901760
    %v1048 = vsub.f32 %v609, %v1047
    %v1049 = vand.u32 %v1048, 4294901760
    %v1050 = vsub.f32 %v1048, %v1049
    %v1051 = vand.u32 %v1050, 4294901760
    %1052 = vmatmul.f32.gmra.mxu0 %v1051
    %v1053 = vpop.f32.mrf.mxu0
    %v1054 = vadd.f32 0.0, %v1053
    %v1055 = vand.u32 %v611, 4294901760
    %v1056 = vsub.f32 %v611, %v1055
    %v1057 = vand.u32 %v1056, 4294901760
    %v1058 = vsub.f32 %v1056, %v1057
    %v1059 = vand.u32 %v1058, 4294901760
    %1060 = vmatmul.f32.gmra.mxu0 %v1059
    %v1061 = vpop.f32.mrf.mxu0
    %v1062 = vadd.f32 0.0, %v1061
    %v1063 = vand.u32 %v613, 4294901760
    %v1064 = vsub.f32 %v613, %v1063
    %v1065 = vand.u32 %v1064, 4294901760
    %v1066 = vsub.f32 %v1064, %v1065
    %v1067 = vand.u32 %v1066, 4294901760
    %1068 = vmatmul.f32.gmra.mxu0 %v1067
    %v1069 = vpop.f32.mrf.mxu0
    %v1070 = vadd.f32 0.0, %v1069
    %v1071 = vand.u32 %v615, 4294901760
    %v1072 = vsub.f32 %v615, %v1071
    %v1073 = vand.u32 %v1072, 4294901760
    %v1074 = vsub.f32 %v1072, %v1073
    %v1075 = vand.u32 %v1074, 4294901760
    %1076 = vmatmul.f32.gmra.mxu0 %v1075
    %v1077 = vpop.f32.mrf.mxu0
    %v1078 = vadd.f32 0.0, %v1077
    %v1079 = vand.u32 %v617, 4294901760
    %v1080 = vsub.f32 %v617, %v1079
    %v1081 = vand.u32 %v1080, 4294901760
    %v1082 = vsub.f32 %v1080, %v1081
    %v1083 = vand.u32 %v1082, 4294901760
    %1084 = vmatmul.f32.gmra.mxu0 %v1083
    %v1085 = vpop.f32.mrf.mxu0
    %v1086 = vadd.f32 0.0, %v1085
    %v1087 = vand.u32 %v619, 4294901760
    %v1088 = vsub.f32 %v619, %v1087
    %v1089 = vand.u32 %v1088, 4294901760
    %v1090 = vsub.f32 %v1088, %v1089
    %v1091 = vand.u32 %v1090, 4294901760
    %1092 = vmatmul.f32.gmra.mxu0 %v1091
    %v1093 = vpop.f32.mrf.mxu0
    %v1094 = vadd.f32 0.0, %v1093
    %v1095 = vand.u32 %v621, 4294901760
    %v1096 = vsub.f32 %v621, %v1095
    %v1097 = vand.u32 %v1096, 4294901760
    %v1098 = vsub.f32 %v1096, %v1097
    %v1099 = vand.u32 %v1098, 4294901760
    %1100 = vmatmul.f32.gmra.mxu0 %v1099
    %v1101 = vpop.f32.mrf.mxu0
    %v1102 = vadd.f32 0.0, %v1101
    %v1103 = vand.u32 %v623, 4294901760
    %v1104 = vsub.f32 %v623, %v1103
    %v1105 = vand.u32 %v1104, 4294901760
    %v1106 = vsub.f32 %v1104, %v1105
    %v1107 = vand.u32 %v1106, 4294901760
    %1108 = vmatmul.f32.gmra.mxu0 %v1107
    %v1109 = vpop.f32.mrf.mxu0
    %v1110 = vadd.f32 0.0, %v1109
    %v1111 = vand.u32 %v625, 4294901760
    %v1112 = vsub.f32 %v625, %v1111
    %v1113 = vand.u32 %v1112, 4294901760
    %v1114 = vsub.f32 %v1112, %v1113
    %v1115 = vand.u32 %v1114, 4294901760
    %1116 = vmatmul.f32.gmra.mxu0 %v1115
    %v1117 = vpop.f32.mrf.mxu0
    %v1118 = vadd.f32 0.0, %v1117
    %v1119 = vand.u32 %v627, 4294901760
    %v1120 = vsub.f32 %v627, %v1119
    %v1121 = vand.u32 %v1120, 4294901760
    %v1122 = vsub.f32 %v1120, %v1121
    %v1123 = vand.u32 %v1122, 4294901760
    %1124 = vmatmul.f32.gmra.mxu0 %v1123
    %v1125 = vpop.f32.mrf.mxu0
    %v1126 = vadd.f32 0.0, %v1125
    %v1127 = vand.u32 %v629, 4294901760
    %v1128 = vsub.f32 %v629, %v1127
    %v1129 = vand.u32 %v1128, 4294901760
    %v1130 = vsub.f32 %v1128, %v1129
    %v1131 = vand.u32 %v1130, 4294901760
    %1132 = vmatmul.f32.gmra.mxu0 %v1131
    %v1133 = vpop.f32.mrf.mxu0
    %v1134 = vadd.f32 0.0, %v1133
    %v1135 = vand.u32 %v631, 4294901760
    %v1136 = vsub.f32 %v631, %v1135
    %v1137 = vand.u32 %v1136, 4294901760
    %v1138 = vsub.f32 %v1136, %v1137
    %v1139 = vand.u32 %v1138, 4294901760
    %1140 = vmatmul.f32.gmra.mxu0 %v1139
    %v1141 = vpop.f32.mrf.mxu0
    %v1142 = vadd.f32 0.0, %v1141
    %v1143 = vand.u32 %v633, 4294901760
    %v1144 = vsub.f32 %v633, %v1143
    %v1145 = vand.u32 %v1144, 4294901760
    %v1146 = vsub.f32 %v1144, %v1145
    %v1147 = vand.u32 %v1146, 4294901760
    %1148 = vmatmul.f32.gmra.mxu0 %v1147
    %v1149 = vpop.f32.mrf.mxu0
    %v1150 = vadd.f32 0.0, %v1149
    %v1151 = vand.u32 %v635, 4294901760
    %v1152 = vsub.f32 %v635, %v1151
    %v1153 = vand.u32 %v1152, 4294901760
    %v1154 = vsub.f32 %v1152, %v1153
    %v1155 = vand.u32 %v1154, 4294901760
    %1156 = vmatmul.f32.gmra.mxu0 %v1155
    %v1157 = vpop.f32.mrf.mxu0
    %v1158 = vadd.f32 0.0, %v1157
    %v1159 = vand.u32 %v637, 4294901760
    %v1160 = vsub.f32 %v637, %v1159
    %v1161 = vand.u32 %v1160, 4294901760
    %v1162 = vsub.f32 %v1160, %v1161
    %v1163 = vand.u32 %v1162, 4294901760
    %1164 = vmatmul.f32.gmra.mxu0 %v1163
    %v1165 = vpop.f32.mrf.mxu0
    %v1166 = vadd.f32 0.0, %v1165
    %v1167 = vand.u32 %v639, 4294901760
    %v1168 = vsub.f32 %v639, %v1167
    %v1169 = vand.u32 %v1168, 4294901760
    %v1170 = vsub.f32 %v1168, %v1169
    %v1171 = vand.u32 %v1170, 4294901760
    %1172 = vmatmul.f32.gmra.mxu0 %v1171
    %v1173 = vpop.f32.mrf.mxu0
    %v1174 = vadd.f32 0.0, %v1173
    %v1175 = vand.u32 %v641, 4294901760
    %v1176 = vsub.f32 %v641, %v1175
    %v1177 = vand.u32 %v1176, 4294901760
    %v1178 = vsub.f32 %v1176, %v1177
    %v1179 = vand.u32 %v1178, 4294901760
    %1180 = vmatmul.f32.gmra.mxu0 %v1179
    %v1181 = vpop.f32.mrf.mxu0
    %v1182 = vadd.f32 0.0, %v1181
    %v1183 = vand.u32 %v643, 4294901760
    %v1184 = vsub.f32 %v643, %v1183
    %v1185 = vand.u32 %v1184, 4294901760
    %v1186 = vsub.f32 %v1184, %v1185
    %v1187 = vand.u32 %v1186, 4294901760
    %1188 = vmatmul.f32.gmra.mxu0 %v1187
    %v1189 = vpop.f32.mrf.mxu0
    %v1190 = vadd.f32 0.0, %v1189
    %v1191 = vand.u32 %v645, 4294901760
    %v1192 = vsub.f32 %v645, %v1191
    %v1193 = vand.u32 %v1192, 4294901760
    %v1194 = vsub.f32 %v1192, %v1193
    %v1195 = vand.u32 %v1194, 4294901760
    %1196 = vmatmul.f32.gmra.mxu0 %v1195
    %v1197 = vpop.f32.mrf.mxu0
    %v1198 = vadd.f32 0.0, %v1197
    %v1199 = vand.u32 %v647, 4294901760
    %v1200 = vsub.f32 %v647, %v1199
    %v1201 = vand.u32 %v1200, 4294901760
    %v1202 = vsub.f32 %v1200, %v1201
    %v1203 = vand.u32 %v1202, 4294901760
    %1204 = vmatmul.f32.gmra.mxu0 %v1203
    %v1205 = vpop.f32.mrf.mxu0
    %v1206 = vadd.f32 0.0, %v1205
    %v1207 = vand.u32 %v649, 4294901760
    %v1208 = vsub.f32 %v649, %v1207
    %v1209 = vand.u32 %v1208, 4294901760
    %v1210 = vsub.f32 %v1208, %v1209
    %v1211 = vand.u32 %v1210, 4294901760
    %1212 = vmatmul.f32.gmra.mxu0 %v1211
    %v1213 = vpop.f32.mrf.mxu0
    %v1214 = vadd.f32 0.0, %v1213
    %v1215 = vand.u32 %v651, 4294901760
    %v1216 = vsub.f32 %v651, %v1215
    %v1217 = vand.u32 %v1216, 4294901760
    %v1218 = vsub.f32 %v1216, %v1217
    %v1219 = vand.u32 %v1218, 4294901760
    %1220 = vmatmul.f32.gmra.mxu0 %v1219
    %v1221 = vpop.f32.mrf.mxu0
    %v1222 = vadd.f32 0.0, %v1221
    %v1223 = vand.u32 %v653, 4294901760
    %v1224 = vsub.f32 %v653, %v1223
    %v1225 = vand.u32 %v1224, 4294901760
    %v1226 = vsub.f32 %v1224, %v1225
    %v1227 = vand.u32 %v1226, 4294901760
    %1228 = vmatmul.f32.gmra.mxu0 %v1227
    %v1229 = vpop.f32.mrf.mxu0
    %v1230 = vadd.f32 0.0, %v1229
    %1231 = vdwg.mxu0
    %v1232 = vand.u32 %v670, 4294901760
    %v1233 = vsub.f32 %v670, %v1232
    %v1234 = vand.u32 %v1233, 4294901760
    %v1235 = vsub.f32 %v1233, %v1234
    %v1236 = vand.u32 %v1235, 4294901760
    %1237 = vmatpush.msra.mxu0 %v1236
    %v1238 = vand.u32 %v669, 4294901760
    %v1239 = vsub.f32 %v669, %v1238
    %v1240 = vand.u32 %v1239, 4294901760
    %v1241 = vsub.f32 %v1239, %v1240
    %v1242 = vand.u32 %v1241, 4294901760
    %1243 = vmatpush.msra.mxu0 %v1242
    %v1244 = vand.u32 %v668, 4294901760
    %v1245 = vsub.f32 %v668, %v1244
    %v1246 = vand.u32 %v1245, 4294901760
    %v1247 = vsub.f32 %v1245, %v1246
    %v1248 = vand.u32 %v1247, 4294901760
    %1249 = vmatpush.msra.mxu0 %v1248
    %v1250 = vand.u32 %v667, 4294901760
    %v1251 = vsub.f32 %v667, %v1250
    %v1252 = vand.u32 %v1251, 4294901760
    %v1253 = vsub.f32 %v1251, %v1252
    %v1254 = vand.u32 %v1253, 4294901760
    %1255 = vmatpush.msra.mxu0 %v1254
    %v1256 = vand.u32 %v666, 4294901760
    %v1257 = vsub.f32 %v666, %v1256
    %v1258 = vand.u32 %v1257, 4294901760
    %v1259 = vsub.f32 %v1257, %v1258
    %v1260 = vand.u32 %v1259, 4294901760
    %1261 = vmatpush.msra.mxu0 %v1260
    %v1262 = vand.u32 %v665, 4294901760
    %v1263 = vsub.f32 %v665, %v1262
    %v1264 = vand.u32 %v1263, 4294901760
    %v1265 = vsub.f32 %v1263, %v1264
    %v1266 = vand.u32 %v1265, 4294901760
    %1267 = vmatpush.msra.mxu0 %v1266
    %v1268 = vand.u32 %v664, 4294901760
    %v1269 = vsub.f32 %v664, %v1268
    %v1270 = vand.u32 %v1269, 4294901760
    %v1271 = vsub.f32 %v1269, %v1270
    %v1272 = vand.u32 %v1271, 4294901760
    %1273 = vmatpush.msra.mxu0 %v1272
    %v1274 = vand.u32 %v663, 4294901760
    %v1275 = vsub.f32 %v663, %v1274
    %v1276 = vand.u32 %v1275, 4294901760
    %v1277 = vsub.f32 %v1275, %v1276
    %v1278 = vand.u32 %v1277, 4294901760
    %1279 = vmatpush.msra.mxu0 %v1278
    %v1280 = vand.u32 %v662, 4294901760
    %v1281 = vsub.f32 %v662, %v1280
    %v1282 = vand.u32 %v1281, 4294901760
    %v1283 = vsub.f32 %v1281, %v1282
    %v1284 = vand.u32 %v1283, 4294901760
    %1285 = vmatpush.msra.mxu0 %v1284
    %v1286 = vand.u32 %v661, 4294901760
    %v1287 = vsub.f32 %v661, %v1286
    %v1288 = vand.u32 %v1287, 4294901760
    %v1289 = vsub.f32 %v1287, %v1288
    %v1290 = vand.u32 %v1289, 4294901760
    %1291 = vmatpush.msra.mxu0 %v1290
    %v1292 = vand.u32 %v660, 4294901760
    %v1293 = vsub.f32 %v660, %v1292
    %v1294 = vand.u32 %v1293, 4294901760
    %v1295 = vsub.f32 %v1293, %v1294
    %v1296 = vand.u32 %v1295, 4294901760
    %1297 = vmatpush.msra.mxu0 %v1296
    %v1298 = vand.u32 %v659, 4294901760
    %v1299 = vsub.f32 %v659, %v1298
    %v1300 = vand.u32 %v1299, 4294901760
    %v1301 = vsub.f32 %v1299, %v1300
    %v1302 = vand.u32 %v1301, 4294901760
    %1303 = vmatpush.msra.mxu0 %v1302
    %v1304 = vand.u32 %v658, 4294901760
    %v1305 = vsub.f32 %v658, %v1304
    %v1306 = vand.u32 %v1305, 4294901760
    %v1307 = vsub.f32 %v1305, %v1306
    %v1308 = vand.u32 %v1307, 4294901760
    %1309 = vmatpush.msra.mxu0 %v1308
    %v1310 = vand.u32 %v657, 4294901760
    %v1311 = vsub.f32 %v657, %v1310
    %v1312 = vand.u32 %v1311, 4294901760
    %v1313 = vsub.f32 %v1311, %v1312
    %v1314 = vand.u32 %v1313, 4294901760
    %1315 = vmatpush.msra.mxu0 %v1314
    %v1316 = vand.u32 %v656, 4294901760
    %v1317 = vsub.f32 %v656, %v1316
    %v1318 = vand.u32 %v1317, 4294901760
    %v1319 = vsub.f32 %v1317, %v1318
    %v1320 = vand.u32 %v1319, 4294901760
    %1321 = vmatpush.msra.mxu0 %v1320
    %v1322 = vand.u32 %v655, 4294901760
    %v1323 = vsub.f32 %v655, %v1322
    %v1324 = vand.u32 %v1323, 4294901760
    %v1325 = vsub.f32 %v1323, %v1324
    %v1326 = vand.u32 %v1325, 4294901760
    %1327 = vmatpush.msra.mxu0 %v1326
    %v1328 = vand.u32 %v527, 4294901760
    %1329 = vmatmul.f32.gmra.mxu0 %v1328
    %v1330 = vpop.f32.mrf.mxu0
    %v1331 = vadd.f32 %v726, %v1330
    %v1332 = vand.u32 %v529, 4294901760
    %1333 = vmatmul.f32.gmra.mxu0 %v1332
    %v1334 = vpop.f32.mrf.mxu0
    %v1335 = vadd.f32 %v734, %v1334
    %v1336 = vand.u32 %v531, 4294901760
    %1337 = vmatmul.f32.gmra.mxu0 %v1336
    %v1338 = vpop.f32.mrf.mxu0
    %v1339 = vadd.f32 %v742, %v1338
    %v1340 = vand.u32 %v533, 4294901760
    %1341 = vmatmul.f32.gmra.mxu0 %v1340
    %v1342 = vpop.f32.mrf.mxu0
    %v1343 = vadd.f32 %v750, %v1342
    %v1344 = vand.u32 %v535, 4294901760
    %1345 = vmatmul.f32.gmra.mxu0 %v1344
    %v1346 = vpop.f32.mrf.mxu0
    %v1347 = vadd.f32 %v758, %v1346
    %v1348 = vand.u32 %v537, 4294901760
    %1349 = vmatmul.f32.gmra.mxu0 %v1348
    %v1350 = vpop.f32.mrf.mxu0
    %v1351 = vadd.f32 %v766, %v1350
    %v1352 = vand.u32 %v539, 4294901760
    %1353 = vmatmul.f32.gmra.mxu0 %v1352
    %v1354 = vpop.f32.mrf.mxu0
    %v1355 = vadd.f32 %v774, %v1354
    %v1356 = vand.u32 %v541, 4294901760
    %1357 = vmatmul.f32.gmra.mxu0 %v1356
    %v1358 = vpop.f32.mrf.mxu0
    %v1359 = vadd.f32 %v782, %v1358
    %v1360 = vand.u32 %v543, 4294901760
    %1361 = vmatmul.f32.gmra.mxu0 %v1360
    %v1362 = vpop.f32.mrf.mxu0
    %v1363 = vadd.f32 %v790, %v1362
    %v1364 = vand.u32 %v545, 4294901760
    %1365 = vmatmul.f32.gmra.mxu0 %v1364
    %v1366 = vpop.f32.mrf.mxu0
    %v1367 = vadd.f32 %v798, %v1366
    %v1368 = vand.u32 %v547, 4294901760
    %1369 = vmatmul.f32.gmra.mxu0 %v1368
    %v1370 = vpop.f32.mrf.mxu0
    %v1371 = vadd.f32 %v806, %v1370
    %v1372 = vand.u32 %v549, 4294901760
    %1373 = vmatmul.f32.gmra.mxu0 %v1372
    %v1374 = vpop.f32.mrf.mxu0
    %v1375 = vadd.f32 %v814, %v1374
    %v1376 = vand.u32 %v551, 4294901760
    %1377 = vmatmul.f32.gmra.mxu0 %v1376
    %v1378 = vpop.f32.mrf.mxu0
    %v1379 = vadd.f32 %v822, %v1378
    %v1380 = vand.u32 %v553, 4294901760
    %1381 = vmatmul.f32.gmra.mxu0 %v1380
    %v1382 = vpop.f32.mrf.mxu0
    %v1383 = vadd.f32 %v830, %v1382
    %v1384 = vand.u32 %v555, 4294901760
    %1385 = vmatmul.f32.gmra.mxu0 %v1384
    %v1386 = vpop.f32.mrf.mxu0
    %v1387 = vadd.f32 %v838, %v1386
    %v1388 = vand.u32 %v557, 4294901760
    %1389 = vmatmul.f32.gmra.mxu0 %v1388
    %v1390 = vpop.f32.mrf.mxu0
    %v1391 = vadd.f32 %v846, %v1390
    %v1392 = vand.u32 %v559, 4294901760
    %1393 = vmatmul.f32.gmra.mxu0 %v1392
    %v1394 = vpop.f32.mrf.mxu0
    %v1395 = vadd.f32 %v854, %v1394
    %v1396 = vand.u32 %v561, 4294901760
    %1397 = vmatmul.f32.gmra.mxu0 %v1396
    %v1398 = vpop.f32.mrf.mxu0
    %v1399 = vadd.f32 %v862, %v1398
    %v1400 = vand.u32 %v563, 4294901760
    %1401 = vmatmul.f32.gmra.mxu0 %v1400
    %v1402 = vpop.f32.mrf.mxu0
    %v1403 = vadd.f32 %v870, %v1402
    %v1404 = vand.u32 %v565, 4294901760
    %1405 = vmatmul.f32.gmra.mxu0 %v1404
    %v1406 = vpop.f32.mrf.mxu0
    %v1407 = vadd.f32 %v878, %v1406
    %v1408 = vand.u32 %v567, 4294901760
    %1409 = vmatmul.f32.gmra.mxu0 %v1408
    %v1410 = vpop.f32.mrf.mxu0
    %v1411 = vadd.f32 %v886, %v1410
    %v1412 = vand.u32 %v569, 4294901760
    %1413 = vmatmul.f32.gmra.mxu0 %v1412
    %v1414 = vpop.f32.mrf.mxu0
    %v1415 = vadd.f32 %v894, %v1414
    %v1416 = vand.u32 %v571, 4294901760
    %1417 = vmatmul.f32.gmra.mxu0 %v1416
    %v1418 = vpop.f32.mrf.mxu0
    %v1419 = vadd.f32 %v902, %v1418
    %v1420 = vand.u32 %v573, 4294901760
    %1421 = vmatmul.f32.gmra.mxu0 %v1420
    %v1422 = vpop.f32.mrf.mxu0
    %v1423 = vadd.f32 %v910, %v1422
    %v1424 = vand.u32 %v575, 4294901760
    %1425 = vmatmul.f32.gmra.mxu0 %v1424
    %v1426 = vpop.f32.mrf.mxu0
    %v1427 = vadd.f32 %v918, %v1426
    %v1428 = vand.u32 %v577, 4294901760
    %1429 = vmatmul.f32.gmra.mxu0 %v1428
    %v1430 = vpop.f32.mrf.mxu0
    %v1431 = vadd.f32 %v926, %v1430
    %v1432 = vand.u32 %v579, 4294901760
    %1433 = vmatmul.f32.gmra.mxu0 %v1432
    %v1434 = vpop.f32.mrf.mxu0
    %v1435 = vadd.f32 %v934, %v1434
    %v1436 = vand.u32 %v581, 4294901760
    %1437 = vmatmul.f32.gmra.mxu0 %v1436
    %v1438 = vpop.f32.mrf.mxu0
    %v1439 = vadd.f32 %v942, %v1438
    %v1440 = vand.u32 %v583, 4294901760
    %1441 = vmatmul.f32.gmra.mxu0 %v1440
    %v1442 = vpop.f32.mrf.mxu0
    %v1443 = vadd.f32 %v950, %v1442
    %v1444 = vand.u32 %v585, 4294901760
    %1445 = vmatmul.f32.gmra.mxu0 %v1444
    %v1446 = vpop.f32.mrf.mxu0
    %v1447 = vadd.f32 %v958, %v1446
    %v1448 = vand.u32 %v587, 4294901760
    %1449 = vmatmul.f32.gmra.mxu0 %v1448
    %v1450 = vpop.f32.mrf.mxu0
    %v1451 = vadd.f32 %v966, %v1450
    %v1452 = vand.u32 %v589, 4294901760
    %1453 = vmatmul.f32.gmra.mxu0 %v1452
    %v1454 = vpop.f32.mrf.mxu0
    %v1455 = vadd.f32 %v974, %v1454
    %v1456 = vand.u32 %v591, 4294901760
    %1457 = vmatmul.f32.gmra.mxu0 %v1456
    %v1458 = vpop.f32.mrf.mxu0
    %v1459 = vadd.f32 %v982, %v1458
    %v1460 = vand.u32 %v593, 4294901760
    %1461 = vmatmul.f32.gmra.mxu0 %v1460
    %v1462 = vpop.f32.mrf.mxu0
    %v1463 = vadd.f32 %v990, %v1462
    %v1464 = vand.u32 %v595, 4294901760
    %1465 = vmatmul.f32.gmra.mxu0 %v1464
    %v1466 = vpop.f32.mrf.mxu0
    %v1467 = vadd.f32 %v998, %v1466
    %v1468 = vand.u32 %v597, 4294901760
    %1469 = vmatmul.f32.gmra.mxu0 %v1468
    %v1470 = vpop.f32.mrf.mxu0
    %v1471 = vadd.f32 %v1006, %v1470
    %v1472 = vand.u32 %v599, 4294901760
    %1473 = vmatmul.f32.gmra.mxu0 %v1472
    %v1474 = vpop.f32.mrf.mxu0
    %v1475 = vadd.f32 %v1014, %v1474
    %v1476 = vand.u32 %v601, 4294901760
    %1477 = vmatmul.f32.gmra.mxu0 %v1476
    %v1478 = vpop.f32.mrf.mxu0
    %v1479 = vadd.f32 %v1022, %v1478
    %v1480 = vand.u32 %v603, 4294901760
    %1481 = vmatmul.f32.gmra.mxu0 %v1480
    %v1482 = vpop.f32.mrf.mxu0
    %v1483 = vadd.f32 %v1030, %v1482
    %v1484 = vand.u32 %v605, 4294901760
    %1485 = vmatmul.f32.gmra.mxu0 %v1484
    %v1486 = vpop.f32.mrf.mxu0
    %v1487 = vadd.f32 %v1038, %v1486
    %v1488 = vand.u32 %v607, 4294901760
    %1489 = vmatmul.f32.gmra.mxu0 %v1488
    %v1490 = vpop.f32.mrf.mxu0
    %v1491 = vadd.f32 %v1046, %v1490
    %v1492 = vand.u32 %v609, 4294901760
    %1493 = vmatmul.f32.gmra.mxu0 %v1492
    %v1494 = vpop.f32.mrf.mxu0
    %v1495 = vadd.f32 %v1054, %v1494
    %v1496 = vand.u32 %v611, 4294901760
    %1497 = vmatmul.f32.gmra.mxu0 %v1496
    %v1498 = vpop.f32.mrf.mxu0
    %v1499 = vadd.f32 %v1062, %v1498
    %v1500 = vand.u32 %v613, 4294901760
    %1501 = vmatmul.f32.gmra.mxu0 %v1500
    %v1502 = vpop.f32.mrf.mxu0
    %v1503 = vadd.f32 %v1070, %v1502
    %v1504 = vand.u32 %v615, 4294901760
    %1505 = vmatmul.f32.gmra.mxu0 %v1504
    %v1506 = vpop.f32.mrf.mxu0
    %v1507 = vadd.f32 %v1078, %v1506
    %v1508 = vand.u32 %v617, 4294901760
    %1509 = vmatmul.f32.gmra.mxu0 %v1508
    %v1510 = vpop.f32.mrf.mxu0
    %v1511 = vadd.f32 %v1086, %v1510
    %v1512 = vand.u32 %v619, 4294901760
    %1513 = vmatmul.f32.gmra.mxu0 %v1512
    %v1514 = vpop.f32.mrf.mxu0
    %v1515 = vadd.f32 %v1094, %v1514
    %v1516 = vand.u32 %v621, 4294901760
    %1517 = vmatmul.f32.gmra.mxu0 %v1516
    %v1518 = vpop.f32.mrf.mxu0
    %v1519 = vadd.f32 %v1102, %v1518
    %v1520 = vand.u32 %v623, 4294901760
    %1521 = vmatmul.f32.gmra.mxu0 %v1520
    %v1522 = vpop.f32.mrf.mxu0
    %v1523 = vadd.f32 %v1110, %v1522
    %v1524 = vand.u32 %v625, 4294901760
    %1525 = vmatmul.f32.gmra.mxu0 %v1524
    %v1526 = vpop.f32.mrf.mxu0
    %v1527 = vadd.f32 %v1118, %v1526
    %v1528 = vand.u32 %v627, 4294901760
    %1529 = vmatmul.f32.gmra.mxu0 %v1528
    %v1530 = vpop.f32.mrf.mxu0
    %v1531 = vadd.f32 %v1126, %v1530
    %v1532 = vand.u32 %v629, 4294901760
    %1533 = vmatmul.f32.gmra.mxu0 %v1532
    %v1534 = vpop.f32.mrf.mxu0
    %v1535 = vadd.f32 %v1134, %v1534
    %v1536 = vand.u32 %v631, 4294901760
    %1537 = vmatmul.f32.gmra.mxu0 %v1536
    %v1538 = vpop.f32.mrf.mxu0
    %v1539 = vadd.f32 %v1142, %v1538
    %v1540 = vand.u32 %v633, 4294901760
    %1541 = vmatmul.f32.gmra.mxu0 %v1540
    %v1542 = vpop.f32.mrf.mxu0
    %v1543 = vadd.f32 %v1150, %v1542
    %v1544 = vand.u32 %v635, 4294901760
    %1545 = vmatmul.f32.gmra.mxu0 %v1544
    %v1546 = vpop.f32.mrf.mxu0
    %v1547 = vadd.f32 %v1158, %v1546
    %v1548 = vand.u32 %v637, 4294901760
    %1549 = vmatmul.f32.gmra.mxu0 %v1548
    %v1550 = vpop.f32.mrf.mxu0
    %v1551 = vadd.f32 %v1166, %v1550
    %v1552 = vand.u32 %v639, 4294901760
    %1553 = vmatmul.f32.gmra.mxu0 %v1552
    %v1554 = vpop.f32.mrf.mxu0
    %v1555 = vadd.f32 %v1174, %v1554
    %v1556 = vand.u32 %v641, 4294901760
    %1557 = vmatmul.f32.gmra.mxu0 %v1556
    %v1558 = vpop.f32.mrf.mxu0
    %v1559 = vadd.f32 %v1182, %v1558
    %v1560 = vand.u32 %v643, 4294901760
    %1561 = vmatmul.f32.gmra.mxu0 %v1560
    %v1562 = vpop.f32.mrf.mxu0
    %v1563 = vadd.f32 %v1190, %v1562
    %v1564 = vand.u32 %v645, 4294901760
    %1565 = vmatmul.f32.gmra.mxu0 %v1564
    %v1566 = vpop.f32.mrf.mxu0
    %v1567 = vadd.f32 %v1198, %v1566
    %v1568 = vand.u32 %v647, 4294901760
    %1569 = vmatmul.f32.gmra.mxu0 %v1568
    %v1570 = vpop.f32.mrf.mxu0
    %v1571 = vadd.f32 %v1206, %v1570
    %v1572 = vand.u32 %v649, 4294901760
    %1573 = vmatmul.f32.gmra.mxu0 %v1572
    %v1574 = vpop.f32.mrf.mxu0
    %v1575 = vadd.f32 %v1214, %v1574
    %v1576 = vand.u32 %v651, 4294901760
    %1577 = vmatmul.f32.gmra.mxu0 %v1576
    %v1578 = vpop.f32.mrf.mxu0
    %v1579 = vadd.f32 %v1222, %v1578
    %v1580 = vand.u32 %v653, 4294901760
    %1581 = vmatmul.f32.gmra.mxu0 %v1580
    %v1582 = vpop.f32.mrf.mxu0
    %v1583 = vadd.f32 %v1230, %v1582
    %1584 = vdwg.mxu0
    %v1585 = vand.u32 %v670, 4294901760
    %v1586 = vsub.f32 %v670, %v1585
    %1587 = vmatpush.msra.mxu0 %v1586
    %v1588 = vand.u32 %v669, 4294901760
    %v1589 = vsub.f32 %v669, %v1588
    %1590 = vmatpush.msra.mxu0 %v1589
    %v1591 = vand.u32 %v668, 4294901760
    %v1592 = vsub.f32 %v668, %v1591
    %1593 = vmatpush.msra.mxu0 %v1592
    %v1594 = vand.u32 %v667, 4294901760
    %v1595 = vsub.f32 %v667, %v1594
    %1596 = vmatpush.msra.mxu0 %v1595
    %v1597 = vand.u32 %v666, 4294901760
    %v1598 = vsub.f32 %v666, %v1597
    %1599 = vmatpush.msra.mxu0 %v1598
    %v1600 = vand.u32 %v665, 4294901760
    %v1601 = vsub.f32 %v665, %v1600
    %1602 = vmatpush.msra.mxu0 %v1601
    %v1603 = vand.u32 %v664, 4294901760
    %v1604 = vsub.f32 %v664, %v1603
    %1605 = vmatpush.msra.mxu0 %v1604
    %v1606 = vand.u32 %v663, 4294901760
    %v1607 = vsub.f32 %v663, %v1606
    %1608 = vmatpush.msra.mxu0 %v1607
    %v1609 = vand.u32 %v662, 4294901760
    %v1610 = vsub.f32 %v662, %v1609
    %1611 = vmatpush.msra.mxu0 %v1610
    %v1612 = vand.u32 %v661, 4294901760
    %v1613 = vsub.f32 %v661, %v1612
    %1614 = vmatpush.msra.mxu0 %v1613
    %v1615 = vand.u32 %v660, 4294901760
    %v1616 = vsub.f32 %v660, %v1615
    %1617 = vmatpush.msra.mxu0 %v1616
    %v1618 = vand.u32 %v659, 4294901760
    %v1619 = vsub.f32 %v659, %v1618
    %1620 = vmatpush.msra.mxu0 %v1619
    %v1621 = vand.u32 %v658, 4294901760
    %v1622 = vsub.f32 %v658, %v1621
    %1623 = vmatpush.msra.mxu0 %v1622
    %v1624 = vand.u32 %v657, 4294901760
    %v1625 = vsub.f32 %v657, %v1624
    %1626 = vmatpush.msra.mxu0 %v1625
    %v1627 = vand.u32 %v656, 4294901760
    %v1628 = vsub.f32 %v656, %v1627
    %1629 = vmatpush.msra.mxu0 %v1628
    %v1630 = vand.u32 %v655, 4294901760
    %v1631 = vsub.f32 %v655, %v1630
    %1632 = vmatpush.msra.mxu0 %v1631
    %v1633 = vand.u32 %v527, 4294901760
    %v1634 = vsub.f32 %v527, %v1633
    %1635 = vmatmul.f32.gmra.mxu0 %v1634
    %v1636 = vpop.f32.mrf.mxu0
    %v1637 = vadd.f32 %v1331, %v1636
    %v1638 = vand.u32 %v529, 4294901760
    %v1639 = vsub.f32 %v529, %v1638
    %1640 = vmatmul.f32.gmra.mxu0 %v1639
    %v1641 = vpop.f32.mrf.mxu0
    %v1642 = vadd.f32 %v1335, %v1641
    %v1643 = vand.u32 %v531, 4294901760
    %v1644 = vsub.f32 %v531, %v1643
    %1645 = vmatmul.f32.gmra.mxu0 %v1644
    %v1646 = vpop.f32.mrf.mxu0
    %v1647 = vadd.f32 %v1339, %v1646
    %v1648 = vand.u32 %v533, 4294901760
    %v1649 = vsub.f32 %v533, %v1648
    %1650 = vmatmul.f32.gmra.mxu0 %v1649
    %v1651 = vpop.f32.mrf.mxu0
    %v1652 = vadd.f32 %v1343, %v1651
    %v1653 = vand.u32 %v535, 4294901760
    %v1654 = vsub.f32 %v535, %v1653
    %1655 = vmatmul.f32.gmra.mxu0 %v1654
    %v1656 = vpop.f32.mrf.mxu0
    %v1657 = vadd.f32 %v1347, %v1656
    %v1658 = vand.u32 %v537, 4294901760
    %v1659 = vsub.f32 %v537, %v1658
    %1660 = vmatmul.f32.gmra.mxu0 %v1659
    %v1661 = vpop.f32.mrf.mxu0
    %v1662 = vadd.f32 %v1351, %v1661
    %v1663 = vand.u32 %v539, 4294901760
    %v1664 = vsub.f32 %v539, %v1663
    %1665 = vmatmul.f32.gmra.mxu0 %v1664
    %v1666 = vpop.f32.mrf.mxu0
    %v1667 = vadd.f32 %v1355, %v1666
    %v1668 = vand.u32 %v541, 4294901760
    %v1669 = vsub.f32 %v541, %v1668
    %1670 = vmatmul.f32.gmra.mxu0 %v1669
    %v1671 = vpop.f32.mrf.mxu0
    %v1672 = vadd.f32 %v1359, %v1671
    %v1673 = vand.u32 %v543, 4294901760
    %v1674 = vsub.f32 %v543, %v1673
    %1675 = vmatmul.f32.gmra.mxu0 %v1674
    %v1676 = vpop.f32.mrf.mxu0
    %v1677 = vadd.f32 %v1363, %v1676
    %v1678 = vand.u32 %v545, 4294901760
    %v1679 = vsub.f32 %v545, %v1678
    %1680 = vmatmul.f32.gmra.mxu0 %v1679
    %v1681 = vpop.f32.mrf.mxu0
    %v1682 = vadd.f32 %v1367, %v1681
    %v1683 = vand.u32 %v547, 4294901760
    %v1684 = vsub.f32 %v547, %v1683
    %1685 = vmatmul.f32.gmra.mxu0 %v1684
    %v1686 = vpop.f32.mrf.mxu0
    %v1687 = vadd.f32 %v1371, %v1686
    %v1688 = vand.u32 %v549, 4294901760
    %v1689 = vsub.f32 %v549, %v1688
    %1690 = vmatmul.f32.gmra.mxu0 %v1689
    %v1691 = vpop.f32.mrf.mxu0
    %v1692 = vadd.f32 %v1375, %v1691
    %v1693 = vand.u32 %v551, 4294901760
    %v1694 = vsub.f32 %v551, %v1693
    %1695 = vmatmul.f32.gmra.mxu0 %v1694
    %v1696 = vpop.f32.mrf.mxu0
    %v1697 = vadd.f32 %v1379, %v1696
    %v1698 = vand.u32 %v553, 4294901760
    %v1699 = vsub.f32 %v553, %v1698
    %1700 = vmatmul.f32.gmra.mxu0 %v1699
    %v1701 = vpop.f32.mrf.mxu0
    %v1702 = vadd.f32 %v1383, %v1701
    %v1703 = vand.u32 %v555, 4294901760
    %v1704 = vsub.f32 %v555, %v1703
    %1705 = vmatmul.f32.gmra.mxu0 %v1704
    %v1706 = vpop.f32.mrf.mxu0
    %v1707 = vadd.f32 %v1387, %v1706
    %v1708 = vand.u32 %v557, 4294901760
    %v1709 = vsub.f32 %v557, %v1708
    %1710 = vmatmul.f32.gmra.mxu0 %v1709
    %v1711 = vpop.f32.mrf.mxu0
    %v1712 = vadd.f32 %v1391, %v1711
    %v1713 = vand.u32 %v559, 4294901760
    %v1714 = vsub.f32 %v559, %v1713
    %1715 = vmatmul.f32.gmra.mxu0 %v1714
    %v1716 = vpop.f32.mrf.mxu0
    %v1717 = vadd.f32 %v1395, %v1716
    %v1718 = vand.u32 %v561, 4294901760
    %v1719 = vsub.f32 %v561, %v1718
    %1720 = vmatmul.f32.gmra.mxu0 %v1719
    %v1721 = vpop.f32.mrf.mxu0
    %v1722 = vadd.f32 %v1399, %v1721
    %v1723 = vand.u32 %v563, 4294901760
    %v1724 = vsub.f32 %v563, %v1723
    %1725 = vmatmul.f32.gmra.mxu0 %v1724
    %v1726 = vpop.f32.mrf.mxu0
    %v1727 = vadd.f32 %v1403, %v1726
    %v1728 = vand.u32 %v565, 4294901760
    %v1729 = vsub.f32 %v565, %v1728
    %1730 = vmatmul.f32.gmra.mxu0 %v1729
    %v1731 = vpop.f32.mrf.mxu0
    %v1732 = vadd.f32 %v1407, %v1731
    %v1733 = vand.u32 %v567, 4294901760
    %v1734 = vsub.f32 %v567, %v1733
    %1735 = vmatmul.f32.gmra.mxu0 %v1734
    %v1736 = vpop.f32.mrf.mxu0
    %v1737 = vadd.f32 %v1411, %v1736
    %v1738 = vand.u32 %v569, 4294901760
    %v1739 = vsub.f32 %v569, %v1738
    %1740 = vmatmul.f32.gmra.mxu0 %v1739
    %v1741 = vpop.f32.mrf.mxu0
    %v1742 = vadd.f32 %v1415, %v1741
    %v1743 = vand.u32 %v571, 4294901760
    %v1744 = vsub.f32 %v571, %v1743
    %1745 = vmatmul.f32.gmra.mxu0 %v1744
    %v1746 = vpop.f32.mrf.mxu0
    %v1747 = vadd.f32 %v1419, %v1746
    %v1748 = vand.u32 %v573, 4294901760
    %v1749 = vsub.f32 %v573, %v1748
    %1750 = vmatmul.f32.gmra.mxu0 %v1749
    %v1751 = vpop.f32.mrf.mxu0
    %v1752 = vadd.f32 %v1423, %v1751
    %v1753 = vand.u32 %v575, 4294901760
    %v1754 = vsub.f32 %v575, %v1753
    %1755 = vmatmul.f32.gmra.mxu0 %v1754
    %v1756 = vpop.f32.mrf.mxu0
    %v1757 = vadd.f32 %v1427, %v1756
    %v1758 = vand.u32 %v577, 4294901760
    %v1759 = vsub.f32 %v577, %v1758
    %1760 = vmatmul.f32.gmra.mxu0 %v1759
    %v1761 = vpop.f32.mrf.mxu0
    %v1762 = vadd.f32 %v1431, %v1761
    %v1763 = vand.u32 %v579, 4294901760
    %v1764 = vsub.f32 %v579, %v1763
    %1765 = vmatmul.f32.gmra.mxu0 %v1764
    %v1766 = vpop.f32.mrf.mxu0
    %v1767 = vadd.f32 %v1435, %v1766
    %v1768 = vand.u32 %v581, 4294901760
    %v1769 = vsub.f32 %v581, %v1768
    %1770 = vmatmul.f32.gmra.mxu0 %v1769
    %v1771 = vpop.f32.mrf.mxu0
    %v1772 = vadd.f32 %v1439, %v1771
    %v1773 = vand.u32 %v583, 4294901760
    %v1774 = vsub.f32 %v583, %v1773
    %1775 = vmatmul.f32.gmra.mxu0 %v1774
    %v1776 = vpop.f32.mrf.mxu0
    %v1777 = vadd.f32 %v1443, %v1776
    %v1778 = vand.u32 %v585, 4294901760
    %v1779 = vsub.f32 %v585, %v1778
    %1780 = vmatmul.f32.gmra.mxu0 %v1779
    %v1781 = vpop.f32.mrf.mxu0
    %v1782 = vadd.f32 %v1447, %v1781
    %v1783 = vand.u32 %v587, 4294901760
    %v1784 = vsub.f32 %v587, %v1783
    %1785 = vmatmul.f32.gmra.mxu0 %v1784
    %v1786 = vpop.f32.mrf.mxu0
    %v1787 = vadd.f32 %v1451, %v1786
    %v1788 = vand.u32 %v589, 4294901760
    %v1789 = vsub.f32 %v589, %v1788
    %1790 = vmatmul.f32.gmra.mxu0 %v1789
    %v1791 = vpop.f32.mrf.mxu0
    %v1792 = vadd.f32 %v1455, %v1791
    %v1793 = vand.u32 %v591, 4294901760
    %v1794 = vsub.f32 %v591, %v1793
    %1795 = vmatmul.f32.gmra.mxu0 %v1794
    %v1796 = vpop.f32.mrf.mxu0
    %v1797 = vadd.f32 %v1459, %v1796
    %v1798 = vand.u32 %v593, 4294901760
    %v1799 = vsub.f32 %v593, %v1798
    %1800 = vmatmul.f32.gmra.mxu0 %v1799
    %v1801 = vpop.f32.mrf.mxu0
    %v1802 = vadd.f32 %v1463, %v1801
    %v1803 = vand.u32 %v595, 4294901760
    %v1804 = vsub.f32 %v595, %v1803
    %1805 = vmatmul.f32.gmra.mxu0 %v1804
    %v1806 = vpop.f32.mrf.mxu0
    %v1807 = vadd.f32 %v1467, %v1806
    %v1808 = vand.u32 %v597, 4294901760
    %v1809 = vsub.f32 %v597, %v1808
    %1810 = vmatmul.f32.gmra.mxu0 %v1809
    %v1811 = vpop.f32.mrf.mxu0
    %v1812 = vadd.f32 %v1471, %v1811
    %v1813 = vand.u32 %v599, 4294901760
    %v1814 = vsub.f32 %v599, %v1813
    %1815 = vmatmul.f32.gmra.mxu0 %v1814
    %v1816 = vpop.f32.mrf.mxu0
    %v1817 = vadd.f32 %v1475, %v1816
    %v1818 = vand.u32 %v601, 4294901760
    %v1819 = vsub.f32 %v601, %v1818
    %1820 = vmatmul.f32.gmra.mxu0 %v1819
    %v1821 = vpop.f32.mrf.mxu0
    %v1822 = vadd.f32 %v1479, %v1821
    %v1823 = vand.u32 %v603, 4294901760
    %v1824 = vsub.f32 %v603, %v1823
    %1825 = vmatmul.f32.gmra.mxu0 %v1824
    %v1826 = vpop.f32.mrf.mxu0
    %v1827 = vadd.f32 %v1483, %v1826
    %v1828 = vand.u32 %v605, 4294901760
    %v1829 = vsub.f32 %v605, %v1828
    %1830 = vmatmul.f32.gmra.mxu0 %v1829
    %v1831 = vpop.f32.mrf.mxu0
    %v1832 = vadd.f32 %v1487, %v1831
    %v1833 = vand.u32 %v607, 4294901760
    %v1834 = vsub.f32 %v607, %v1833
    %1835 = vmatmul.f32.gmra.mxu0 %v1834
    %v1836 = vpop.f32.mrf.mxu0
    %v1837 = vadd.f32 %v1491, %v1836
    %v1838 = vand.u32 %v609, 4294901760
    %v1839 = vsub.f32 %v609, %v1838
    %1840 = vmatmul.f32.gmra.mxu0 %v1839
    %v1841 = vpop.f32.mrf.mxu0
    %v1842 = vadd.f32 %v1495, %v1841
    %v1843 = vand.u32 %v611, 4294901760
    %v1844 = vsub.f32 %v611, %v1843
    %1845 = vmatmul.f32.gmra.mxu0 %v1844
    %v1846 = vpop.f32.mrf.mxu0
    %v1847 = vadd.f32 %v1499, %v1846
    %v1848 = vand.u32 %v613, 4294901760
    %v1849 = vsub.f32 %v613, %v1848
    %1850 = vmatmul.f32.gmra.mxu0 %v1849
    %v1851 = vpop.f32.mrf.mxu0
    %v1852 = vadd.f32 %v1503, %v1851
    %v1853 = vand.u32 %v615, 4294901760
    %v1854 = vsub.f32 %v615, %v1853
    %1855 = vmatmul.f32.gmra.mxu0 %v1854
    %v1856 = vpop.f32.mrf.mxu0
    %v1857 = vadd.f32 %v1507, %v1856
    %v1858 = vand.u32 %v617, 4294901760
    %v1859 = vsub.f32 %v617, %v1858
    %1860 = vmatmul.f32.gmra.mxu0 %v1859
    %v1861 = vpop.f32.mrf.mxu0
    %v1862 = vadd.f32 %v1511, %v1861
    %v1863 = vand.u32 %v619, 4294901760
    %v1864 = vsub.f32 %v619, %v1863
    %1865 = vmatmul.f32.gmra.mxu0 %v1864
    %v1866 = vpop.f32.mrf.mxu0
    %v1867 = vadd.f32 %v1515, %v1866
    %v1868 = vand.u32 %v621, 4294901760
    %v1869 = vsub.f32 %v621, %v1868
    %1870 = vmatmul.f32.gmra.mxu0 %v1869
    %v1871 = vpop.f32.mrf.mxu0
    %v1872 = vadd.f32 %v1519, %v1871
    %v1873 = vand.u32 %v623, 4294901760
    %v1874 = vsub.f32 %v623, %v1873
    %1875 = vmatmul.f32.gmra.mxu0 %v1874
    %v1876 = vpop.f32.mrf.mxu0
    %v1877 = vadd.f32 %v1523, %v1876
    %v1878 = vand.u32 %v625, 4294901760
    %v1879 = vsub.f32 %v625, %v1878
    %1880 = vmatmul.f32.gmra.mxu0 %v1879
    %v1881 = vpop.f32.mrf.mxu0
    %v1882 = vadd.f32 %v1527, %v1881
    %v1883 = vand.u32 %v627, 4294901760
    %v1884 = vsub.f32 %v627, %v1883
    %1885 = vmatmul.f32.gmra.mxu0 %v1884
    %v1886 = vpop.f32.mrf.mxu0
    %v1887 = vadd.f32 %v1531, %v1886
    %v1888 = vand.u32 %v629, 4294901760
    %v1889 = vsub.f32 %v629, %v1888
    %1890 = vmatmul.f32.gmra.mxu0 %v1889
    %v1891 = vpop.f32.mrf.mxu0
    %v1892 = vadd.f32 %v1535, %v1891
    %v1893 = vand.u32 %v631, 4294901760
    %v1894 = vsub.f32 %v631, %v1893
    %1895 = vmatmul.f32.gmra.mxu0 %v1894
    %v1896 = vpop.f32.mrf.mxu0
    %v1897 = vadd.f32 %v1539, %v1896
    %v1898 = vand.u32 %v633, 4294901760
    %v1899 = vsub.f32 %v633, %v1898
    %1900 = vmatmul.f32.gmra.mxu0 %v1899
    %v1901 = vpop.f32.mrf.mxu0
    %v1902 = vadd.f32 %v1543, %v1901
    %v1903 = vand.u32 %v635, 4294901760
    %v1904 = vsub.f32 %v635, %v1903
    %1905 = vmatmul.f32.gmra.mxu0 %v1904
    %v1906 = vpop.f32.mrf.mxu0
    %v1907 = vadd.f32 %v1547, %v1906
    %v1908 = vand.u32 %v637, 4294901760
    %v1909 = vsub.f32 %v637, %v1908
    %1910 = vmatmul.f32.gmra.mxu0 %v1909
    %v1911 = vpop.f32.mrf.mxu0
    %v1912 = vadd.f32 %v1551, %v1911
    %v1913 = vand.u32 %v639, 4294901760
    %v1914 = vsub.f32 %v639, %v1913
    %1915 = vmatmul.f32.gmra.mxu0 %v1914
    %v1916 = vpop.f32.mrf.mxu0
    %v1917 = vadd.f32 %v1555, %v1916
    %v1918 = vand.u32 %v641, 4294901760
    %v1919 = vsub.f32 %v641, %v1918
    %1920 = vmatmul.f32.gmra.mxu0 %v1919
    %v1921 = vpop.f32.mrf.mxu0
    %v1922 = vadd.f32 %v1559, %v1921
    %v1923 = vand.u32 %v643, 4294901760
    %v1924 = vsub.f32 %v643, %v1923
    %1925 = vmatmul.f32.gmra.mxu0 %v1924
    %v1926 = vpop.f32.mrf.mxu0
    %v1927 = vadd.f32 %v1563, %v1926
    %v1928 = vand.u32 %v645, 4294901760
    %v1929 = vsub.f32 %v645, %v1928
    %1930 = vmatmul.f32.gmra.mxu0 %v1929
    %v1931 = vpop.f32.mrf.mxu0
    %v1932 = vadd.f32 %v1567, %v1931
    %v1933 = vand.u32 %v647, 4294901760
    %v1934 = vsub.f32 %v647, %v1933
    %1935 = vmatmul.f32.gmra.mxu0 %v1934
    %v1936 = vpop.f32.mrf.mxu0
    %v1937 = vadd.f32 %v1571, %v1936
    %v1938 = vand.u32 %v649, 4294901760
    %v1939 = vsub.f32 %v649, %v1938
    %1940 = vmatmul.f32.gmra.mxu0 %v1939
    %v1941 = vpop.f32.mrf.mxu0
    %v1942 = vadd.f32 %v1575, %v1941
    %v1943 = vand.u32 %v651, 4294901760
    %v1944 = vsub.f32 %v651, %v1943
    %1945 = vmatmul.f32.gmra.mxu0 %v1944
    %v1946 = vpop.f32.mrf.mxu0
    %v1947 = vadd.f32 %v1579, %v1946
    %v1948 = vand.u32 %v653, 4294901760
    %v1949 = vsub.f32 %v653, %v1948
    %1950 = vmatmul.f32.gmra.mxu0 %v1949
    %v1951 = vpop.f32.mrf.mxu0
    %v1952 = vadd.f32 %v1583, %v1951
    %1953 = vdwg.mxu0
    %v1954 = vand.u32 %v670, 4294901760
    %1955 = vmatpush.msra.mxu0 %v1954
    %v1956 = vand.u32 %v669, 4294901760
    %1957 = vmatpush.msra.mxu0 %v1956
    %v1958 = vand.u32 %v668, 4294901760
    %1959 = vmatpush.msra.mxu0 %v1958
    %v1960 = vand.u32 %v667, 4294901760
    %1961 = vmatpush.msra.mxu0 %v1960
    %v1962 = vand.u32 %v666, 4294901760
    %1963 = vmatpush.msra.mxu0 %v1962
    %v1964 = vand.u32 %v665, 4294901760
    %1965 = vmatpush.msra.mxu0 %v1964
    %v1966 = vand.u32 %v664, 4294901760
    %1967 = vmatpush.msra.mxu0 %v1966
    %v1968 = vand.u32 %v663, 4294901760
    %1969 = vmatpush.msra.mxu0 %v1968
    %v1970 = vand.u32 %v662, 4294901760
    %1971 = vmatpush.msra.mxu0 %v1970
    %v1972 = vand.u32 %v661, 4294901760
    %1973 = vmatpush.msra.mxu0 %v1972
    %v1974 = vand.u32 %v660, 4294901760
    %1975 = vmatpush.msra.mxu0 %v1974
    %v1976 = vand.u32 %v659, 4294901760
    %1977 = vmatpush.msra.mxu0 %v1976
    %v1978 = vand.u32 %v658, 4294901760
    %1979 = vmatpush.msra.mxu0 %v1978
    %v1980 = vand.u32 %v657, 4294901760
    %1981 = vmatpush.msra.mxu0 %v1980
    %v1982 = vand.u32 %v656, 4294901760
    %1983 = vmatpush.msra.mxu0 %v1982
    %v1984 = vand.u32 %v655, 4294901760
    %1985 = vmatpush.msra.mxu0 %v1984
    %v1986 = vand.u32 %v527, 4294901760
    %v1987 = vsub.f32 %v527, %v1986
    %v1988 = vand.u32 %v1987, 4294901760
    %1989 = vmatmul.f32.gmra.mxu0 %v1988
    %v1990 = vpop.f32.mrf.mxu0
    %v1991 = vadd.f32 %v1637, %v1990
    %v1992 = vand.u32 %v529, 4294901760
    %v1993 = vsub.f32 %v529, %v1992
    %v1994 = vand.u32 %v1993, 4294901760
    %1995 = vmatmul.f32.gmra.mxu0 %v1994
    %v1996 = vpop.f32.mrf.mxu0
    %v1997 = vadd.f32 %v1642, %v1996
    %v1998 = vand.u32 %v531, 4294901760
    %v1999 = vsub.f32 %v531, %v1998
    %v2000 = vand.u32 %v1999, 4294901760
    %2001 = vmatmul.f32.gmra.mxu0 %v2000
    %v2002 = vpop.f32.mrf.mxu0
    %v2003 = vadd.f32 %v1647, %v2002
    %v2004 = vand.u32 %v533, 4294901760
    %v2005 = vsub.f32 %v533, %v2004
    %v2006 = vand.u32 %v2005, 4294901760
    %2007 = vmatmul.f32.gmra.mxu0 %v2006
    %v2008 = vpop.f32.mrf.mxu0
    %v2009 = vadd.f32 %v1652, %v2008
    %v2010 = vand.u32 %v535, 4294901760
    %v2011 = vsub.f32 %v535, %v2010
    %v2012 = vand.u32 %v2011, 4294901760
    %2013 = vmatmul.f32.gmra.mxu0 %v2012
    %v2014 = vpop.f32.mrf.mxu0
    %v2015 = vadd.f32 %v1657, %v2014
    %v2016 = vand.u32 %v537, 4294901760
    %v2017 = vsub.f32 %v537, %v2016
    %v2018 = vand.u32 %v2017, 4294901760
    %2019 = vmatmul.f32.gmra.mxu0 %v2018
    %v2020 = vpop.f32.mrf.mxu0
    %v2021 = vadd.f32 %v1662, %v2020
    %v2022 = vand.u32 %v539, 4294901760
    %v2023 = vsub.f32 %v539, %v2022
    %v2024 = vand.u32 %v2023, 4294901760
    %2025 = vmatmul.f32.gmra.mxu0 %v2024
    %v2026 = vpop.f32.mrf.mxu0
    %v2027 = vadd.f32 %v1667, %v2026
    %v2028 = vand.u32 %v541, 4294901760
    %v2029 = vsub.f32 %v541, %v2028
    %v2030 = vand.u32 %v2029, 4294901760
    %2031 = vmatmul.f32.gmra.mxu0 %v2030
    %v2032 = vpop.f32.mrf.mxu0
    %v2033 = vadd.f32 %v1672, %v2032
    %v2034 = vand.u32 %v543, 4294901760
    %v2035 = vsub.f32 %v543, %v2034
    %v2036 = vand.u32 %v2035, 4294901760
    %2037 = vmatmul.f32.gmra.mxu0 %v2036
    %v2038 = vpop.f32.mrf.mxu0
    %v2039 = vadd.f32 %v1677, %v2038
    %v2040 = vand.u32 %v545, 4294901760
    %v2041 = vsub.f32 %v545, %v2040
    %v2042 = vand.u32 %v2041, 4294901760
    %2043 = vmatmul.f32.gmra.mxu0 %v2042
    %v2044 = vpop.f32.mrf.mxu0
    %v2045 = vadd.f32 %v1682, %v2044
    %v2046 = vand.u32 %v547, 4294901760
    %v2047 = vsub.f32 %v547, %v2046
    %v2048 = vand.u32 %v2047, 4294901760
    %2049 = vmatmul.f32.gmra.mxu0 %v2048
    %v2050 = vpop.f32.mrf.mxu0
    %v2051 = vadd.f32 %v1687, %v2050
    %v2052 = vand.u32 %v549, 4294901760
    %v2053 = vsub.f32 %v549, %v2052
    %v2054 = vand.u32 %v2053, 4294901760
    %2055 = vmatmul.f32.gmra.mxu0 %v2054
    %v2056 = vpop.f32.mrf.mxu0
    %v2057 = vadd.f32 %v1692, %v2056
    %v2058 = vand.u32 %v551, 4294901760
    %v2059 = vsub.f32 %v551, %v2058
    %v2060 = vand.u32 %v2059, 4294901760
    %2061 = vmatmul.f32.gmra.mxu0 %v2060
    %v2062 = vpop.f32.mrf.mxu0
    %v2063 = vadd.f32 %v1697, %v2062
    %v2064 = vand.u32 %v553, 4294901760
    %v2065 = vsub.f32 %v553, %v2064
    %v2066 = vand.u32 %v2065, 4294901760
    %2067 = vmatmul.f32.gmra.mxu0 %v2066
    %v2068 = vpop.f32.mrf.mxu0
    %v2069 = vadd.f32 %v1702, %v2068
    %v2070 = vand.u32 %v555, 4294901760
    %v2071 = vsub.f32 %v555, %v2070
    %v2072 = vand.u32 %v2071, 4294901760
    %2073 = vmatmul.f32.gmra.mxu0 %v2072
    %v2074 = vpop.f32.mrf.mxu0
    %v2075 = vadd.f32 %v1707, %v2074
    %v2076 = vand.u32 %v557, 4294901760
    %v2077 = vsub.f32 %v557, %v2076
    %v2078 = vand.u32 %v2077, 4294901760
    %2079 = vmatmul.f32.gmra.mxu0 %v2078
    %v2080 = vpop.f32.mrf.mxu0
    %v2081 = vadd.f32 %v1712, %v2080
    %v2082 = vand.u32 %v559, 4294901760
    %v2083 = vsub.f32 %v559, %v2082
    %v2084 = vand.u32 %v2083, 4294901760
    %2085 = vmatmul.f32.gmra.mxu0 %v2084
    %v2086 = vpop.f32.mrf.mxu0
    %v2087 = vadd.f32 %v1717, %v2086
    %v2088 = vand.u32 %v561, 4294901760
    %v2089 = vsub.f32 %v561, %v2088
    %v2090 = vand.u32 %v2089, 4294901760
    %2091 = vmatmul.f32.gmra.mxu0 %v2090
    %v2092 = vpop.f32.mrf.mxu0
    %v2093 = vadd.f32 %v1722, %v2092
    %v2094 = vand.u32 %v563, 4294901760
    %v2095 = vsub.f32 %v563, %v2094
    %v2096 = vand.u32 %v2095, 4294901760
    %2097 = vmatmul.f32.gmra.mxu0 %v2096
    %v2098 = vpop.f32.mrf.mxu0
    %v2099 = vadd.f32 %v1727, %v2098
    %v2100 = vand.u32 %v565, 4294901760
    %v2101 = vsub.f32 %v565, %v2100
    %v2102 = vand.u32 %v2101, 4294901760
    %2103 = vmatmul.f32.gmra.mxu0 %v2102
    %v2104 = vpop.f32.mrf.mxu0
    %v2105 = vadd.f32 %v1732, %v2104
    %v2106 = vand.u32 %v567, 4294901760
    %v2107 = vsub.f32 %v567, %v2106
    %v2108 = vand.u32 %v2107, 4294901760
    %2109 = vmatmul.f32.gmra.mxu0 %v2108
    %v2110 = vpop.f32.mrf.mxu0
    %v2111 = vadd.f32 %v1737, %v2110
    %v2112 = vand.u32 %v569, 4294901760
    %v2113 = vsub.f32 %v569, %v2112
    %v2114 = vand.u32 %v2113, 4294901760
    %2115 = vmatmul.f32.gmra.mxu0 %v2114
    %v2116 = vpop.f32.mrf.mxu0
    %v2117 = vadd.f32 %v1742, %v2116
    %v2118 = vand.u32 %v571, 4294901760
    %v2119 = vsub.f32 %v571, %v2118
    %v2120 = vand.u32 %v2119, 4294901760
    %2121 = vmatmul.f32.gmra.mxu0 %v2120
    %v2122 = vpop.f32.mrf.mxu0
    %v2123 = vadd.f32 %v1747, %v2122
    %v2124 = vand.u32 %v573, 4294901760
    %v2125 = vsub.f32 %v573, %v2124
    %v2126 = vand.u32 %v2125, 4294901760
    %2127 = vmatmul.f32.gmra.mxu0 %v2126
    %v2128 = vpop.f32.mrf.mxu0
    %v2129 = vadd.f32 %v1752, %v2128
    %v2130 = vand.u32 %v575, 4294901760
    %v2131 = vsub.f32 %v575, %v2130
    %v2132 = vand.u32 %v2131, 4294901760
    %2133 = vmatmul.f32.gmra.mxu0 %v2132
    %v2134 = vpop.f32.mrf.mxu0
    %v2135 = vadd.f32 %v1757, %v2134
    %v2136 = vand.u32 %v577, 4294901760
    %v2137 = vsub.f32 %v577, %v2136
    %v2138 = vand.u32 %v2137, 4294901760
    %2139 = vmatmul.f32.gmra.mxu0 %v2138
    %v2140 = vpop.f32.mrf.mxu0
    %v2141 = vadd.f32 %v1762, %v2140
    %v2142 = vand.u32 %v579, 4294901760
    %v2143 = vsub.f32 %v579, %v2142
    %v2144 = vand.u32 %v2143, 4294901760
    %2145 = vmatmul.f32.gmra.mxu0 %v2144
    %v2146 = vpop.f32.mrf.mxu0
    %v2147 = vadd.f32 %v1767, %v2146
    %v2148 = vand.u32 %v581, 4294901760
    %v2149 = vsub.f32 %v581, %v2148
    %v2150 = vand.u32 %v2149, 4294901760
    %2151 = vmatmul.f32.gmra.mxu0 %v2150
    %v2152 = vpop.f32.mrf.mxu0
    %v2153 = vadd.f32 %v1772, %v2152
    %v2154 = vand.u32 %v583, 4294901760
    %v2155 = vsub.f32 %v583, %v2154
    %v2156 = vand.u32 %v2155, 4294901760
    %2157 = vmatmul.f32.gmra.mxu0 %v2156
    %v2158 = vpop.f32.mrf.mxu0
    %v2159 = vadd.f32 %v1777, %v2158
    %v2160 = vand.u32 %v585, 4294901760
    %v2161 = vsub.f32 %v585, %v2160
    %v2162 = vand.u32 %v2161, 4294901760
    %2163 = vmatmul.f32.gmra.mxu0 %v2162
    %v2164 = vpop.f32.mrf.mxu0
    %v2165 = vadd.f32 %v1782, %v2164
    %v2166 = vand.u32 %v587, 4294901760
    %v2167 = vsub.f32 %v587, %v2166
    %v2168 = vand.u32 %v2167, 4294901760
    %2169 = vmatmul.f32.gmra.mxu0 %v2168
    %v2170 = vpop.f32.mrf.mxu0
    %v2171 = vadd.f32 %v1787, %v2170
    %v2172 = vand.u32 %v589, 4294901760
    %v2173 = vsub.f32 %v589, %v2172
    %v2174 = vand.u32 %v2173, 4294901760
    %2175 = vmatmul.f32.gmra.mxu0 %v2174
    %v2176 = vpop.f32.mrf.mxu0
    %v2177 = vadd.f32 %v1792, %v2176
    %v2178 = vand.u32 %v591, 4294901760
    %v2179 = vsub.f32 %v591, %v2178
    %v2180 = vand.u32 %v2179, 4294901760
    %2181 = vmatmul.f32.gmra.mxu0 %v2180
    %v2182 = vpop.f32.mrf.mxu0
    %v2183 = vadd.f32 %v1797, %v2182
    %v2184 = vand.u32 %v593, 4294901760
    %v2185 = vsub.f32 %v593, %v2184
    %v2186 = vand.u32 %v2185, 4294901760
    %2187 = vmatmul.f32.gmra.mxu0 %v2186
    %v2188 = vpop.f32.mrf.mxu0
    %v2189 = vadd.f32 %v1802, %v2188
    %v2190 = vand.u32 %v595, 4294901760
    %v2191 = vsub.f32 %v595, %v2190
    %v2192 = vand.u32 %v2191, 4294901760
    %2193 = vmatmul.f32.gmra.mxu0 %v2192
    %v2194 = vpop.f32.mrf.mxu0
    %v2195 = vadd.f32 %v1807, %v2194
    %v2196 = vand.u32 %v597, 4294901760
    %v2197 = vsub.f32 %v597, %v2196
    %v2198 = vand.u32 %v2197, 4294901760
    %2199 = vmatmul.f32.gmra.mxu0 %v2198
    %v2200 = vpop.f32.mrf.mxu0
    %v2201 = vadd.f32 %v1812, %v2200
    %v2202 = vand.u32 %v599, 4294901760
    %v2203 = vsub.f32 %v599, %v2202
    %v2204 = vand.u32 %v2203, 4294901760
    %2205 = vmatmul.f32.gmra.mxu0 %v2204
    %v2206 = vpop.f32.mrf.mxu0
    %v2207 = vadd.f32 %v1817, %v2206
    %v2208 = vand.u32 %v601, 4294901760
    %v2209 = vsub.f32 %v601, %v2208
    %v2210 = vand.u32 %v2209, 4294901760
    %2211 = vmatmul.f32.gmra.mxu0 %v2210
    %v2212 = vpop.f32.mrf.mxu0
    %v2213 = vadd.f32 %v1822, %v2212
    %v2214 = vand.u32 %v603, 4294901760
    %v2215 = vsub.f32 %v603, %v2214
    %v2216 = vand.u32 %v2215, 4294901760
    %2217 = vmatmul.f32.gmra.mxu0 %v2216
    %v2218 = vpop.f32.mrf.mxu0
    %v2219 = vadd.f32 %v1827, %v2218
    %v2220 = vand.u32 %v605, 4294901760
    %v2221 = vsub.f32 %v605, %v2220
    %v2222 = vand.u32 %v2221, 4294901760
    %2223 = vmatmul.f32.gmra.mxu0 %v2222
    %v2224 = vpop.f32.mrf.mxu0
    %v2225 = vadd.f32 %v1832, %v2224
    %v2226 = vand.u32 %v607, 4294901760
    %v2227 = vsub.f32 %v607, %v2226
    %v2228 = vand.u32 %v2227, 4294901760
    %2229 = vmatmul.f32.gmra.mxu0 %v2228
    %v2230 = vpop.f32.mrf.mxu0
    %v2231 = vadd.f32 %v1837, %v2230
    %v2232 = vand.u32 %v609, 4294901760
    %v2233 = vsub.f32 %v609, %v2232
    %v2234 = vand.u32 %v2233, 4294901760
    %2235 = vmatmul.f32.gmra.mxu0 %v2234
    %v2236 = vpop.f32.mrf.mxu0
    %v2237 = vadd.f32 %v1842, %v2236
    %v2238 = vand.u32 %v611, 4294901760
    %v2239 = vsub.f32 %v611, %v2238
    %v2240 = vand.u32 %v2239, 4294901760
    %2241 = vmatmul.f32.gmra.mxu0 %v2240
    %v2242 = vpop.f32.mrf.mxu0
    %v2243 = vadd.f32 %v1847, %v2242
    %v2244 = vand.u32 %v613, 4294901760
    %v2245 = vsub.f32 %v613, %v2244
    %v2246 = vand.u32 %v2245, 4294901760
    %2247 = vmatmul.f32.gmra.mxu0 %v2246
    %v2248 = vpop.f32.mrf.mxu0
    %v2249 = vadd.f32 %v1852, %v2248
    %v2250 = vand.u32 %v615, 4294901760
    %v2251 = vsub.f32 %v615, %v2250
    %v2252 = vand.u32 %v2251, 4294901760
    %2253 = vmatmul.f32.gmra.mxu0 %v2252
    %v2254 = vpop.f32.mrf.mxu0
    %v2255 = vadd.f32 %v1857, %v2254
    %v2256 = vand.u32 %v617, 4294901760
    %v2257 = vsub.f32 %v617, %v2256
    %v2258 = vand.u32 %v2257, 4294901760
    %2259 = vmatmul.f32.gmra.mxu0 %v2258
    %v2260 = vpop.f32.mrf.mxu0
    %v2261 = vadd.f32 %v1862, %v2260
    %v2262 = vand.u32 %v619, 4294901760
    %v2263 = vsub.f32 %v619, %v2262
    %v2264 = vand.u32 %v2263, 4294901760
    %2265 = vmatmul.f32.gmra.mxu0 %v2264
    %v2266 = vpop.f32.mrf.mxu0
    %v2267 = vadd.f32 %v1867, %v2266
    %v2268 = vand.u32 %v621, 4294901760
    %v2269 = vsub.f32 %v621, %v2268
    %v2270 = vand.u32 %v2269, 4294901760
    %2271 = vmatmul.f32.gmra.mxu0 %v2270
    %v2272 = vpop.f32.mrf.mxu0
    %v2273 = vadd.f32 %v1872, %v2272
    %v2274 = vand.u32 %v623, 4294901760
    %v2275 = vsub.f32 %v623, %v2274
    %v2276 = vand.u32 %v2275, 4294901760
    %2277 = vmatmul.f32.gmra.mxu0 %v2276
    %v2278 = vpop.f32.mrf.mxu0
    %v2279 = vadd.f32 %v1877, %v2278
    %v2280 = vand.u32 %v625, 4294901760
    %v2281 = vsub.f32 %v625, %v2280
    %v2282 = vand.u32 %v2281, 4294901760
    %2283 = vmatmul.f32.gmra.mxu0 %v2282
    %v2284 = vpop.f32.mrf.mxu0
    %v2285 = vadd.f32 %v1882, %v2284
    %v2286 = vand.u32 %v627, 4294901760
    %v2287 = vsub.f32 %v627, %v2286
    %v2288 = vand.u32 %v2287, 4294901760
    %2289 = vmatmul.f32.gmra.mxu0 %v2288
    %v2290 = vpop.f32.mrf.mxu0
    %v2291 = vadd.f32 %v1887, %v2290
    %v2292 = vand.u32 %v629, 4294901760
    %v2293 = vsub.f32 %v629, %v2292
    %v2294 = vand.u32 %v2293, 4294901760
    %2295 = vmatmul.f32.gmra.mxu0 %v2294
    %v2296 = vpop.f32.mrf.mxu0
    %v2297 = vadd.f32 %v1892, %v2296
    %v2298 = vand.u32 %v631, 4294901760
    %v2299 = vsub.f32 %v631, %v2298
    %v2300 = vand.u32 %v2299, 4294901760
    %2301 = vmatmul.f32.gmra.mxu0 %v2300
    %v2302 = vpop.f32.mrf.mxu0
    %v2303 = vadd.f32 %v1897, %v2302
    %v2304 = vand.u32 %v633, 4294901760
    %v2305 = vsub.f32 %v633, %v2304
    %v2306 = vand.u32 %v2305, 4294901760
    %2307 = vmatmul.f32.gmra.mxu0 %v2306
    %v2308 = vpop.f32.mrf.mxu0
    %v2309 = vadd.f32 %v1902, %v2308
    %v2310 = vand.u32 %v635, 4294901760
    %v2311 = vsub.f32 %v635, %v2310
    %v2312 = vand.u32 %v2311, 4294901760
    %2313 = vmatmul.f32.gmra.mxu0 %v2312
    %v2314 = vpop.f32.mrf.mxu0
    %v2315 = vadd.f32 %v1907, %v2314
    %v2316 = vand.u32 %v637, 4294901760
    %v2317 = vsub.f32 %v637, %v2316
    %v2318 = vand.u32 %v2317, 4294901760
    %2319 = vmatmul.f32.gmra.mxu0 %v2318
    %v2320 = vpop.f32.mrf.mxu0
    %v2321 = vadd.f32 %v1912, %v2320
    %v2322 = vand.u32 %v639, 4294901760
    %v2323 = vsub.f32 %v639, %v2322
    %v2324 = vand.u32 %v2323, 4294901760
    %2325 = vmatmul.f32.gmra.mxu0 %v2324
    %v2326 = vpop.f32.mrf.mxu0
    %v2327 = vadd.f32 %v1917, %v2326
    %v2328 = vand.u32 %v641, 4294901760
    %v2329 = vsub.f32 %v641, %v2328
    %v2330 = vand.u32 %v2329, 4294901760
    %2331 = vmatmul.f32.gmra.mxu0 %v2330
    %v2332 = vpop.f32.mrf.mxu0
    %v2333 = vadd.f32 %v1922, %v2332
    %v2334 = vand.u32 %v643, 4294901760
    %v2335 = vsub.f32 %v643, %v2334
    %v2336 = vand.u32 %v2335, 4294901760
    %2337 = vmatmul.f32.gmra.mxu0 %v2336
    %v2338 = vpop.f32.mrf.mxu0
    %v2339 = vadd.f32 %v1927, %v2338
    %v2340 = vand.u32 %v645, 4294901760
    %v2341 = vsub.f32 %v645, %v2340
    %v2342 = vand.u32 %v2341, 4294901760
    %2343 = vmatmul.f32.gmra.mxu0 %v2342
    %v2344 = vpop.f32.mrf.mxu0
    %v2345 = vadd.f32 %v1932, %v2344
    %v2346 = vand.u32 %v647, 4294901760
    %v2347 = vsub.f32 %v647, %v2346
    %v2348 = vand.u32 %v2347, 4294901760
    %2349 = vmatmul.f32.gmra.mxu0 %v2348
    %v2350 = vpop.f32.mrf.mxu0
    %v2351 = vadd.f32 %v1937, %v2350
    %v2352 = vand.u32 %v649, 4294901760
    %v2353 = vsub.f32 %v649, %v2352
    %v2354 = vand.u32 %v2353, 4294901760
    %2355 = vmatmul.f32.gmra.mxu0 %v2354
    %v2356 = vpop.f32.mrf.mxu0
    %v2357 = vadd.f32 %v1942, %v2356
    %v2358 = vand.u32 %v651, 4294901760
    %v2359 = vsub.f32 %v651, %v2358
    %v2360 = vand.u32 %v2359, 4294901760
    %2361 = vmatmul.f32.gmra.mxu0 %v2360
    %v2362 = vpop.f32.mrf.mxu0
    %v2363 = vadd.f32 %v1947, %v2362
    %v2364 = vand.u32 %v653, 4294901760
    %v2365 = vsub.f32 %v653, %v2364
    %v2366 = vand.u32 %v2365, 4294901760
    %2367 = vmatmul.f32.gmra.mxu0 %v2366
    %v2368 = vpop.f32.mrf.mxu0
    %v2369 = vadd.f32 %v1952, %v2368
    %2370 = vdwg.mxu0
    %v2371 = vand.u32 %v670, 4294901760
    %v2372 = vsub.f32 %v670, %v2371
    %v2373 = vand.u32 %v2372, 4294901760
    %2374 = vmatpush.msra.mxu0 %v2373
    %v2375 = vand.u32 %v669, 4294901760
    %v2376 = vsub.f32 %v669, %v2375
    %v2377 = vand.u32 %v2376, 4294901760
    %2378 = vmatpush.msra.mxu0 %v2377
    %v2379 = vand.u32 %v668, 4294901760
    %v2380 = vsub.f32 %v668, %v2379
    %v2381 = vand.u32 %v2380, 4294901760
    %2382 = vmatpush.msra.mxu0 %v2381
    %v2383 = vand.u32 %v667, 4294901760
    %v2384 = vsub.f32 %v667, %v2383
    %v2385 = vand.u32 %v2384, 4294901760
    %2386 = vmatpush.msra.mxu0 %v2385
    %v2387 = vand.u32 %v666, 4294901760
    %v2388 = vsub.f32 %v666, %v2387
    %v2389 = vand.u32 %v2388, 4294901760
    %2390 = vmatpush.msra.mxu0 %v2389
    %v2391 = vand.u32 %v665, 4294901760
    %v2392 = vsub.f32 %v665, %v2391
    %v2393 = vand.u32 %v2392, 4294901760
    %2394 = vmatpush.msra.mxu0 %v2393
    %v2395 = vand.u32 %v664, 4294901760
    %v2396 = vsub.f32 %v664, %v2395
    %v2397 = vand.u32 %v2396, 4294901760
    %2398 = vmatpush.msra.mxu0 %v2397
    %v2399 = vand.u32 %v663, 4294901760
    %v2400 = vsub.f32 %v663, %v2399
    %v2401 = vand.u32 %v2400, 4294901760
    %2402 = vmatpush.msra.mxu0 %v2401
    %v2403 = vand.u32 %v662, 4294901760
    %v2404 = vsub.f32 %v662, %v2403
    %v2405 = vand.u32 %v2404, 4294901760
    %2406 = vmatpush.msra.mxu0 %v2405
    %v2407 = vand.u32 %v661, 4294901760
    %v2408 = vsub.f32 %v661, %v2407
    %v2409 = vand.u32 %v2408, 4294901760
    %2410 = vmatpush.msra.mxu0 %v2409
    %v2411 = vand.u32 %v660, 4294901760
    %v2412 = vsub.f32 %v660, %v2411
    %v2413 = vand.u32 %v2412, 4294901760
    %2414 = vmatpush.msra.mxu0 %v2413
    %v2415 = vand.u32 %v659, 4294901760
    %v2416 = vsub.f32 %v659, %v2415
    %v2417 = vand.u32 %v2416, 4294901760
    %2418 = vmatpush.msra.mxu0 %v2417
    %v2419 = vand.u32 %v658, 4294901760
    %v2420 = vsub.f32 %v658, %v2419
    %v2421 = vand.u32 %v2420, 4294901760
    %2422 = vmatpush.msra.mxu0 %v2421
    %v2423 = vand.u32 %v657, 4294901760
    %v2424 = vsub.f32 %v657, %v2423
    %v2425 = vand.u32 %v2424, 4294901760
    %2426 = vmatpush.msra.mxu0 %v2425
    %v2427 = vand.u32 %v656, 4294901760
    %v2428 = vsub.f32 %v656, %v2427
    %v2429 = vand.u32 %v2428, 4294901760
    %2430 = vmatpush.msra.mxu0 %v2429
    %v2431 = vand.u32 %v655, 4294901760
    %v2432 = vsub.f32 %v655, %v2431
    %v2433 = vand.u32 %v2432, 4294901760
    %2434 = vmatpush.msra.mxu0 %v2433
    %v2435 = vand.u32 %v527, 4294901760
    %2436 = vmatmul.f32.gmra.mxu0 %v2435
    %v2437 = vpop.f32.mrf.mxu0
    %v2438 = vadd.f32 %v1991, %v2437
    %v2439 = vand.u32 %v529, 4294901760
    %2440 = vmatmul.f32.gmra.mxu0 %v2439
    %v2441 = vpop.f32.mrf.mxu0
    %v2442 = vadd.f32 %v1997, %v2441
    %v2443 = vand.u32 %v531, 4294901760
    %2444 = vmatmul.f32.gmra.mxu0 %v2443
    %v2445 = vpop.f32.mrf.mxu0
    %v2446 = vadd.f32 %v2003, %v2445
    %v2447 = vand.u32 %v533, 4294901760
    %2448 = vmatmul.f32.gmra.mxu0 %v2447
    %v2449 = vpop.f32.mrf.mxu0
    %v2450 = vadd.f32 %v2009, %v2449
    %v2451 = vand.u32 %v535, 4294901760
    %2452 = vmatmul.f32.gmra.mxu0 %v2451
    %v2453 = vpop.f32.mrf.mxu0
    %v2454 = vadd.f32 %v2015, %v2453
    %v2455 = vand.u32 %v537, 4294901760
    %2456 = vmatmul.f32.gmra.mxu0 %v2455
    %v2457 = vpop.f32.mrf.mxu0
    %v2458 = vadd.f32 %v2021, %v2457
    %v2459 = vand.u32 %v539, 4294901760
    %2460 = vmatmul.f32.gmra.mxu0 %v2459
    %v2461 = vpop.f32.mrf.mxu0
    %v2462 = vadd.f32 %v2027, %v2461
    %v2463 = vand.u32 %v541, 4294901760
    %2464 = vmatmul.f32.gmra.mxu0 %v2463
    %v2465 = vpop.f32.mrf.mxu0
    %v2466 = vadd.f32 %v2033, %v2465
    %v2467 = vand.u32 %v543, 4294901760
    %2468 = vmatmul.f32.gmra.mxu0 %v2467
    %v2469 = vpop.f32.mrf.mxu0
    %v2470 = vadd.f32 %v2039, %v2469
    %v2471 = vand.u32 %v545, 4294901760
    %2472 = vmatmul.f32.gmra.mxu0 %v2471
    %v2473 = vpop.f32.mrf.mxu0
    %v2474 = vadd.f32 %v2045, %v2473
    %v2475 = vand.u32 %v547, 4294901760
    %2476 = vmatmul.f32.gmra.mxu0 %v2475
    %v2477 = vpop.f32.mrf.mxu0
    %v2478 = vadd.f32 %v2051, %v2477
    %v2479 = vand.u32 %v549, 4294901760
    %2480 = vmatmul.f32.gmra.mxu0 %v2479
    %v2481 = vpop.f32.mrf.mxu0
    %v2482 = vadd.f32 %v2057, %v2481
    %v2483 = vand.u32 %v551, 4294901760
    %2484 = vmatmul.f32.gmra.mxu0 %v2483
    %v2485 = vpop.f32.mrf.mxu0
    %v2486 = vadd.f32 %v2063, %v2485
    %v2487 = vand.u32 %v553, 4294901760
    %2488 = vmatmul.f32.gmra.mxu0 %v2487
    %v2489 = vpop.f32.mrf.mxu0
    %v2490 = vadd.f32 %v2069, %v2489
    %v2491 = vand.u32 %v555, 4294901760
    %2492 = vmatmul.f32.gmra.mxu0 %v2491
    %v2493 = vpop.f32.mrf.mxu0
    %v2494 = vadd.f32 %v2075, %v2493
    %v2495 = vand.u32 %v557, 4294901760
    %2496 = vmatmul.f32.gmra.mxu0 %v2495
    %v2497 = vpop.f32.mrf.mxu0
    %v2498 = vadd.f32 %v2081, %v2497
    %v2499 = vand.u32 %v559, 4294901760
    %2500 = vmatmul.f32.gmra.mxu0 %v2499
    %v2501 = vpop.f32.mrf.mxu0
    %v2502 = vadd.f32 %v2087, %v2501
    %v2503 = vand.u32 %v561, 4294901760
    %2504 = vmatmul.f32.gmra.mxu0 %v2503
    %v2505 = vpop.f32.mrf.mxu0
    %v2506 = vadd.f32 %v2093, %v2505
    %v2507 = vand.u32 %v563, 4294901760
    %2508 = vmatmul.f32.gmra.mxu0 %v2507
    %v2509 = vpop.f32.mrf.mxu0
    %v2510 = vadd.f32 %v2099, %v2509
    %v2511 = vand.u32 %v565, 4294901760
    %2512 = vmatmul.f32.gmra.mxu0 %v2511
    %v2513 = vpop.f32.mrf.mxu0
    %v2514 = vadd.f32 %v2105, %v2513
    %v2515 = vand.u32 %v567, 4294901760
    %2516 = vmatmul.f32.gmra.mxu0 %v2515
    %v2517 = vpop.f32.mrf.mxu0
    %v2518 = vadd.f32 %v2111, %v2517
    %v2519 = vand.u32 %v569, 4294901760
    %2520 = vmatmul.f32.gmra.mxu0 %v2519
    %v2521 = vpop.f32.mrf.mxu0
    %v2522 = vadd.f32 %v2117, %v2521
    %v2523 = vand.u32 %v571, 4294901760
    %2524 = vmatmul.f32.gmra.mxu0 %v2523
    %v2525 = vpop.f32.mrf.mxu0
    %v2526 = vadd.f32 %v2123, %v2525
    %v2527 = vand.u32 %v573, 4294901760
    %2528 = vmatmul.f32.gmra.mxu0 %v2527
    %v2529 = vpop.f32.mrf.mxu0
    %v2530 = vadd.f32 %v2129, %v2529
    %v2531 = vand.u32 %v575, 4294901760
    %2532 = vmatmul.f32.gmra.mxu0 %v2531
    %v2533 = vpop.f32.mrf.mxu0
    %v2534 = vadd.f32 %v2135, %v2533
    %v2535 = vand.u32 %v577, 4294901760
    %2536 = vmatmul.f32.gmra.mxu0 %v2535
    %v2537 = vpop.f32.mrf.mxu0
    %v2538 = vadd.f32 %v2141, %v2537
    %v2539 = vand.u32 %v579, 4294901760
    %2540 = vmatmul.f32.gmra.mxu0 %v2539
    %v2541 = vpop.f32.mrf.mxu0
    %v2542 = vadd.f32 %v2147, %v2541
    %v2543 = vand.u32 %v581, 4294901760
    %2544 = vmatmul.f32.gmra.mxu0 %v2543
    %v2545 = vpop.f32.mrf.mxu0
    %v2546 = vadd.f32 %v2153, %v2545
    %v2547 = vand.u32 %v583, 4294901760
    %2548 = vmatmul.f32.gmra.mxu0 %v2547
    %v2549 = vpop.f32.mrf.mxu0
    %v2550 = vadd.f32 %v2159, %v2549
    %v2551 = vand.u32 %v585, 4294901760
    %2552 = vmatmul.f32.gmra.mxu0 %v2551
    %v2553 = vpop.f32.mrf.mxu0
    %v2554 = vadd.f32 %v2165, %v2553
    %v2555 = vand.u32 %v587, 4294901760
    %2556 = vmatmul.f32.gmra.mxu0 %v2555
    %v2557 = vpop.f32.mrf.mxu0
    %v2558 = vadd.f32 %v2171, %v2557
    %v2559 = vand.u32 %v589, 4294901760
    %2560 = vmatmul.f32.gmra.mxu0 %v2559
    %v2561 = vpop.f32.mrf.mxu0
    %v2562 = vadd.f32 %v2177, %v2561
    %v2563 = vand.u32 %v591, 4294901760
    %2564 = vmatmul.f32.gmra.mxu0 %v2563
    %v2565 = vpop.f32.mrf.mxu0
    %v2566 = vadd.f32 %v2183, %v2565
    %v2567 = vand.u32 %v593, 4294901760
    %2568 = vmatmul.f32.gmra.mxu0 %v2567
    %v2569 = vpop.f32.mrf.mxu0
    %v2570 = vadd.f32 %v2189, %v2569
    %v2571 = vand.u32 %v595, 4294901760
    %2572 = vmatmul.f32.gmra.mxu0 %v2571
    %v2573 = vpop.f32.mrf.mxu0
    %v2574 = vadd.f32 %v2195, %v2573
    %v2575 = vand.u32 %v597, 4294901760
    %2576 = vmatmul.f32.gmra.mxu0 %v2575
    %v2577 = vpop.f32.mrf.mxu0
    %v2578 = vadd.f32 %v2201, %v2577
    %v2579 = vand.u32 %v599, 4294901760
    %2580 = vmatmul.f32.gmra.mxu0 %v2579
    %v2581 = vpop.f32.mrf.mxu0
    %v2582 = vadd.f32 %v2207, %v2581
    %v2583 = vand.u32 %v601, 4294901760
    %2584 = vmatmul.f32.gmra.mxu0 %v2583
    %v2585 = vpop.f32.mrf.mxu0
    %v2586 = vadd.f32 %v2213, %v2585
    %v2587 = vand.u32 %v603, 4294901760
    %2588 = vmatmul.f32.gmra.mxu0 %v2587
    %v2589 = vpop.f32.mrf.mxu0
    %v2590 = vadd.f32 %v2219, %v2589
    %v2591 = vand.u32 %v605, 4294901760
    %2592 = vmatmul.f32.gmra.mxu0 %v2591
    %v2593 = vpop.f32.mrf.mxu0
    %v2594 = vadd.f32 %v2225, %v2593
    %v2595 = vand.u32 %v607, 4294901760
    %2596 = vmatmul.f32.gmra.mxu0 %v2595
    %v2597 = vpop.f32.mrf.mxu0
    %v2598 = vadd.f32 %v2231, %v2597
    %v2599 = vand.u32 %v609, 4294901760
    %2600 = vmatmul.f32.gmra.mxu0 %v2599
    %v2601 = vpop.f32.mrf.mxu0
    %v2602 = vadd.f32 %v2237, %v2601
    %v2603 = vand.u32 %v611, 4294901760
    %2604 = vmatmul.f32.gmra.mxu0 %v2603
    %v2605 = vpop.f32.mrf.mxu0
    %v2606 = vadd.f32 %v2243, %v2605
    %v2607 = vand.u32 %v613, 4294901760
    %2608 = vmatmul.f32.gmra.mxu0 %v2607
    %v2609 = vpop.f32.mrf.mxu0
    %v2610 = vadd.f32 %v2249, %v2609
    %v2611 = vand.u32 %v615, 4294901760
    %2612 = vmatmul.f32.gmra.mxu0 %v2611
    %v2613 = vpop.f32.mrf.mxu0
    %v2614 = vadd.f32 %v2255, %v2613
    %v2615 = vand.u32 %v617, 4294901760
    %2616 = vmatmul.f32.gmra.mxu0 %v2615
    %v2617 = vpop.f32.mrf.mxu0
    %v2618 = vadd.f32 %v2261, %v2617
    %v2619 = vand.u32 %v619, 4294901760
    %2620 = vmatmul.f32.gmra.mxu0 %v2619
    %v2621 = vpop.f32.mrf.mxu0
    %v2622 = vadd.f32 %v2267, %v2621
    %v2623 = vand.u32 %v621, 4294901760
    %2624 = vmatmul.f32.gmra.mxu0 %v2623
    %v2625 = vpop.f32.mrf.mxu0
    %v2626 = vadd.f32 %v2273, %v2625
    %v2627 = vand.u32 %v623, 4294901760
    %2628 = vmatmul.f32.gmra.mxu0 %v2627
    %v2629 = vpop.f32.mrf.mxu0
    %v2630 = vadd.f32 %v2279, %v2629
    %v2631 = vand.u32 %v625, 4294901760
    %2632 = vmatmul.f32.gmra.mxu0 %v2631
    %v2633 = vpop.f32.mrf.mxu0
    %v2634 = vadd.f32 %v2285, %v2633
    %v2635 = vand.u32 %v627, 4294901760
    %2636 = vmatmul.f32.gmra.mxu0 %v2635
    %v2637 = vpop.f32.mrf.mxu0
    %v2638 = vadd.f32 %v2291, %v2637
    %v2639 = vand.u32 %v629, 4294901760
    %2640 = vmatmul.f32.gmra.mxu0 %v2639
    %v2641 = vpop.f32.mrf.mxu0
    %v2642 = vadd.f32 %v2297, %v2641
    %v2643 = vand.u32 %v631, 4294901760
    %2644 = vmatmul.f32.gmra.mxu0 %v2643
    %v2645 = vpop.f32.mrf.mxu0
    %v2646 = vadd.f32 %v2303, %v2645
    %v2647 = vand.u32 %v633, 4294901760
    %2648 = vmatmul.f32.gmra.mxu0 %v2647
    %v2649 = vpop.f32.mrf.mxu0
    %v2650 = vadd.f32 %v2309, %v2649
    %v2651 = vand.u32 %v635, 4294901760
    %2652 = vmatmul.f32.gmra.mxu0 %v2651
    %v2653 = vpop.f32.mrf.mxu0
    %v2654 = vadd.f32 %v2315, %v2653
    %v2655 = vand.u32 %v637, 4294901760
    %2656 = vmatmul.f32.gmra.mxu0 %v2655
    %v2657 = vpop.f32.mrf.mxu0
    %v2658 = vadd.f32 %v2321, %v2657
    %v2659 = vand.u32 %v639, 4294901760
    %2660 = vmatmul.f32.gmra.mxu0 %v2659
    %v2661 = vpop.f32.mrf.mxu0
    %v2662 = vadd.f32 %v2327, %v2661
    %v2663 = vand.u32 %v641, 4294901760
    %2664 = vmatmul.f32.gmra.mxu0 %v2663
    %v2665 = vpop.f32.mrf.mxu0
    %v2666 = vadd.f32 %v2333, %v2665
    %v2667 = vand.u32 %v643, 4294901760
    %2668 = vmatmul.f32.gmra.mxu0 %v2667
    %v2669 = vpop.f32.mrf.mxu0
    %v2670 = vadd.f32 %v2339, %v2669
    %v2671 = vand.u32 %v645, 4294901760
    %2672 = vmatmul.f32.gmra.mxu0 %v2671
    %v2673 = vpop.f32.mrf.mxu0
    %v2674 = vadd.f32 %v2345, %v2673
    %v2675 = vand.u32 %v647, 4294901760
    %2676 = vmatmul.f32.gmra.mxu0 %v2675
    %v2677 = vpop.f32.mrf.mxu0
    %v2678 = vadd.f32 %v2351, %v2677
    %v2679 = vand.u32 %v649, 4294901760
    %2680 = vmatmul.f32.gmra.mxu0 %v2679
    %v2681 = vpop.f32.mrf.mxu0
    %v2682 = vadd.f32 %v2357, %v2681
    %v2683 = vand.u32 %v651, 4294901760
    %2684 = vmatmul.f32.gmra.mxu0 %v2683
    %v2685 = vpop.f32.mrf.mxu0
    %v2686 = vadd.f32 %v2363, %v2685
    %v2687 = vand.u32 %v653, 4294901760
    %2688 = vmatmul.f32.gmra.mxu0 %v2687
    %v2689 = vpop.f32.mrf.mxu0
    %v2690 = vadd.f32 %v2369, %v2689
    %2691 = vdwg.mxu0
    %v2692 = vand.u32 %v670, 4294901760
    %2693 = vmatpush.msra.mxu0 %v2692
    %v2694 = vand.u32 %v669, 4294901760
    %2695 = vmatpush.msra.mxu0 %v2694
    %v2696 = vand.u32 %v668, 4294901760
    %2697 = vmatpush.msra.mxu0 %v2696
    %v2698 = vand.u32 %v667, 4294901760
    %2699 = vmatpush.msra.mxu0 %v2698
    %v2700 = vand.u32 %v666, 4294901760
    %2701 = vmatpush.msra.mxu0 %v2700
    %v2702 = vand.u32 %v665, 4294901760
    %2703 = vmatpush.msra.mxu0 %v2702
    %v2704 = vand.u32 %v664, 4294901760
    %2705 = vmatpush.msra.mxu0 %v2704
    %v2706 = vand.u32 %v663, 4294901760
    %2707 = vmatpush.msra.mxu0 %v2706
    %v2708 = vand.u32 %v662, 4294901760
    %2709 = vmatpush.msra.mxu0 %v2708
    %v2710 = vand.u32 %v661, 4294901760
    %2711 = vmatpush.msra.mxu0 %v2710
    %v2712 = vand.u32 %v660, 4294901760
    %2713 = vmatpush.msra.mxu0 %v2712
    %v2714 = vand.u32 %v659, 4294901760
    %2715 = vmatpush.msra.mxu0 %v2714
    %v2716 = vand.u32 %v658, 4294901760
    %2717 = vmatpush.msra.mxu0 %v2716
    %v2718 = vand.u32 %v657, 4294901760
    %2719 = vmatpush.msra.mxu0 %v2718
    %v2720 = vand.u32 %v656, 4294901760
    %2721 = vmatpush.msra.mxu0 %v2720
    %v2722 = vand.u32 %v655, 4294901760
    %2723 = vmatpush.msra.mxu0 %v2722
    %v2724 = vand.u32 %v527, 4294901760
    %2725 = vmatmul.f32.gmra.mxu0 %v2724
    %v2726 = vpop.f32.mrf.mxu0
    %v2727 = vadd.f32 %v2438, %v2726
    %v2728 = vand.u32 %v529, 4294901760
    %2729 = vmatmul.f32.gmra.mxu0 %v2728
    %v2730 = vpop.f32.mrf.mxu0
    %v2731 = vadd.f32 %v2442, %v2730
    %v2732 = vand.u32 %v531, 4294901760
    %2733 = vmatmul.f32.gmra.mxu0 %v2732
    %v2734 = vpop.f32.mrf.mxu0
    %v2735 = vadd.f32 %v2446, %v2734
    %v2736 = vand.u32 %v533, 4294901760
    %2737 = vmatmul.f32.gmra.mxu0 %v2736
    %v2738 = vpop.f32.mrf.mxu0
    %v2739 = vadd.f32 %v2450, %v2738
    %v2740 = vand.u32 %v535, 4294901760
    %2741 = vmatmul.f32.gmra.mxu0 %v2740
    %v2742 = vpop.f32.mrf.mxu0
    %v2743 = vadd.f32 %v2454, %v2742
    %v2744 = vand.u32 %v537, 4294901760
    %2745 = vmatmul.f32.gmra.mxu0 %v2744
    %v2746 = vpop.f32.mrf.mxu0
    %v2747 = vadd.f32 %v2458, %v2746
    %v2748 = vand.u32 %v539, 4294901760
    %2749 = vmatmul.f32.gmra.mxu0 %v2748
    %v2750 = vpop.f32.mrf.mxu0
    %v2751 = vadd.f32 %v2462, %v2750
    %v2752 = vand.u32 %v541, 4294901760
    %2753 = vmatmul.f32.gmra.mxu0 %v2752
    %v2754 = vpop.f32.mrf.mxu0
    %v2755 = vadd.f32 %v2466, %v2754
    %v2756 = vand.u32 %v543, 4294901760
    %2757 = vmatmul.f32.gmra.mxu0 %v2756
    %v2758 = vpop.f32.mrf.mxu0
    %v2759 = vadd.f32 %v2470, %v2758
    %v2760 = vand.u32 %v545, 4294901760
    %2761 = vmatmul.f32.gmra.mxu0 %v2760
    %v2762 = vpop.f32.mrf.mxu0
    %v2763 = vadd.f32 %v2474, %v2762
    %v2764 = vand.u32 %v547, 4294901760
    %2765 = vmatmul.f32.gmra.mxu0 %v2764
    %v2766 = vpop.f32.mrf.mxu0
    %v2767 = vadd.f32 %v2478, %v2766
    %v2768 = vand.u32 %v549, 4294901760
    %2769 = vmatmul.f32.gmra.mxu0 %v2768
    %v2770 = vpop.f32.mrf.mxu0
    %v2771 = vadd.f32 %v2482, %v2770
    %v2772 = vand.u32 %v551, 4294901760
    %2773 = vmatmul.f32.gmra.mxu0 %v2772
    %v2774 = vpop.f32.mrf.mxu0
    %v2775 = vadd.f32 %v2486, %v2774
    %v2776 = vand.u32 %v553, 4294901760
    %2777 = vmatmul.f32.gmra.mxu0 %v2776
    %v2778 = vpop.f32.mrf.mxu0
    %v2779 = vadd.f32 %v2490, %v2778
    %v2780 = vand.u32 %v555, 4294901760
    %2781 = vmatmul.f32.gmra.mxu0 %v2780
    %v2782 = vpop.f32.mrf.mxu0
    %v2783 = vadd.f32 %v2494, %v2782
    %v2784 = vand.u32 %v557, 4294901760
    %2785 = vmatmul.f32.gmra.mxu0 %v2784
    %v2786 = vpop.f32.mrf.mxu0
    %v2787 = vadd.f32 %v2498, %v2786
    %v2788 = vand.u32 %v559, 4294901760
    %2789 = vmatmul.f32.gmra.mxu0 %v2788
    %v2790 = vpop.f32.mrf.mxu0
    %v2791 = vadd.f32 %v2502, %v2790
    %v2792 = vand.u32 %v561, 4294901760
    %2793 = vmatmul.f32.gmra.mxu0 %v2792
    %v2794 = vpop.f32.mrf.mxu0
    %v2795 = vadd.f32 %v2506, %v2794
    %v2796 = vand.u32 %v563, 4294901760
    %2797 = vmatmul.f32.gmra.mxu0 %v2796
    %v2798 = vpop.f32.mrf.mxu0
    %v2799 = vadd.f32 %v2510, %v2798
    %v2800 = vand.u32 %v565, 4294901760
    %2801 = vmatmul.f32.gmra.mxu0 %v2800
    %v2802 = vpop.f32.mrf.mxu0
    %v2803 = vadd.f32 %v2514, %v2802
    %v2804 = vand.u32 %v567, 4294901760
    %2805 = vmatmul.f32.gmra.mxu0 %v2804
    %v2806 = vpop.f32.mrf.mxu0
    %v2807 = vadd.f32 %v2518, %v2806
    %v2808 = vand.u32 %v569, 4294901760
    %2809 = vmatmul.f32.gmra.mxu0 %v2808
    %v2810 = vpop.f32.mrf.mxu0
    %v2811 = vadd.f32 %v2522, %v2810
    %v2812 = vand.u32 %v571, 4294901760
    %2813 = vmatmul.f32.gmra.mxu0 %v2812
    %v2814 = vpop.f32.mrf.mxu0
    %v2815 = vadd.f32 %v2526, %v2814
    %v2816 = vand.u32 %v573, 4294901760
    %2817 = vmatmul.f32.gmra.mxu0 %v2816
    %v2818 = vpop.f32.mrf.mxu0
    %v2819 = vadd.f32 %v2530, %v2818
    %v2820 = vand.u32 %v575, 4294901760
    %2821 = vmatmul.f32.gmra.mxu0 %v2820
    %v2822 = vpop.f32.mrf.mxu0
    %v2823 = vadd.f32 %v2534, %v2822
    %v2824 = vand.u32 %v577, 4294901760
    %2825 = vmatmul.f32.gmra.mxu0 %v2824
    %v2826 = vpop.f32.mrf.mxu0
    %v2827 = vadd.f32 %v2538, %v2826
    %v2828 = vand.u32 %v579, 4294901760
    %2829 = vmatmul.f32.gmra.mxu0 %v2828
    %v2830 = vpop.f32.mrf.mxu0
    %v2831 = vadd.f32 %v2542, %v2830
    %v2832 = vand.u32 %v581, 4294901760
    %2833 = vmatmul.f32.gmra.mxu0 %v2832
    %v2834 = vpop.f32.mrf.mxu0
    %v2835 = vadd.f32 %v2546, %v2834
    %v2836 = vand.u32 %v583, 4294901760
    %2837 = vmatmul.f32.gmra.mxu0 %v2836
    %v2838 = vpop.f32.mrf.mxu0
    %v2839 = vadd.f32 %v2550, %v2838
    %v2840 = vand.u32 %v585, 4294901760
    %2841 = vmatmul.f32.gmra.mxu0 %v2840
    %v2842 = vpop.f32.mrf.mxu0
    %v2843 = vadd.f32 %v2554, %v2842
    %v2844 = vand.u32 %v587, 4294901760
    %2845 = vmatmul.f32.gmra.mxu0 %v2844
    %v2846 = vpop.f32.mrf.mxu0
    %v2847 = vadd.f32 %v2558, %v2846
    %v2848 = vand.u32 %v589, 4294901760
    %2849 = vmatmul.f32.gmra.mxu0 %v2848
    %v2850 = vpop.f32.mrf.mxu0
    %v2851 = vadd.f32 %v2562, %v2850
    %v2852 = vand.u32 %v591, 4294901760
    %2853 = vmatmul.f32.gmra.mxu0 %v2852
    %v2854 = vpop.f32.mrf.mxu0
    %v2855 = vadd.f32 %v2566, %v2854
    %v2856 = vand.u32 %v593, 4294901760
    %2857 = vmatmul.f32.gmra.mxu0 %v2856
    %v2858 = vpop.f32.mrf.mxu0
    %v2859 = vadd.f32 %v2570, %v2858
    %v2860 = vand.u32 %v595, 4294901760
    %2861 = vmatmul.f32.gmra.mxu0 %v2860
    %v2862 = vpop.f32.mrf.mxu0
    %v2863 = vadd.f32 %v2574, %v2862
    %v2864 = vand.u32 %v597, 4294901760
    %2865 = vmatmul.f32.gmra.mxu0 %v2864
    %v2866 = vpop.f32.mrf.mxu0
    %v2867 = vadd.f32 %v2578, %v2866
    %v2868 = vand.u32 %v599, 4294901760
    %2869 = vmatmul.f32.gmra.mxu0 %v2868
    %v2870 = vpop.f32.mrf.mxu0
    %v2871 = vadd.f32 %v2582, %v2870
    %v2872 = vand.u32 %v601, 4294901760
    %2873 = vmatmul.f32.gmra.mxu0 %v2872
    %v2874 = vpop.f32.mrf.mxu0
    %v2875 = vadd.f32 %v2586, %v2874
    %v2876 = vand.u32 %v603, 4294901760
    %2877 = vmatmul.f32.gmra.mxu0 %v2876
    %v2878 = vpop.f32.mrf.mxu0
    %v2879 = vadd.f32 %v2590, %v2878
    %v2880 = vand.u32 %v605, 4294901760
    %2881 = vmatmul.f32.gmra.mxu0 %v2880
    %v2882 = vpop.f32.mrf.mxu0
    %v2883 = vadd.f32 %v2594, %v2882
    %v2884 = vand.u32 %v607, 4294901760
    %2885 = vmatmul.f32.gmra.mxu0 %v2884
    %v2886 = vpop.f32.mrf.mxu0
    %v2887 = vadd.f32 %v2598, %v2886
    %v2888 = vand.u32 %v609, 4294901760
    %2889 = vmatmul.f32.gmra.mxu0 %v2888
    %v2890 = vpop.f32.mrf.mxu0
    %v2891 = vadd.f32 %v2602, %v2890
    %v2892 = vand.u32 %v611, 4294901760
    %2893 = vmatmul.f32.gmra.mxu0 %v2892
    %v2894 = vpop.f32.mrf.mxu0
    %v2895 = vadd.f32 %v2606, %v2894
    %v2896 = vand.u32 %v613, 4294901760
    %2897 = vmatmul.f32.gmra.mxu0 %v2896
    %v2898 = vpop.f32.mrf.mxu0
    %v2899 = vadd.f32 %v2610, %v2898
    %v2900 = vand.u32 %v615, 4294901760
    %2901 = vmatmul.f32.gmra.mxu0 %v2900
    %v2902 = vpop.f32.mrf.mxu0
    %v2903 = vadd.f32 %v2614, %v2902
    %v2904 = vand.u32 %v617, 4294901760
    %2905 = vmatmul.f32.gmra.mxu0 %v2904
    %v2906 = vpop.f32.mrf.mxu0
    %v2907 = vadd.f32 %v2618, %v2906
    %v2908 = vand.u32 %v619, 4294901760
    %2909 = vmatmul.f32.gmra.mxu0 %v2908
    %v2910 = vpop.f32.mrf.mxu0
    %v2911 = vadd.f32 %v2622, %v2910
    %v2912 = vand.u32 %v621, 4294901760
    %2913 = vmatmul.f32.gmra.mxu0 %v2912
    %v2914 = vpop.f32.mrf.mxu0
    %v2915 = vadd.f32 %v2626, %v2914
    %v2916 = vand.u32 %v623, 4294901760
    %2917 = vmatmul.f32.gmra.mxu0 %v2916
    %v2918 = vpop.f32.mrf.mxu0
    %v2919 = vadd.f32 %v2630, %v2918
    %v2920 = vand.u32 %v625, 4294901760
    %2921 = vmatmul.f32.gmra.mxu0 %v2920
    %v2922 = vpop.f32.mrf.mxu0
    %v2923 = vadd.f32 %v2634, %v2922
    %v2924 = vand.u32 %v627, 4294901760
    %2925 = vmatmul.f32.gmra.mxu0 %v2924
    %v2926 = vpop.f32.mrf.mxu0
    %v2927 = vadd.f32 %v2638, %v2926
    %v2928 = vand.u32 %v629, 4294901760
    %2929 = vmatmul.f32.gmra.mxu0 %v2928
    %v2930 = vpop.f32.mrf.mxu0
    %v2931 = vadd.f32 %v2642, %v2930
    %v2932 = vand.u32 %v631, 4294901760
    %2933 = vmatmul.f32.gmra.mxu0 %v2932
    %v2934 = vpop.f32.mrf.mxu0
    %v2935 = vadd.f32 %v2646, %v2934
    %v2936 = vand.u32 %v633, 4294901760
    %2937 = vmatmul.f32.gmra.mxu0 %v2936
    %v2938 = vpop.f32.mrf.mxu0
    %v2939 = vadd.f32 %v2650, %v2938
    %v2940 = vand.u32 %v635, 4294901760
    %2941 = vmatmul.f32.gmra.mxu0 %v2940
    %v2942 = vpop.f32.mrf.mxu0
    %v2943 = vadd.f32 %v2654, %v2942
    %v2944 = vand.u32 %v637, 4294901760
    %2945 = vmatmul.f32.gmra.mxu0 %v2944
    %v2946 = vpop.f32.mrf.mxu0
    %v2947 = vadd.f32 %v2658, %v2946
    %v2948 = vand.u32 %v639, 4294901760
    %2949 = vmatmul.f32.gmra.mxu0 %v2948
    %v2950 = vpop.f32.mrf.mxu0
    %v2951 = vadd.f32 %v2662, %v2950
    %v2952 = vand.u32 %v641, 4294901760
    %2953 = vmatmul.f32.gmra.mxu0 %v2952
    %v2954 = vpop.f32.mrf.mxu0
    %v2955 = vadd.f32 %v2666, %v2954
    %v2956 = vand.u32 %v643, 4294901760
    %2957 = vmatmul.f32.gmra.mxu0 %v2956
    %v2958 = vpop.f32.mrf.mxu0
    %v2959 = vadd.f32 %v2670, %v2958
    %v2960 = vand.u32 %v645, 4294901760
    %2961 = vmatmul.f32.gmra.mxu0 %v2960
    %v2962 = vpop.f32.mrf.mxu0
    %v2963 = vadd.f32 %v2674, %v2962
    %v2964 = vand.u32 %v647, 4294901760
    %2965 = vmatmul.f32.gmra.mxu0 %v2964
    %v2966 = vpop.f32.mrf.mxu0
    %v2967 = vadd.f32 %v2678, %v2966
    %v2968 = vand.u32 %v649, 4294901760
    %2969 = vmatmul.f32.gmra.mxu0 %v2968
    %v2970 = vpop.f32.mrf.mxu0
    %v2971 = vadd.f32 %v2682, %v2970
    %v2972 = vand.u32 %v651, 4294901760
    %2973 = vmatmul.f32.gmra.mxu0 %v2972
    %v2974 = vpop.f32.mrf.mxu0
    %v2975 = vadd.f32 %v2686, %v2974
    %v2976 = vand.u32 %v653, 4294901760
    %2977 = vmatmul.f32.gmra.mxu0 %v2976
    %v2978 = vpop.f32.mrf.mxu0
    %v2979 = vadd.f32 %v2690, %v2978
    %2980 = vdwg.mxu0
    %v2981 = vand.u32 %v686, 4294901760
    %2982 = vmatpush.msra.mxu0 %v2981
    %v2983 = vand.u32 %v685, 4294901760
    %2984 = vmatpush.msra.mxu0 %v2983
    %v2985 = vand.u32 %v684, 4294901760
    %2986 = vmatpush.msra.mxu0 %v2985
    %v2987 = vand.u32 %v683, 4294901760
    %2988 = vmatpush.msra.mxu0 %v2987
    %v2989 = vand.u32 %v682, 4294901760
    %2990 = vmatpush.msra.mxu0 %v2989
    %v2991 = vand.u32 %v681, 4294901760
    %2992 = vmatpush.msra.mxu0 %v2991
    %v2993 = vand.u32 %v680, 4294901760
    %2994 = vmatpush.msra.mxu0 %v2993
    %v2995 = vand.u32 %v679, 4294901760
    %2996 = vmatpush.msra.mxu0 %v2995
    %v2997 = vand.u32 %v678, 4294901760
    %2998 = vmatpush.msra.mxu0 %v2997
    %v2999 = vand.u32 %v677, 4294901760
    %3000 = vmatpush.msra.mxu0 %v2999
    %v3001 = vand.u32 %v676, 4294901760
    %3002 = vmatpush.msra.mxu0 %v3001
    %v3003 = vand.u32 %v675, 4294901760
    %3004 = vmatpush.msra.mxu0 %v3003
    %v3005 = vand.u32 %v674, 4294901760
    %3006 = vmatpush.msra.mxu0 %v3005
    %v3007 = vand.u32 %v673, 4294901760
    %3008 = vmatpush.msra.mxu0 %v3007
    %v3009 = vand.u32 %v672, 4294901760
    %3010 = vmatpush.msra.mxu0 %v3009
    %v3011 = vand.u32 %v671, 4294901760
    %3012 = vmatpush.msra.mxu0 %v3011
    %v3013 = vand.u32 %v528, 4294901760
    %v3014 = vsub.f32 %v528, %v3013
    %v3015 = vand.u32 %v3014, 4294901760
    %v3016 = vsub.f32 %v3014, %v3015
    %v3017 = vand.u32 %v3016, 4294901760
    %3018 = vmatmul.f32.gmra.mxu0 %v3017
    %v3019 = vpop.f32.mrf.mxu0
    %v3020 = vadd.f32 %v2727, %v3019
    %v3021 = vand.u32 %v530, 4294901760
    %v3022 = vsub.f32 %v530, %v3021
    %v3023 = vand.u32 %v3022, 4294901760
    %v3024 = vsub.f32 %v3022, %v3023
    %v3025 = vand.u32 %v3024, 4294901760
    %3026 = vmatmul.f32.gmra.mxu0 %v3025
    %v3027 = vpop.f32.mrf.mxu0
    %v3028 = vadd.f32 %v2731, %v3027
    %v3029 = vand.u32 %v532, 4294901760
    %v3030 = vsub.f32 %v532, %v3029
    %v3031 = vand.u32 %v3030, 4294901760
    %v3032 = vsub.f32 %v3030, %v3031
    %v3033 = vand.u32 %v3032, 4294901760
    %3034 = vmatmul.f32.gmra.mxu0 %v3033
    %v3035 = vpop.f32.mrf.mxu0
    %v3036 = vadd.f32 %v2735, %v3035
    %v3037 = vand.u32 %v534, 4294901760
    %v3038 = vsub.f32 %v534, %v3037
    %v3039 = vand.u32 %v3038, 4294901760
    %v3040 = vsub.f32 %v3038, %v3039
    %v3041 = vand.u32 %v3040, 4294901760
    %3042 = vmatmul.f32.gmra.mxu0 %v3041
    %v3043 = vpop.f32.mrf.mxu0
    %v3044 = vadd.f32 %v2739, %v3043
    %v3045 = vand.u32 %v536, 4294901760
    %v3046 = vsub.f32 %v536, %v3045
    %v3047 = vand.u32 %v3046, 4294901760
    %v3048 = vsub.f32 %v3046, %v3047
    %v3049 = vand.u32 %v3048, 4294901760
    %3050 = vmatmul.f32.gmra.mxu0 %v3049
    %v3051 = vpop.f32.mrf.mxu0
    %v3052 = vadd.f32 %v2743, %v3051
    %v3053 = vand.u32 %v538, 4294901760
    %v3054 = vsub.f32 %v538, %v3053
    %v3055 = vand.u32 %v3054, 4294901760
    %v3056 = vsub.f32 %v3054, %v3055
    %v3057 = vand.u32 %v3056, 4294901760
    %3058 = vmatmul.f32.gmra.mxu0 %v3057
    %v3059 = vpop.f32.mrf.mxu0
    %v3060 = vadd.f32 %v2747, %v3059
    %v3061 = vand.u32 %v540, 4294901760
    %v3062 = vsub.f32 %v540, %v3061
    %v3063 = vand.u32 %v3062, 4294901760
    %v3064 = vsub.f32 %v3062, %v3063
    %v3065 = vand.u32 %v3064, 4294901760
    %3066 = vmatmul.f32.gmra.mxu0 %v3065
    %v3067 = vpop.f32.mrf.mxu0
    %v3068 = vadd.f32 %v2751, %v3067
    %v3069 = vand.u32 %v542, 4294901760
    %v3070 = vsub.f32 %v542, %v3069
    %v3071 = vand.u32 %v3070, 4294901760
    %v3072 = vsub.f32 %v3070, %v3071
    %v3073 = vand.u32 %v3072, 4294901760
    %3074 = vmatmul.f32.gmra.mxu0 %v3073
    %v3075 = vpop.f32.mrf.mxu0
    %v3076 = vadd.f32 %v2755, %v3075
    %v3077 = vand.u32 %v544, 4294901760
    %v3078 = vsub.f32 %v544, %v3077
    %v3079 = vand.u32 %v3078, 4294901760
    %v3080 = vsub.f32 %v3078, %v3079
    %v3081 = vand.u32 %v3080, 4294901760
    %3082 = vmatmul.f32.gmra.mxu0 %v3081
    %v3083 = vpop.f32.mrf.mxu0
    %v3084 = vadd.f32 %v2759, %v3083
    %v3085 = vand.u32 %v546, 4294901760
    %v3086 = vsub.f32 %v546, %v3085
    %v3087 = vand.u32 %v3086, 4294901760
    %v3088 = vsub.f32 %v3086, %v3087
    %v3089 = vand.u32 %v3088, 4294901760
    %3090 = vmatmul.f32.gmra.mxu0 %v3089
    %v3091 = vpop.f32.mrf.mxu0
    %v3092 = vadd.f32 %v2763, %v3091
    %v3093 = vand.u32 %v548, 4294901760
    %v3094 = vsub.f32 %v548, %v3093
    %v3095 = vand.u32 %v3094, 4294901760
    %v3096 = vsub.f32 %v3094, %v3095
    %v3097 = vand.u32 %v3096, 4294901760
    %3098 = vmatmul.f32.gmra.mxu0 %v3097
    %v3099 = vpop.f32.mrf.mxu0
    %v3100 = vadd.f32 %v2767, %v3099
    %v3101 = vand.u32 %v550, 4294901760
    %v3102 = vsub.f32 %v550, %v3101
    %v3103 = vand.u32 %v3102, 4294901760
    %v3104 = vsub.f32 %v3102, %v3103
    %v3105 = vand.u32 %v3104, 4294901760
    %3106 = vmatmul.f32.gmra.mxu0 %v3105
    %v3107 = vpop.f32.mrf.mxu0
    %v3108 = vadd.f32 %v2771, %v3107
    %v3109 = vand.u32 %v552, 4294901760
    %v3110 = vsub.f32 %v552, %v3109
    %v3111 = vand.u32 %v3110, 4294901760
    %v3112 = vsub.f32 %v3110, %v3111
    %v3113 = vand.u32 %v3112, 4294901760
    %3114 = vmatmul.f32.gmra.mxu0 %v3113
    %v3115 = vpop.f32.mrf.mxu0
    %v3116 = vadd.f32 %v2775, %v3115
    %v3117 = vand.u32 %v554, 4294901760
    %v3118 = vsub.f32 %v554, %v3117
    %v3119 = vand.u32 %v3118, 4294901760
    %v3120 = vsub.f32 %v3118, %v3119
    %v3121 = vand.u32 %v3120, 4294901760
    %3122 = vmatmul.f32.gmra.mxu0 %v3121
    %v3123 = vpop.f32.mrf.mxu0
    %v3124 = vadd.f32 %v2779, %v3123
    %v3125 = vand.u32 %v556, 4294901760
    %v3126 = vsub.f32 %v556, %v3125
    %v3127 = vand.u32 %v3126, 4294901760
    %v3128 = vsub.f32 %v3126, %v3127
    %v3129 = vand.u32 %v3128, 4294901760
    %3130 = vmatmul.f32.gmra.mxu0 %v3129
    %v3131 = vpop.f32.mrf.mxu0
    %v3132 = vadd.f32 %v2783, %v3131
    %v3133 = vand.u32 %v558, 4294901760
    %v3134 = vsub.f32 %v558, %v3133
    %v3135 = vand.u32 %v3134, 4294901760
    %v3136 = vsub.f32 %v3134, %v3135
    %v3137 = vand.u32 %v3136, 4294901760
    %3138 = vmatmul.f32.gmra.mxu0 %v3137
    %v3139 = vpop.f32.mrf.mxu0
    %v3140 = vadd.f32 %v2787, %v3139
    %v3141 = vand.u32 %v560, 4294901760
    %v3142 = vsub.f32 %v560, %v3141
    %v3143 = vand.u32 %v3142, 4294901760
    %v3144 = vsub.f32 %v3142, %v3143
    %v3145 = vand.u32 %v3144, 4294901760
    %3146 = vmatmul.f32.gmra.mxu0 %v3145
    %v3147 = vpop.f32.mrf.mxu0
    %v3148 = vadd.f32 %v2791, %v3147
    %v3149 = vand.u32 %v562, 4294901760
    %v3150 = vsub.f32 %v562, %v3149
    %v3151 = vand.u32 %v3150, 4294901760
    %v3152 = vsub.f32 %v3150, %v3151
    %v3153 = vand.u32 %v3152, 4294901760
    %3154 = vmatmul.f32.gmra.mxu0 %v3153
    %v3155 = vpop.f32.mrf.mxu0
    %v3156 = vadd.f32 %v2795, %v3155
    %v3157 = vand.u32 %v564, 4294901760
    %v3158 = vsub.f32 %v564, %v3157
    %v3159 = vand.u32 %v3158, 4294901760
    %v3160 = vsub.f32 %v3158, %v3159
    %v3161 = vand.u32 %v3160, 4294901760
    %3162 = vmatmul.f32.gmra.mxu0 %v3161
    %v3163 = vpop.f32.mrf.mxu0
    %v3164 = vadd.f32 %v2799, %v3163
    %v3165 = vand.u32 %v566, 4294901760
    %v3166 = vsub.f32 %v566, %v3165
    %v3167 = vand.u32 %v3166, 4294901760
    %v3168 = vsub.f32 %v3166, %v3167
    %v3169 = vand.u32 %v3168, 4294901760
    %3170 = vmatmul.f32.gmra.mxu0 %v3169
    %v3171 = vpop.f32.mrf.mxu0
    %v3172 = vadd.f32 %v2803, %v3171
    %v3173 = vand.u32 %v568, 4294901760
    %v3174 = vsub.f32 %v568, %v3173
    %v3175 = vand.u32 %v3174, 4294901760
    %v3176 = vsub.f32 %v3174, %v3175
    %v3177 = vand.u32 %v3176, 4294901760
    %3178 = vmatmul.f32.gmra.mxu0 %v3177
    %v3179 = vpop.f32.mrf.mxu0
    %v3180 = vadd.f32 %v2807, %v3179
    %v3181 = vand.u32 %v570, 4294901760
    %v3182 = vsub.f32 %v570, %v3181
    %v3183 = vand.u32 %v3182, 4294901760
    %v3184 = vsub.f32 %v3182, %v3183
    %v3185 = vand.u32 %v3184, 4294901760
    %3186 = vmatmul.f32.gmra.mxu0 %v3185
    %v3187 = vpop.f32.mrf.mxu0
    %v3188 = vadd.f32 %v2811, %v3187
    %v3189 = vand.u32 %v572, 4294901760
    %v3190 = vsub.f32 %v572, %v3189
    %v3191 = vand.u32 %v3190, 4294901760
    %v3192 = vsub.f32 %v3190, %v3191
    %v3193 = vand.u32 %v3192, 4294901760
    %3194 = vmatmul.f32.gmra.mxu0 %v3193
    %v3195 = vpop.f32.mrf.mxu0
    %v3196 = vadd.f32 %v2815, %v3195
    %v3197 = vand.u32 %v574, 4294901760
    %v3198 = vsub.f32 %v574, %v3197
    %v3199 = vand.u32 %v3198, 4294901760
    %v3200 = vsub.f32 %v3198, %v3199
    %v3201 = vand.u32 %v3200, 4294901760
    %3202 = vmatmul.f32.gmra.mxu0 %v3201
    %v3203 = vpop.f32.mrf.mxu0
    %v3204 = vadd.f32 %v2819, %v3203
    %v3205 = vand.u32 %v576, 4294901760
    %v3206 = vsub.f32 %v576, %v3205
    %v3207 = vand.u32 %v3206, 4294901760
    %v3208 = vsub.f32 %v3206, %v3207
    %v3209 = vand.u32 %v3208, 4294901760
    %3210 = vmatmul.f32.gmra.mxu0 %v3209
    %v3211 = vpop.f32.mrf.mxu0
    %v3212 = vadd.f32 %v2823, %v3211
    %v3213 = vand.u32 %v578, 4294901760
    %v3214 = vsub.f32 %v578, %v3213
    %v3215 = vand.u32 %v3214, 4294901760
    %v3216 = vsub.f32 %v3214, %v3215
    %v3217 = vand.u32 %v3216, 4294901760
    %3218 = vmatmul.f32.gmra.mxu0 %v3217
    %v3219 = vpop.f32.mrf.mxu0
    %v3220 = vadd.f32 %v2827, %v3219
    %v3221 = vand.u32 %v580, 4294901760
    %v3222 = vsub.f32 %v580, %v3221
    %v3223 = vand.u32 %v3222, 4294901760
    %v3224 = vsub.f32 %v3222, %v3223
    %v3225 = vand.u32 %v3224, 4294901760
    %3226 = vmatmul.f32.gmra.mxu0 %v3225
    %v3227 = vpop.f32.mrf.mxu0
    %v3228 = vadd.f32 %v2831, %v3227
    %v3229 = vand.u32 %v582, 4294901760
    %v3230 = vsub.f32 %v582, %v3229
    %v3231 = vand.u32 %v3230, 4294901760
    %v3232 = vsub.f32 %v3230, %v3231
    %v3233 = vand.u32 %v3232, 4294901760
    %3234 = vmatmul.f32.gmra.mxu0 %v3233
    %v3235 = vpop.f32.mrf.mxu0
    %v3236 = vadd.f32 %v2835, %v3235
    %v3237 = vand.u32 %v584, 4294901760
    %v3238 = vsub.f32 %v584, %v3237
    %v3239 = vand.u32 %v3238, 4294901760
    %v3240 = vsub.f32 %v3238, %v3239
    %v3241 = vand.u32 %v3240, 4294901760
    %3242 = vmatmul.f32.gmra.mxu0 %v3241
    %v3243 = vpop.f32.mrf.mxu0
    %v3244 = vadd.f32 %v2839, %v3243
    %v3245 = vand.u32 %v586, 4294901760
    %v3246 = vsub.f32 %v586, %v3245
    %v3247 = vand.u32 %v3246, 4294901760
    %v3248 = vsub.f32 %v3246, %v3247
    %v3249 = vand.u32 %v3248, 4294901760
    %3250 = vmatmul.f32.gmra.mxu0 %v3249
    %v3251 = vpop.f32.mrf.mxu0
    %v3252 = vadd.f32 %v2843, %v3251
    %v3253 = vand.u32 %v588, 4294901760
    %v3254 = vsub.f32 %v588, %v3253
    %v3255 = vand.u32 %v3254, 4294901760
    %v3256 = vsub.f32 %v3254, %v3255
    %v3257 = vand.u32 %v3256, 4294901760
    %3258 = vmatmul.f32.gmra.mxu0 %v3257
    %v3259 = vpop.f32.mrf.mxu0
    %v3260 = vadd.f32 %v2847, %v3259
    %v3261 = vand.u32 %v590, 4294901760
    %v3262 = vsub.f32 %v590, %v3261
    %v3263 = vand.u32 %v3262, 4294901760
    %v3264 = vsub.f32 %v3262, %v3263
    %v3265 = vand.u32 %v3264, 4294901760
    %3266 = vmatmul.f32.gmra.mxu0 %v3265
    %v3267 = vpop.f32.mrf.mxu0
    %v3268 = vadd.f32 %v2851, %v3267
    %v3269 = vand.u32 %v592, 4294901760
    %v3270 = vsub.f32 %v592, %v3269
    %v3271 = vand.u32 %v3270, 4294901760
    %v3272 = vsub.f32 %v3270, %v3271
    %v3273 = vand.u32 %v3272, 4294901760
    %3274 = vmatmul.f32.gmra.mxu0 %v3273
    %v3275 = vpop.f32.mrf.mxu0
    %v3276 = vadd.f32 %v2855, %v3275
    %v3277 = vand.u32 %v594, 4294901760
    %v3278 = vsub.f32 %v594, %v3277
    %v3279 = vand.u32 %v3278, 4294901760
    %v3280 = vsub.f32 %v3278, %v3279
    %v3281 = vand.u32 %v3280, 4294901760
    %3282 = vmatmul.f32.gmra.mxu0 %v3281
    %v3283 = vpop.f32.mrf.mxu0
    %v3284 = vadd.f32 %v2859, %v3283
    %v3285 = vand.u32 %v596, 4294901760
    %v3286 = vsub.f32 %v596, %v3285
    %v3287 = vand.u32 %v3286, 4294901760
    %v3288 = vsub.f32 %v3286, %v3287
    %v3289 = vand.u32 %v3288, 4294901760
    %3290 = vmatmul.f32.gmra.mxu0 %v3289
    %v3291 = vpop.f32.mrf.mxu0
    %v3292 = vadd.f32 %v2863, %v3291
    %v3293 = vand.u32 %v598, 4294901760
    %v3294 = vsub.f32 %v598, %v3293
    %v3295 = vand.u32 %v3294, 4294901760
    %v3296 = vsub.f32 %v3294, %v3295
    %v3297 = vand.u32 %v3296, 4294901760
    %3298 = vmatmul.f32.gmra.mxu0 %v3297
    %v3299 = vpop.f32.mrf.mxu0
    %v3300 = vadd.f32 %v2867, %v3299
    %v3301 = vand.u32 %v600, 4294901760
    %v3302 = vsub.f32 %v600, %v3301
    %v3303 = vand.u32 %v3302, 4294901760
    %v3304 = vsub.f32 %v3302, %v3303
    %v3305 = vand.u32 %v3304, 4294901760
    %3306 = vmatmul.f32.gmra.mxu0 %v3305
    %v3307 = vpop.f32.mrf.mxu0
    %v3308 = vadd.f32 %v2871, %v3307
    %v3309 = vand.u32 %v602, 4294901760
    %v3310 = vsub.f32 %v602, %v3309
    %v3311 = vand.u32 %v3310, 4294901760
    %v3312 = vsub.f32 %v3310, %v3311
    %v3313 = vand.u32 %v3312, 4294901760
    %3314 = vmatmul.f32.gmra.mxu0 %v3313
    %v3315 = vpop.f32.mrf.mxu0
    %v3316 = vadd.f32 %v2875, %v3315
    %v3317 = vand.u32 %v604, 4294901760
    %v3318 = vsub.f32 %v604, %v3317
    %v3319 = vand.u32 %v3318, 4294901760
    %v3320 = vsub.f32 %v3318, %v3319
    %v3321 = vand.u32 %v3320, 4294901760
    %3322 = vmatmul.f32.gmra.mxu0 %v3321
    %v3323 = vpop.f32.mrf.mxu0
    %v3324 = vadd.f32 %v2879, %v3323
    %v3325 = vand.u32 %v606, 4294901760
    %v3326 = vsub.f32 %v606, %v3325
    %v3327 = vand.u32 %v3326, 4294901760
    %v3328 = vsub.f32 %v3326, %v3327
    %v3329 = vand.u32 %v3328, 4294901760
    %3330 = vmatmul.f32.gmra.mxu0 %v3329
    %v3331 = vpop.f32.mrf.mxu0
    %v3332 = vadd.f32 %v2883, %v3331
    %v3333 = vand.u32 %v608, 4294901760
    %v3334 = vsub.f32 %v608, %v3333
    %v3335 = vand.u32 %v3334, 4294901760
    %v3336 = vsub.f32 %v3334, %v3335
    %v3337 = vand.u32 %v3336, 4294901760
    %3338 = vmatmul.f32.gmra.mxu0 %v3337
    %v3339 = vpop.f32.mrf.mxu0
    %v3340 = vadd.f32 %v2887, %v3339
    %v3341 = vand.u32 %v610, 4294901760
    %v3342 = vsub.f32 %v610, %v3341
    %v3343 = vand.u32 %v3342, 4294901760
    %v3344 = vsub.f32 %v3342, %v3343
    %v3345 = vand.u32 %v3344, 4294901760
    %3346 = vmatmul.f32.gmra.mxu0 %v3345
    %v3347 = vpop.f32.mrf.mxu0
    %v3348 = vadd.f32 %v2891, %v3347
    %v3349 = vand.u32 %v612, 4294901760
    %v3350 = vsub.f32 %v612, %v3349
    %v3351 = vand.u32 %v3350, 4294901760
    %v3352 = vsub.f32 %v3350, %v3351
    %v3353 = vand.u32 %v3352, 4294901760
    %3354 = vmatmul.f32.gmra.mxu0 %v3353
    %v3355 = vpop.f32.mrf.mxu0
    %v3356 = vadd.f32 %v2895, %v3355
    %v3357 = vand.u32 %v614, 4294901760
    %v3358 = vsub.f32 %v614, %v3357
    %v3359 = vand.u32 %v3358, 4294901760
    %v3360 = vsub.f32 %v3358, %v3359
    %v3361 = vand.u32 %v3360, 4294901760
    %3362 = vmatmul.f32.gmra.mxu0 %v3361
    %v3363 = vpop.f32.mrf.mxu0
    %v3364 = vadd.f32 %v2899, %v3363
    %v3365 = vand.u32 %v616, 4294901760
    %v3366 = vsub.f32 %v616, %v3365
    %v3367 = vand.u32 %v3366, 4294901760
    %v3368 = vsub.f32 %v3366, %v3367
    %v3369 = vand.u32 %v3368, 4294901760
    %3370 = vmatmul.f32.gmra.mxu0 %v3369
    %v3371 = vpop.f32.mrf.mxu0
    %v3372 = vadd.f32 %v2903, %v3371
    %v3373 = vand.u32 %v618, 4294901760
    %v3374 = vsub.f32 %v618, %v3373
    %v3375 = vand.u32 %v3374, 4294901760
    %v3376 = vsub.f32 %v3374, %v3375
    %v3377 = vand.u32 %v3376, 4294901760
    %3378 = vmatmul.f32.gmra.mxu0 %v3377
    %v3379 = vpop.f32.mrf.mxu0
    %v3380 = vadd.f32 %v2907, %v3379
    %v3381 = vand.u32 %v620, 4294901760
    %v3382 = vsub.f32 %v620, %v3381
    %v3383 = vand.u32 %v3382, 4294901760
    %v3384 = vsub.f32 %v3382, %v3383
    %v3385 = vand.u32 %v3384, 4294901760
    %3386 = vmatmul.f32.gmra.mxu0 %v3385
    %v3387 = vpop.f32.mrf.mxu0
    %v3388 = vadd.f32 %v2911, %v3387
    %v3389 = vand.u32 %v622, 4294901760
    %v3390 = vsub.f32 %v622, %v3389
    %v3391 = vand.u32 %v3390, 4294901760
    %v3392 = vsub.f32 %v3390, %v3391
    %v3393 = vand.u32 %v3392, 4294901760
    %3394 = vmatmul.f32.gmra.mxu0 %v3393
    %v3395 = vpop.f32.mrf.mxu0
    %v3396 = vadd.f32 %v2915, %v3395
    %v3397 = vand.u32 %v624, 4294901760
    %v3398 = vsub.f32 %v624, %v3397
    %v3399 = vand.u32 %v3398, 4294901760
    %v3400 = vsub.f32 %v3398, %v3399
    %v3401 = vand.u32 %v3400, 4294901760
    %3402 = vmatmul.f32.gmra.mxu0 %v3401
    %v3403 = vpop.f32.mrf.mxu0
    %v3404 = vadd.f32 %v2919, %v3403
    %v3405 = vand.u32 %v626, 4294901760
    %v3406 = vsub.f32 %v626, %v3405
    %v3407 = vand.u32 %v3406, 4294901760
    %v3408 = vsub.f32 %v3406, %v3407
    %v3409 = vand.u32 %v3408, 4294901760
    %3410 = vmatmul.f32.gmra.mxu0 %v3409
    %v3411 = vpop.f32.mrf.mxu0
    %v3412 = vadd.f32 %v2923, %v3411
    %v3413 = vand.u32 %v628, 4294901760
    %v3414 = vsub.f32 %v628, %v3413
    %v3415 = vand.u32 %v3414, 4294901760
    %v3416 = vsub.f32 %v3414, %v3415
    %v3417 = vand.u32 %v3416, 4294901760
    %3418 = vmatmul.f32.gmra.mxu0 %v3417
    %v3419 = vpop.f32.mrf.mxu0
    %v3420 = vadd.f32 %v2927, %v3419
    %v3421 = vand.u32 %v630, 4294901760
    %v3422 = vsub.f32 %v630, %v3421
    %v3423 = vand.u32 %v3422, 4294901760
    %v3424 = vsub.f32 %v3422, %v3423
    %v3425 = vand.u32 %v3424, 4294901760
    %3426 = vmatmul.f32.gmra.mxu0 %v3425
    %v3427 = vpop.f32.mrf.mxu0
    %v3428 = vadd.f32 %v2931, %v3427
    %v3429 = vand.u32 %v632, 4294901760
    %v3430 = vsub.f32 %v632, %v3429
    %v3431 = vand.u32 %v3430, 4294901760
    %v3432 = vsub.f32 %v3430, %v3431
    %v3433 = vand.u32 %v3432, 4294901760
    %3434 = vmatmul.f32.gmra.mxu0 %v3433
    %v3435 = vpop.f32.mrf.mxu0
    %v3436 = vadd.f32 %v2935, %v3435
    %v3437 = vand.u32 %v634, 4294901760
    %v3438 = vsub.f32 %v634, %v3437
    %v3439 = vand.u32 %v3438, 4294901760
    %v3440 = vsub.f32 %v3438, %v3439
    %v3441 = vand.u32 %v3440, 4294901760
    %3442 = vmatmul.f32.gmra.mxu0 %v3441
    %v3443 = vpop.f32.mrf.mxu0
    %v3444 = vadd.f32 %v2939, %v3443
    %v3445 = vand.u32 %v636, 4294901760
    %v3446 = vsub.f32 %v636, %v3445
    %v3447 = vand.u32 %v3446, 4294901760
    %v3448 = vsub.f32 %v3446, %v3447
    %v3449 = vand.u32 %v3448, 4294901760
    %3450 = vmatmul.f32.gmra.mxu0 %v3449
    %v3451 = vpop.f32.mrf.mxu0
    %v3452 = vadd.f32 %v2943, %v3451
    %v3453 = vand.u32 %v638, 4294901760
    %v3454 = vsub.f32 %v638, %v3453
    %v3455 = vand.u32 %v3454, 4294901760
    %v3456 = vsub.f32 %v3454, %v3455
    %v3457 = vand.u32 %v3456, 4294901760
    %3458 = vmatmul.f32.gmra.mxu0 %v3457
    %v3459 = vpop.f32.mrf.mxu0
    %v3460 = vadd.f32 %v2947, %v3459
    %v3461 = vand.u32 %v640, 4294901760
    %v3462 = vsub.f32 %v640, %v3461
    %v3463 = vand.u32 %v3462, 4294901760
    %v3464 = vsub.f32 %v3462, %v3463
    %v3465 = vand.u32 %v3464, 4294901760
    %3466 = vmatmul.f32.gmra.mxu0 %v3465
    %v3467 = vpop.f32.mrf.mxu0
    %v3468 = vadd.f32 %v2951, %v3467
    %v3469 = vand.u32 %v642, 4294901760
    %v3470 = vsub.f32 %v642, %v3469
    %v3471 = vand.u32 %v3470, 4294901760
    %v3472 = vsub.f32 %v3470, %v3471
    %v3473 = vand.u32 %v3472, 4294901760
    %3474 = vmatmul.f32.gmra.mxu0 %v3473
    %v3475 = vpop.f32.mrf.mxu0
    %v3476 = vadd.f32 %v2955, %v3475
    %v3477 = vand.u32 %v644, 4294901760
    %v3478 = vsub.f32 %v644, %v3477
    %v3479 = vand.u32 %v3478, 4294901760
    %v3480 = vsub.f32 %v3478, %v3479
    %v3481 = vand.u32 %v3480, 4294901760
    %3482 = vmatmul.f32.gmra.mxu0 %v3481
    %v3483 = vpop.f32.mrf.mxu0
    %v3484 = vadd.f32 %v2959, %v3483
    %v3485 = vand.u32 %v646, 4294901760
    %v3486 = vsub.f32 %v646, %v3485
    %v3487 = vand.u32 %v3486, 4294901760
    %v3488 = vsub.f32 %v3486, %v3487
    %v3489 = vand.u32 %v3488, 4294901760
    %3490 = vmatmul.f32.gmra.mxu0 %v3489
    %v3491 = vpop.f32.mrf.mxu0
    %v3492 = vadd.f32 %v2963, %v3491
    %v3493 = vand.u32 %v648, 4294901760
    %v3494 = vsub.f32 %v648, %v3493
    %v3495 = vand.u32 %v3494, 4294901760
    %v3496 = vsub.f32 %v3494, %v3495
    %v3497 = vand.u32 %v3496, 4294901760
    %3498 = vmatmul.f32.gmra.mxu0 %v3497
    %v3499 = vpop.f32.mrf.mxu0
    %v3500 = vadd.f32 %v2967, %v3499
    %v3501 = vand.u32 %v650, 4294901760
    %v3502 = vsub.f32 %v650, %v3501
    %v3503 = vand.u32 %v3502, 4294901760
    %v3504 = vsub.f32 %v3502, %v3503
    %v3505 = vand.u32 %v3504, 4294901760
    %3506 = vmatmul.f32.gmra.mxu0 %v3505
    %v3507 = vpop.f32.mrf.mxu0
    %v3508 = vadd.f32 %v2971, %v3507
    %v3509 = vand.u32 %v652, 4294901760
    %v3510 = vsub.f32 %v652, %v3509
    %v3511 = vand.u32 %v3510, 4294901760
    %v3512 = vsub.f32 %v3510, %v3511
    %v3513 = vand.u32 %v3512, 4294901760
    %3514 = vmatmul.f32.gmra.mxu0 %v3513
    %v3515 = vpop.f32.mrf.mxu0
    %v3516 = vadd.f32 %v2975, %v3515
    %v3517 = vand.u32 %v654, 4294901760
    %v3518 = vsub.f32 %v654, %v3517
    %v3519 = vand.u32 %v3518, 4294901760
    %v3520 = vsub.f32 %v3518, %v3519
    %v3521 = vand.u32 %v3520, 4294901760
    %3522 = vmatmul.f32.gmra.mxu0 %v3521
    %v3523 = vpop.f32.mrf.mxu0
    %v3524 = vadd.f32 %v2979, %v3523
    %3525 = vdwg.mxu0
    %v3526 = vand.u32 %v686, 4294901760
    %v3527 = vsub.f32 %v686, %v3526
    %v3528 = vand.u32 %v3527, 4294901760
    %v3529 = vsub.f32 %v3527, %v3528
    %v3530 = vand.u32 %v3529, 4294901760
    %3531 = vmatpush.msra.mxu0 %v3530
    %v3532 = vand.u32 %v685, 4294901760
    %v3533 = vsub.f32 %v685, %v3532
    %v3534 = vand.u32 %v3533, 4294901760
    %v3535 = vsub.f32 %v3533, %v3534
    %v3536 = vand.u32 %v3535, 4294901760
    %3537 = vmatpush.msra.mxu0 %v3536
    %v3538 = vand.u32 %v684, 4294901760
    %v3539 = vsub.f32 %v684, %v3538
    %v3540 = vand.u32 %v3539, 4294901760
    %v3541 = vsub.f32 %v3539, %v3540
    %v3542 = vand.u32 %v3541, 4294901760
    %3543 = vmatpush.msra.mxu0 %v3542
    %v3544 = vand.u32 %v683, 4294901760
    %v3545 = vsub.f32 %v683, %v3544
    %v3546 = vand.u32 %v3545, 4294901760
    %v3547 = vsub.f32 %v3545, %v3546
    %v3548 = vand.u32 %v3547, 4294901760
    %3549 = vmatpush.msra.mxu0 %v3548
    %v3550 = vand.u32 %v682, 4294901760
    %v3551 = vsub.f32 %v682, %v3550
    %v3552 = vand.u32 %v3551, 4294901760
    %v3553 = vsub.f32 %v3551, %v3552
    %v3554 = vand.u32 %v3553, 4294901760
    %3555 = vmatpush.msra.mxu0 %v3554
    %v3556 = vand.u32 %v681, 4294901760
    %v3557 = vsub.f32 %v681, %v3556
    %v3558 = vand.u32 %v3557, 4294901760
    %v3559 = vsub.f32 %v3557, %v3558
    %v3560 = vand.u32 %v3559, 4294901760
    %3561 = vmatpush.msra.mxu0 %v3560
    %v3562 = vand.u32 %v680, 4294901760
    %v3563 = vsub.f32 %v680, %v3562
    %v3564 = vand.u32 %v3563, 4294901760
    %v3565 = vsub.f32 %v3563, %v3564
    %v3566 = vand.u32 %v3565, 4294901760
    %3567 = vmatpush.msra.mxu0 %v3566
    %v3568 = vand.u32 %v679, 4294901760
    %v3569 = vsub.f32 %v679, %v3568
    %v3570 = vand.u32 %v3569, 4294901760
    %v3571 = vsub.f32 %v3569, %v3570
    %v3572 = vand.u32 %v3571, 4294901760
    %3573 = vmatpush.msra.mxu0 %v3572
    %v3574 = vand.u32 %v678, 4294901760
    %v3575 = vsub.f32 %v678, %v3574
    %v3576 = vand.u32 %v3575, 4294901760
    %v3577 = vsub.f32 %v3575, %v3576
    %v3578 = vand.u32 %v3577, 4294901760
    %3579 = vmatpush.msra.mxu0 %v3578
    %v3580 = vand.u32 %v677, 4294901760
    %v3581 = vsub.f32 %v677, %v3580
    %v3582 = vand.u32 %v3581, 4294901760
    %v3583 = vsub.f32 %v3581, %v3582
    %v3584 = vand.u32 %v3583, 4294901760
    %3585 = vmatpush.msra.mxu0 %v3584
    %v3586 = vand.u32 %v676, 4294901760
    %v3587 = vsub.f32 %v676, %v3586
    %v3588 = vand.u32 %v3587, 4294901760
    %v3589 = vsub.f32 %v3587, %v3588
    %v3590 = vand.u32 %v3589, 4294901760
    %3591 = vmatpush.msra.mxu0 %v3590
    %v3592 = vand.u32 %v675, 4294901760
    %v3593 = vsub.f32 %v675, %v3592
    %v3594 = vand.u32 %v3593, 4294901760
    %v3595 = vsub.f32 %v3593, %v3594
    %v3596 = vand.u32 %v3595, 4294901760
    %3597 = vmatpush.msra.mxu0 %v3596
    %v3598 = vand.u32 %v674, 4294901760
    %v3599 = vsub.f32 %v674, %v3598
    %v3600 = vand.u32 %v3599, 4294901760
    %v3601 = vsub.f32 %v3599, %v3600
    %v3602 = vand.u32 %v3601, 4294901760
    %3603 = vmatpush.msra.mxu0 %v3602
    %v3604 = vand.u32 %v673, 4294901760
    %v3605 = vsub.f32 %v673, %v3604
    %v3606 = vand.u32 %v3605, 4294901760
    %v3607 = vsub.f32 %v3605, %v3606
    %v3608 = vand.u32 %v3607, 4294901760
    %3609 = vmatpush.msra.mxu0 %v3608
    %v3610 = vand.u32 %v672, 4294901760
    %v3611 = vsub.f32 %v672, %v3610
    %v3612 = vand.u32 %v3611, 4294901760
    %v3613 = vsub.f32 %v3611, %v3612
    %v3614 = vand.u32 %v3613, 4294901760
    %3615 = vmatpush.msra.mxu0 %v3614
    %v3616 = vand.u32 %v671, 4294901760
    %v3617 = vsub.f32 %v671, %v3616
    %v3618 = vand.u32 %v3617, 4294901760
    %v3619 = vsub.f32 %v3617, %v3618
    %v3620 = vand.u32 %v3619, 4294901760
    %3621 = vmatpush.msra.mxu0 %v3620
    %v3622 = vand.u32 %v528, 4294901760
    %3623 = vmatmul.f32.gmra.mxu0 %v3622
    %v3624 = vpop.f32.mrf.mxu0
    %v3625 = vadd.f32 %v3020, %v3624
    %v3626 = vand.u32 %v530, 4294901760
    %3627 = vmatmul.f32.gmra.mxu0 %v3626
    %v3628 = vpop.f32.mrf.mxu0
    %v3629 = vadd.f32 %v3028, %v3628
    %v3630 = vand.u32 %v532, 4294901760
    %3631 = vmatmul.f32.gmra.mxu0 %v3630
    %v3632 = vpop.f32.mrf.mxu0
    %v3633 = vadd.f32 %v3036, %v3632
    %v3634 = vand.u32 %v534, 4294901760
    %3635 = vmatmul.f32.gmra.mxu0 %v3634
    %v3636 = vpop.f32.mrf.mxu0
    %v3637 = vadd.f32 %v3044, %v3636
    %v3638 = vand.u32 %v536, 4294901760
    %3639 = vmatmul.f32.gmra.mxu0 %v3638
    %v3640 = vpop.f32.mrf.mxu0
    %v3641 = vadd.f32 %v3052, %v3640
    %v3642 = vand.u32 %v538, 4294901760
    %3643 = vmatmul.f32.gmra.mxu0 %v3642
    %v3644 = vpop.f32.mrf.mxu0
    %v3645 = vadd.f32 %v3060, %v3644
    %v3646 = vand.u32 %v540, 4294901760
    %3647 = vmatmul.f32.gmra.mxu0 %v3646
    %v3648 = vpop.f32.mrf.mxu0
    %v3649 = vadd.f32 %v3068, %v3648
    %v3650 = vand.u32 %v542, 4294901760
    %3651 = vmatmul.f32.gmra.mxu0 %v3650
    %v3652 = vpop.f32.mrf.mxu0
    %v3653 = vadd.f32 %v3076, %v3652
    %v3654 = vand.u32 %v544, 4294901760
    %3655 = vmatmul.f32.gmra.mxu0 %v3654
    %v3656 = vpop.f32.mrf.mxu0
    %v3657 = vadd.f32 %v3084, %v3656
    %v3658 = vand.u32 %v546, 4294901760
    %3659 = vmatmul.f32.gmra.mxu0 %v3658
    %v3660 = vpop.f32.mrf.mxu0
    %v3661 = vadd.f32 %v3092, %v3660
    %v3662 = vand.u32 %v548, 4294901760
    %3663 = vmatmul.f32.gmra.mxu0 %v3662
    %v3664 = vpop.f32.mrf.mxu0
    %v3665 = vadd.f32 %v3100, %v3664
    %v3666 = vand.u32 %v550, 4294901760
    %3667 = vmatmul.f32.gmra.mxu0 %v3666
    %v3668 = vpop.f32.mrf.mxu0
    %v3669 = vadd.f32 %v3108, %v3668
    %v3670 = vand.u32 %v552, 4294901760
    %3671 = vmatmul.f32.gmra.mxu0 %v3670
    %v3672 = vpop.f32.mrf.mxu0
    %v3673 = vadd.f32 %v3116, %v3672
    %v3674 = vand.u32 %v554, 4294901760
    %3675 = vmatmul.f32.gmra.mxu0 %v3674
    %v3676 = vpop.f32.mrf.mxu0
    %v3677 = vadd.f32 %v3124, %v3676
    %v3678 = vand.u32 %v556, 4294901760
    %3679 = vmatmul.f32.gmra.mxu0 %v3678
    %v3680 = vpop.f32.mrf.mxu0
    %v3681 = vadd.f32 %v3132, %v3680
    %v3682 = vand.u32 %v558, 4294901760
    %3683 = vmatmul.f32.gmra.mxu0 %v3682
    %v3684 = vpop.f32.mrf.mxu0
    %v3685 = vadd.f32 %v3140, %v3684
    %v3686 = vand.u32 %v560, 4294901760
    %3687 = vmatmul.f32.gmra.mxu0 %v3686
    %v3688 = vpop.f32.mrf.mxu0
    %v3689 = vadd.f32 %v3148, %v3688
    %v3690 = vand.u32 %v562, 4294901760
    %3691 = vmatmul.f32.gmra.mxu0 %v3690
    %v3692 = vpop.f32.mrf.mxu0
    %v3693 = vadd.f32 %v3156, %v3692
    %v3694 = vand.u32 %v564, 4294901760
    %3695 = vmatmul.f32.gmra.mxu0 %v3694
    %v3696 = vpop.f32.mrf.mxu0
    %v3697 = vadd.f32 %v3164, %v3696
    %v3698 = vand.u32 %v566, 4294901760
    %3699 = vmatmul.f32.gmra.mxu0 %v3698
    %v3700 = vpop.f32.mrf.mxu0
    %v3701 = vadd.f32 %v3172, %v3700
    %v3702 = vand.u32 %v568, 4294901760
    %3703 = vmatmul.f32.gmra.mxu0 %v3702
    %v3704 = vpop.f32.mrf.mxu0
    %v3705 = vadd.f32 %v3180, %v3704
    %v3706 = vand.u32 %v570, 4294901760
    %3707 = vmatmul.f32.gmra.mxu0 %v3706
    %v3708 = vpop.f32.mrf.mxu0
    %v3709 = vadd.f32 %v3188, %v3708
    %v3710 = vand.u32 %v572, 4294901760
    %3711 = vmatmul.f32.gmra.mxu0 %v3710
    %v3712 = vpop.f32.mrf.mxu0
    %v3713 = vadd.f32 %v3196, %v3712
    %v3714 = vand.u32 %v574, 4294901760
    %3715 = vmatmul.f32.gmra.mxu0 %v3714
    %v3716 = vpop.f32.mrf.mxu0
    %v3717 = vadd.f32 %v3204, %v3716
    %v3718 = vand.u32 %v576, 4294901760
    %3719 = vmatmul.f32.gmra.mxu0 %v3718
    %v3720 = vpop.f32.mrf.mxu0
    %v3721 = vadd.f32 %v3212, %v3720
    %v3722 = vand.u32 %v578, 4294901760
    %3723 = vmatmul.f32.gmra.mxu0 %v3722
    %v3724 = vpop.f32.mrf.mxu0
    %v3725 = vadd.f32 %v3220, %v3724
    %v3726 = vand.u32 %v580, 4294901760
    %3727 = vmatmul.f32.gmra.mxu0 %v3726
    %v3728 = vpop.f32.mrf.mxu0
    %v3729 = vadd.f32 %v3228, %v3728
    %v3730 = vand.u32 %v582, 4294901760
    %3731 = vmatmul.f32.gmra.mxu0 %v3730
    %v3732 = vpop.f32.mrf.mxu0
    %v3733 = vadd.f32 %v3236, %v3732
    %v3734 = vand.u32 %v584, 4294901760
    %3735 = vmatmul.f32.gmra.mxu0 %v3734
    %v3736 = vpop.f32.mrf.mxu0
    %v3737 = vadd.f32 %v3244, %v3736
    %v3738 = vand.u32 %v586, 4294901760
    %3739 = vmatmul.f32.gmra.mxu0 %v3738
    %v3740 = vpop.f32.mrf.mxu0
    %v3741 = vadd.f32 %v3252, %v3740
    %v3742 = vand.u32 %v588, 4294901760
    %3743 = vmatmul.f32.gmra.mxu0 %v3742
    %v3744 = vpop.f32.mrf.mxu0
    %v3745 = vadd.f32 %v3260, %v3744
    %v3746 = vand.u32 %v590, 4294901760
    %3747 = vmatmul.f32.gmra.mxu0 %v3746
    %v3748 = vpop.f32.mrf.mxu0
    %v3749 = vadd.f32 %v3268, %v3748
    %v3750 = vand.u32 %v592, 4294901760
    %3751 = vmatmul.f32.gmra.mxu0 %v3750
    %v3752 = vpop.f32.mrf.mxu0
    %v3753 = vadd.f32 %v3276, %v3752
    %v3754 = vand.u32 %v594, 4294901760
    %3755 = vmatmul.f32.gmra.mxu0 %v3754
    %v3756 = vpop.f32.mrf.mxu0
    %v3757 = vadd.f32 %v3284, %v3756
    %v3758 = vand.u32 %v596, 4294901760
    %3759 = vmatmul.f32.gmra.mxu0 %v3758
    %v3760 = vpop.f32.mrf.mxu0
    %v3761 = vadd.f32 %v3292, %v3760
    %v3762 = vand.u32 %v598, 4294901760
    %3763 = vmatmul.f32.gmra.mxu0 %v3762
    %v3764 = vpop.f32.mrf.mxu0
    %v3765 = vadd.f32 %v3300, %v3764
    %v3766 = vand.u32 %v600, 4294901760
    %3767 = vmatmul.f32.gmra.mxu0 %v3766
    %v3768 = vpop.f32.mrf.mxu0
    %v3769 = vadd.f32 %v3308, %v3768
    %v3770 = vand.u32 %v602, 4294901760
    %3771 = vmatmul.f32.gmra.mxu0 %v3770
    %v3772 = vpop.f32.mrf.mxu0
    %v3773 = vadd.f32 %v3316, %v3772
    %v3774 = vand.u32 %v604, 4294901760
    %3775 = vmatmul.f32.gmra.mxu0 %v3774
    %v3776 = vpop.f32.mrf.mxu0
    %v3777 = vadd.f32 %v3324, %v3776
    %v3778 = vand.u32 %v606, 4294901760
    %3779 = vmatmul.f32.gmra.mxu0 %v3778
    %v3780 = vpop.f32.mrf.mxu0
    %v3781 = vadd.f32 %v3332, %v3780
    %v3782 = vand.u32 %v608, 4294901760
    %3783 = vmatmul.f32.gmra.mxu0 %v3782
    %v3784 = vpop.f32.mrf.mxu0
    %v3785 = vadd.f32 %v3340, %v3784
    %v3786 = vand.u32 %v610, 4294901760
    %3787 = vmatmul.f32.gmra.mxu0 %v3786
    %v3788 = vpop.f32.mrf.mxu0
    %v3789 = vadd.f32 %v3348, %v3788
    %v3790 = vand.u32 %v612, 4294901760
    %3791 = vmatmul.f32.gmra.mxu0 %v3790
    %v3792 = vpop.f32.mrf.mxu0
    %v3793 = vadd.f32 %v3356, %v3792
    %v3794 = vand.u32 %v614, 4294901760
    %3795 = vmatmul.f32.gmra.mxu0 %v3794
    %v3796 = vpop.f32.mrf.mxu0
    %v3797 = vadd.f32 %v3364, %v3796
    %v3798 = vand.u32 %v616, 4294901760
    %3799 = vmatmul.f32.gmra.mxu0 %v3798
    %v3800 = vpop.f32.mrf.mxu0
    %v3801 = vadd.f32 %v3372, %v3800
    %v3802 = vand.u32 %v618, 4294901760
    %3803 = vmatmul.f32.gmra.mxu0 %v3802
    %v3804 = vpop.f32.mrf.mxu0
    %v3805 = vadd.f32 %v3380, %v3804
    %v3806 = vand.u32 %v620, 4294901760
    %3807 = vmatmul.f32.gmra.mxu0 %v3806
    %v3808 = vpop.f32.mrf.mxu0
    %v3809 = vadd.f32 %v3388, %v3808
    %v3810 = vand.u32 %v622, 4294901760
    %3811 = vmatmul.f32.gmra.mxu0 %v3810
    %v3812 = vpop.f32.mrf.mxu0
    %v3813 = vadd.f32 %v3396, %v3812
    %v3814 = vand.u32 %v624, 4294901760
    %3815 = vmatmul.f32.gmra.mxu0 %v3814
    %v3816 = vpop.f32.mrf.mxu0
    %v3817 = vadd.f32 %v3404, %v3816
    %v3818 = vand.u32 %v626, 4294901760
    %3819 = vmatmul.f32.gmra.mxu0 %v3818
    %v3820 = vpop.f32.mrf.mxu0
    %v3821 = vadd.f32 %v3412, %v3820
    %v3822 = vand.u32 %v628, 4294901760
    %3823 = vmatmul.f32.gmra.mxu0 %v3822
    %v3824 = vpop.f32.mrf.mxu0
    %v3825 = vadd.f32 %v3420, %v3824
    %v3826 = vand.u32 %v630, 4294901760
    %3827 = vmatmul.f32.gmra.mxu0 %v3826
    %v3828 = vpop.f32.mrf.mxu0
    %v3829 = vadd.f32 %v3428, %v3828
    %v3830 = vand.u32 %v632, 4294901760
    %3831 = vmatmul.f32.gmra.mxu0 %v3830
    %v3832 = vpop.f32.mrf.mxu0
    %v3833 = vadd.f32 %v3436, %v3832
    %v3834 = vand.u32 %v634, 4294901760
    %3835 = vmatmul.f32.gmra.mxu0 %v3834
    %v3836 = vpop.f32.mrf.mxu0
    %v3837 = vadd.f32 %v3444, %v3836
    %v3838 = vand.u32 %v636, 4294901760
    %3839 = vmatmul.f32.gmra.mxu0 %v3838
    %v3840 = vpop.f32.mrf.mxu0
    %v3841 = vadd.f32 %v3452, %v3840
    %v3842 = vand.u32 %v638, 4294901760
    %3843 = vmatmul.f32.gmra.mxu0 %v3842
    %v3844 = vpop.f32.mrf.mxu0
    %v3845 = vadd.f32 %v3460, %v3844
    %v3846 = vand.u32 %v640, 4294901760
    %3847 = vmatmul.f32.gmra.mxu0 %v3846
    %v3848 = vpop.f32.mrf.mxu0
    %v3849 = vadd.f32 %v3468, %v3848
    %v3850 = vand.u32 %v642, 4294901760
    %3851 = vmatmul.f32.gmra.mxu0 %v3850
    %v3852 = vpop.f32.mrf.mxu0
    %v3853 = vadd.f32 %v3476, %v3852
    %v3854 = vand.u32 %v644, 4294901760
    %3855 = vmatmul.f32.gmra.mxu0 %v3854
    %v3856 = vpop.f32.mrf.mxu0
    %v3857 = vadd.f32 %v3484, %v3856
    %v3858 = vand.u32 %v646, 4294901760
    %3859 = vmatmul.f32.gmra.mxu0 %v3858
    %v3860 = vpop.f32.mrf.mxu0
    %v3861 = vadd.f32 %v3492, %v3860
    %v3862 = vand.u32 %v648, 4294901760
    %3863 = vmatmul.f32.gmra.mxu0 %v3862
    %v3864 = vpop.f32.mrf.mxu0
    %v3865 = vadd.f32 %v3500, %v3864
    %v3866 = vand.u32 %v650, 4294901760
    %3867 = vmatmul.f32.gmra.mxu0 %v3866
    %v3868 = vpop.f32.mrf.mxu0
    %v3869 = vadd.f32 %v3508, %v3868
    %v3870 = vand.u32 %v652, 4294901760
    %3871 = vmatmul.f32.gmra.mxu0 %v3870
    %v3872 = vpop.f32.mrf.mxu0
    %v3873 = vadd.f32 %v3516, %v3872
    %v3874 = vand.u32 %v654, 4294901760
    %3875 = vmatmul.f32.gmra.mxu0 %v3874
    %v3876 = vpop.f32.mrf.mxu0
    %v3877 = vadd.f32 %v3524, %v3876
    %3878 = vdwg.mxu0
    %v3879 = vand.u32 %v686, 4294901760
    %v3880 = vsub.f32 %v686, %v3879
    %3881 = vmatpush.msra.mxu0 %v3880
    %v3882 = vand.u32 %v685, 4294901760
    %v3883 = vsub.f32 %v685, %v3882
    %3884 = vmatpush.msra.mxu0 %v3883
    %v3885 = vand.u32 %v684, 4294901760
    %v3886 = vsub.f32 %v684, %v3885
    %3887 = vmatpush.msra.mxu0 %v3886
    %v3888 = vand.u32 %v683, 4294901760
    %v3889 = vsub.f32 %v683, %v3888
    %3890 = vmatpush.msra.mxu0 %v3889
    %v3891 = vand.u32 %v682, 4294901760
    %v3892 = vsub.f32 %v682, %v3891
    %3893 = vmatpush.msra.mxu0 %v3892
    %v3894 = vand.u32 %v681, 4294901760
    %v3895 = vsub.f32 %v681, %v3894
    %3896 = vmatpush.msra.mxu0 %v3895
    %v3897 = vand.u32 %v680, 4294901760
    %v3898 = vsub.f32 %v680, %v3897
    %3899 = vmatpush.msra.mxu0 %v3898
    %v3900 = vand.u32 %v679, 4294901760
    %v3901 = vsub.f32 %v679, %v3900
    %3902 = vmatpush.msra.mxu0 %v3901
    %v3903 = vand.u32 %v678, 4294901760
    %v3904 = vsub.f32 %v678, %v3903
    %3905 = vmatpush.msra.mxu0 %v3904
    %v3906 = vand.u32 %v677, 4294901760
    %v3907 = vsub.f32 %v677, %v3906
    %3908 = vmatpush.msra.mxu0 %v3907
    %v3909 = vand.u32 %v676, 4294901760
    %v3910 = vsub.f32 %v676, %v3909
    %3911 = vmatpush.msra.mxu0 %v3910
    %v3912 = vand.u32 %v675, 4294901760
    %v3913 = vsub.f32 %v675, %v3912
    %3914 = vmatpush.msra.mxu0 %v3913
    %v3915 = vand.u32 %v674, 4294901760
    %v3916 = vsub.f32 %v674, %v3915
    %3917 = vmatpush.msra.mxu0 %v3916
    %v3918 = vand.u32 %v673, 4294901760
    %v3919 = vsub.f32 %v673, %v3918
    %3920 = vmatpush.msra.mxu0 %v3919
    %v3921 = vand.u32 %v672, 4294901760
    %v3922 = vsub.f32 %v672, %v3921
    %3923 = vmatpush.msra.mxu0 %v3922
    %v3924 = vand.u32 %v671, 4294901760
    %v3925 = vsub.f32 %v671, %v3924
    %3926 = vmatpush.msra.mxu0 %v3925
    %v3927 = vand.u32 %v528, 4294901760
    %v3928 = vsub.f32 %v528, %v3927
    %3929 = vmatmul.f32.gmra.mxu0 %v3928
    %v3930 = vpop.f32.mrf.mxu0
    %v3931 = vadd.f32 %v3625, %v3930
    %v3932 = vand.u32 %v530, 4294901760
    %v3933 = vsub.f32 %v530, %v3932
    %3934 = vmatmul.f32.gmra.mxu0 %v3933
    %v3935 = vpop.f32.mrf.mxu0
    %v3936 = vadd.f32 %v3629, %v3935
    %v3937 = vand.u32 %v532, 4294901760
    %v3938 = vsub.f32 %v532, %v3937
    %3939 = vmatmul.f32.gmra.mxu0 %v3938
    %v3940 = vpop.f32.mrf.mxu0
    %v3941 = vadd.f32 %v3633, %v3940
    %v3942 = vand.u32 %v534, 4294901760
    %v3943 = vsub.f32 %v534, %v3942
    %3944 = vmatmul.f32.gmra.mxu0 %v3943
    %v3945 = vpop.f32.mrf.mxu0
    %v3946 = vadd.f32 %v3637, %v3945
    %v3947 = vand.u32 %v536, 4294901760
    %v3948 = vsub.f32 %v536, %v3947
    %3949 = vmatmul.f32.gmra.mxu0 %v3948
    %v3950 = vpop.f32.mrf.mxu0
    %v3951 = vadd.f32 %v3641, %v3950
    %v3952 = vand.u32 %v538, 4294901760
    %v3953 = vsub.f32 %v538, %v3952
    %3954 = vmatmul.f32.gmra.mxu0 %v3953
    %v3955 = vpop.f32.mrf.mxu0
    %v3956 = vadd.f32 %v3645, %v3955
    %v3957 = vand.u32 %v540, 4294901760
    %v3958 = vsub.f32 %v540, %v3957
    %3959 = vmatmul.f32.gmra.mxu0 %v3958
    %v3960 = vpop.f32.mrf.mxu0
    %v3961 = vadd.f32 %v3649, %v3960
    %v3962 = vand.u32 %v542, 4294901760
    %v3963 = vsub.f32 %v542, %v3962
    %3964 = vmatmul.f32.gmra.mxu0 %v3963
    %v3965 = vpop.f32.mrf.mxu0
    %v3966 = vadd.f32 %v3653, %v3965
    %v3967 = vand.u32 %v544, 4294901760
    %v3968 = vsub.f32 %v544, %v3967
    %3969 = vmatmul.f32.gmra.mxu0 %v3968
    %v3970 = vpop.f32.mrf.mxu0
    %v3971 = vadd.f32 %v3657, %v3970
    %v3972 = vand.u32 %v546, 4294901760
    %v3973 = vsub.f32 %v546, %v3972
    %3974 = vmatmul.f32.gmra.mxu0 %v3973
    %v3975 = vpop.f32.mrf.mxu0
    %v3976 = vadd.f32 %v3661, %v3975
    %v3977 = vand.u32 %v548, 4294901760
    %v3978 = vsub.f32 %v548, %v3977
    %3979 = vmatmul.f32.gmra.mxu0 %v3978
    %v3980 = vpop.f32.mrf.mxu0
    %v3981 = vadd.f32 %v3665, %v3980
    %v3982 = vand.u32 %v550, 4294901760
    %v3983 = vsub.f32 %v550, %v3982
    %3984 = vmatmul.f32.gmra.mxu0 %v3983
    %v3985 = vpop.f32.mrf.mxu0
    %v3986 = vadd.f32 %v3669, %v3985
    %v3987 = vand.u32 %v552, 4294901760
    %v3988 = vsub.f32 %v552, %v3987
    %3989 = vmatmul.f32.gmra.mxu0 %v3988
    %v3990 = vpop.f32.mrf.mxu0
    %v3991 = vadd.f32 %v3673, %v3990
    %v3992 = vand.u32 %v554, 4294901760
    %v3993 = vsub.f32 %v554, %v3992
    %3994 = vmatmul.f32.gmra.mxu0 %v3993
    %v3995 = vpop.f32.mrf.mxu0
    %v3996 = vadd.f32 %v3677, %v3995
    %v3997 = vand.u32 %v556, 4294901760
    %v3998 = vsub.f32 %v556, %v3997
    %3999 = vmatmul.f32.gmra.mxu0 %v3998
    %v4000 = vpop.f32.mrf.mxu0
    %v4001 = vadd.f32 %v3681, %v4000
    %v4002 = vand.u32 %v558, 4294901760
    %v4003 = vsub.f32 %v558, %v4002
    %4004 = vmatmul.f32.gmra.mxu0 %v4003
    %v4005 = vpop.f32.mrf.mxu0
    %v4006 = vadd.f32 %v3685, %v4005
    %v4007 = vand.u32 %v560, 4294901760
    %v4008 = vsub.f32 %v560, %v4007
    %4009 = vmatmul.f32.gmra.mxu0 %v4008
    %v4010 = vpop.f32.mrf.mxu0
    %v4011 = vadd.f32 %v3689, %v4010
    %v4012 = vand.u32 %v562, 4294901760
    %v4013 = vsub.f32 %v562, %v4012
    %4014 = vmatmul.f32.gmra.mxu0 %v4013
    %v4015 = vpop.f32.mrf.mxu0
    %v4016 = vadd.f32 %v3693, %v4015
    %v4017 = vand.u32 %v564, 4294901760
    %v4018 = vsub.f32 %v564, %v4017
    %4019 = vmatmul.f32.gmra.mxu0 %v4018
    %v4020 = vpop.f32.mrf.mxu0
    %v4021 = vadd.f32 %v3697, %v4020
    %v4022 = vand.u32 %v566, 4294901760
    %v4023 = vsub.f32 %v566, %v4022
    %4024 = vmatmul.f32.gmra.mxu0 %v4023
    %v4025 = vpop.f32.mrf.mxu0
    %v4026 = vadd.f32 %v3701, %v4025
    %v4027 = vand.u32 %v568, 4294901760
    %v4028 = vsub.f32 %v568, %v4027
    %4029 = vmatmul.f32.gmra.mxu0 %v4028
    %v4030 = vpop.f32.mrf.mxu0
    %v4031 = vadd.f32 %v3705, %v4030
    %v4032 = vand.u32 %v570, 4294901760
    %v4033 = vsub.f32 %v570, %v4032
    %4034 = vmatmul.f32.gmra.mxu0 %v4033
    %v4035 = vpop.f32.mrf.mxu0
    %v4036 = vadd.f32 %v3709, %v4035
    %v4037 = vand.u32 %v572, 4294901760
    %v4038 = vsub.f32 %v572, %v4037
    %4039 = vmatmul.f32.gmra.mxu0 %v4038
    %v4040 = vpop.f32.mrf.mxu0
    %v4041 = vadd.f32 %v3713, %v4040
    %v4042 = vand.u32 %v574, 4294901760
    %v4043 = vsub.f32 %v574, %v4042
    %4044 = vmatmul.f32.gmra.mxu0 %v4043
    %v4045 = vpop.f32.mrf.mxu0
    %v4046 = vadd.f32 %v3717, %v4045
    %v4047 = vand.u32 %v576, 4294901760
    %v4048 = vsub.f32 %v576, %v4047
    %4049 = vmatmul.f32.gmra.mxu0 %v4048
    %v4050 = vpop.f32.mrf.mxu0
    %v4051 = vadd.f32 %v3721, %v4050
    %v4052 = vand.u32 %v578, 4294901760
    %v4053 = vsub.f32 %v578, %v4052
    %4054 = vmatmul.f32.gmra.mxu0 %v4053
    %v4055 = vpop.f32.mrf.mxu0
    %v4056 = vadd.f32 %v3725, %v4055
    %v4057 = vand.u32 %v580, 4294901760
    %v4058 = vsub.f32 %v580, %v4057
    %4059 = vmatmul.f32.gmra.mxu0 %v4058
    %v4060 = vpop.f32.mrf.mxu0
    %v4061 = vadd.f32 %v3729, %v4060
    %v4062 = vand.u32 %v582, 4294901760
    %v4063 = vsub.f32 %v582, %v4062
    %4064 = vmatmul.f32.gmra.mxu0 %v4063
    %v4065 = vpop.f32.mrf.mxu0
    %v4066 = vadd.f32 %v3733, %v4065
    %v4067 = vand.u32 %v584, 4294901760
    %v4068 = vsub.f32 %v584, %v4067
    %4069 = vmatmul.f32.gmra.mxu0 %v4068
    %v4070 = vpop.f32.mrf.mxu0
    %v4071 = vadd.f32 %v3737, %v4070
    %v4072 = vand.u32 %v586, 4294901760
    %v4073 = vsub.f32 %v586, %v4072
    %4074 = vmatmul.f32.gmra.mxu0 %v4073
    %v4075 = vpop.f32.mrf.mxu0
    %v4076 = vadd.f32 %v3741, %v4075
    %v4077 = vand.u32 %v588, 4294901760
    %v4078 = vsub.f32 %v588, %v4077
    %4079 = vmatmul.f32.gmra.mxu0 %v4078
    %v4080 = vpop.f32.mrf.mxu0
    %v4081 = vadd.f32 %v3745, %v4080
    %v4082 = vand.u32 %v590, 4294901760
    %v4083 = vsub.f32 %v590, %v4082
    %4084 = vmatmul.f32.gmra.mxu0 %v4083
    %v4085 = vpop.f32.mrf.mxu0
    %v4086 = vadd.f32 %v3749, %v4085
    %v4087 = vand.u32 %v592, 4294901760
    %v4088 = vsub.f32 %v592, %v4087
    %4089 = vmatmul.f32.gmra.mxu0 %v4088
    %v4090 = vpop.f32.mrf.mxu0
    %v4091 = vadd.f32 %v3753, %v4090
    %v4092 = vand.u32 %v594, 4294901760
    %v4093 = vsub.f32 %v594, %v4092
    %4094 = vmatmul.f32.gmra.mxu0 %v4093
    %v4095 = vpop.f32.mrf.mxu0
    %v4096 = vadd.f32 %v3757, %v4095
    %v4097 = vand.u32 %v596, 4294901760
    %v4098 = vsub.f32 %v596, %v4097
    %4099 = vmatmul.f32.gmra.mxu0 %v4098
    %v4100 = vpop.f32.mrf.mxu0
    %v4101 = vadd.f32 %v3761, %v4100
    %v4102 = vand.u32 %v598, 4294901760
    %v4103 = vsub.f32 %v598, %v4102
    %4104 = vmatmul.f32.gmra.mxu0 %v4103
    %v4105 = vpop.f32.mrf.mxu0
    %v4106 = vadd.f32 %v3765, %v4105
    %v4107 = vand.u32 %v600, 4294901760
    %v4108 = vsub.f32 %v600, %v4107
    %4109 = vmatmul.f32.gmra.mxu0 %v4108
    %v4110 = vpop.f32.mrf.mxu0
    %v4111 = vadd.f32 %v3769, %v4110
    %v4112 = vand.u32 %v602, 4294901760
    %v4113 = vsub.f32 %v602, %v4112
    %4114 = vmatmul.f32.gmra.mxu0 %v4113
    %v4115 = vpop.f32.mrf.mxu0
    %v4116 = vadd.f32 %v3773, %v4115
    %v4117 = vand.u32 %v604, 4294901760
    %v4118 = vsub.f32 %v604, %v4117
    %4119 = vmatmul.f32.gmra.mxu0 %v4118
    %v4120 = vpop.f32.mrf.mxu0
    %v4121 = vadd.f32 %v3777, %v4120
    %v4122 = vand.u32 %v606, 4294901760
    %v4123 = vsub.f32 %v606, %v4122
    %4124 = vmatmul.f32.gmra.mxu0 %v4123
    %v4125 = vpop.f32.mrf.mxu0
    %v4126 = vadd.f32 %v3781, %v4125
    %v4127 = vand.u32 %v608, 4294901760
    %v4128 = vsub.f32 %v608, %v4127
    %4129 = vmatmul.f32.gmra.mxu0 %v4128
    %v4130 = vpop.f32.mrf.mxu0
    %v4131 = vadd.f32 %v3785, %v4130
    %v4132 = vand.u32 %v610, 4294901760
    %v4133 = vsub.f32 %v610, %v4132
    %4134 = vmatmul.f32.gmra.mxu0 %v4133
    %v4135 = vpop.f32.mrf.mxu0
    %v4136 = vadd.f32 %v3789, %v4135
    %v4137 = vand.u32 %v612, 4294901760
    %v4138 = vsub.f32 %v612, %v4137
    %4139 = vmatmul.f32.gmra.mxu0 %v4138
    %v4140 = vpop.f32.mrf.mxu0
    %v4141 = vadd.f32 %v3793, %v4140
    %v4142 = vand.u32 %v614, 4294901760
    %v4143 = vsub.f32 %v614, %v4142
    %4144 = vmatmul.f32.gmra.mxu0 %v4143
    %v4145 = vpop.f32.mrf.mxu0
    %v4146 = vadd.f32 %v3797, %v4145
    %v4147 = vand.u32 %v616, 4294901760
    %v4148 = vsub.f32 %v616, %v4147
    %4149 = vmatmul.f32.gmra.mxu0 %v4148
    %v4150 = vpop.f32.mrf.mxu0
    %v4151 = vadd.f32 %v3801, %v4150
    %v4152 = vand.u32 %v618, 4294901760
    %v4153 = vsub.f32 %v618, %v4152
    %4154 = vmatmul.f32.gmra.mxu0 %v4153
    %v4155 = vpop.f32.mrf.mxu0
    %v4156 = vadd.f32 %v3805, %v4155
    %v4157 = vand.u32 %v620, 4294901760
    %v4158 = vsub.f32 %v620, %v4157
    %4159 = vmatmul.f32.gmra.mxu0 %v4158
    %v4160 = vpop.f32.mrf.mxu0
    %v4161 = vadd.f32 %v3809, %v4160
    %v4162 = vand.u32 %v622, 4294901760
    %v4163 = vsub.f32 %v622, %v4162
    %4164 = vmatmul.f32.gmra.mxu0 %v4163
    %v4165 = vpop.f32.mrf.mxu0
    %v4166 = vadd.f32 %v3813, %v4165
    %v4167 = vand.u32 %v624, 4294901760
    %v4168 = vsub.f32 %v624, %v4167
    %4169 = vmatmul.f32.gmra.mxu0 %v4168
    %v4170 = vpop.f32.mrf.mxu0
    %v4171 = vadd.f32 %v3817, %v4170
    %v4172 = vand.u32 %v626, 4294901760
    %v4173 = vsub.f32 %v626, %v4172
    %4174 = vmatmul.f32.gmra.mxu0 %v4173
    %v4175 = vpop.f32.mrf.mxu0
    %v4176 = vadd.f32 %v3821, %v4175
    %v4177 = vand.u32 %v628, 4294901760
    %v4178 = vsub.f32 %v628, %v4177
    %4179 = vmatmul.f32.gmra.mxu0 %v4178
    %v4180 = vpop.f32.mrf.mxu0
    %v4181 = vadd.f32 %v3825, %v4180
    %v4182 = vand.u32 %v630, 4294901760
    %v4183 = vsub.f32 %v630, %v4182
    %4184 = vmatmul.f32.gmra.mxu0 %v4183
    %v4185 = vpop.f32.mrf.mxu0
    %v4186 = vadd.f32 %v3829, %v4185
    %v4187 = vand.u32 %v632, 4294901760
    %v4188 = vsub.f32 %v632, %v4187
    %4189 = vmatmul.f32.gmra.mxu0 %v4188
    %v4190 = vpop.f32.mrf.mxu0
    %v4191 = vadd.f32 %v3833, %v4190
    %v4192 = vand.u32 %v634, 4294901760
    %v4193 = vsub.f32 %v634, %v4192
    %4194 = vmatmul.f32.gmra.mxu0 %v4193
    %v4195 = vpop.f32.mrf.mxu0
    %v4196 = vadd.f32 %v3837, %v4195
    %v4197 = vand.u32 %v636, 4294901760
    %v4198 = vsub.f32 %v636, %v4197
    %4199 = vmatmul.f32.gmra.mxu0 %v4198
    %v4200 = vpop.f32.mrf.mxu0
    %v4201 = vadd.f32 %v3841, %v4200
    %v4202 = vand.u32 %v638, 4294901760
    %v4203 = vsub.f32 %v638, %v4202
    %4204 = vmatmul.f32.gmra.mxu0 %v4203
    %v4205 = vpop.f32.mrf.mxu0
    %v4206 = vadd.f32 %v3845, %v4205
    %v4207 = vand.u32 %v640, 4294901760
    %v4208 = vsub.f32 %v640, %v4207
    %4209 = vmatmul.f32.gmra.mxu0 %v4208
    %v4210 = vpop.f32.mrf.mxu0
    %v4211 = vadd.f32 %v3849, %v4210
    %v4212 = vand.u32 %v642, 4294901760
    %v4213 = vsub.f32 %v642, %v4212
    %4214 = vmatmul.f32.gmra.mxu0 %v4213
    %v4215 = vpop.f32.mrf.mxu0
    %v4216 = vadd.f32 %v3853, %v4215
    %v4217 = vand.u32 %v644, 4294901760
    %v4218 = vsub.f32 %v644, %v4217
    %4219 = vmatmul.f32.gmra.mxu0 %v4218
    %v4220 = vpop.f32.mrf.mxu0
    %v4221 = vadd.f32 %v3857, %v4220
    %v4222 = vand.u32 %v646, 4294901760
    %v4223 = vsub.f32 %v646, %v4222
    %4224 = vmatmul.f32.gmra.mxu0 %v4223
    %v4225 = vpop.f32.mrf.mxu0
    %v4226 = vadd.f32 %v3861, %v4225
    %v4227 = vand.u32 %v648, 4294901760
    %v4228 = vsub.f32 %v648, %v4227
    %4229 = vmatmul.f32.gmra.mxu0 %v4228
    %v4230 = vpop.f32.mrf.mxu0
    %v4231 = vadd.f32 %v3865, %v4230
    %v4232 = vand.u32 %v650, 4294901760
    %v4233 = vsub.f32 %v650, %v4232
    %4234 = vmatmul.f32.gmra.mxu0 %v4233
    %v4235 = vpop.f32.mrf.mxu0
    %v4236 = vadd.f32 %v3869, %v4235
    %v4237 = vand.u32 %v652, 4294901760
    %v4238 = vsub.f32 %v652, %v4237
    %4239 = vmatmul.f32.gmra.mxu0 %v4238
    %v4240 = vpop.f32.mrf.mxu0
    %v4241 = vadd.f32 %v3873, %v4240
    %v4242 = vand.u32 %v654, 4294901760
    %v4243 = vsub.f32 %v654, %v4242
    %4244 = vmatmul.f32.gmra.mxu0 %v4243
    %v4245 = vpop.f32.mrf.mxu0
    %v4246 = vadd.f32 %v3877, %v4245
    %4247 = vdwg.mxu0
    %v4248 = vand.u32 %v686, 4294901760
    %4249 = vmatpush.msra.mxu0 %v4248
    %v4250 = vand.u32 %v685, 4294901760
    %4251 = vmatpush.msra.mxu0 %v4250
    %v4252 = vand.u32 %v684, 4294901760
    %4253 = vmatpush.msra.mxu0 %v4252
    %v4254 = vand.u32 %v683, 4294901760
    %4255 = vmatpush.msra.mxu0 %v4254
    %v4256 = vand.u32 %v682, 4294901760
    %4257 = vmatpush.msra.mxu0 %v4256
    %v4258 = vand.u32 %v681, 4294901760
    %4259 = vmatpush.msra.mxu0 %v4258
    %v4260 = vand.u32 %v680, 4294901760
    %4261 = vmatpush.msra.mxu0 %v4260
    %v4262 = vand.u32 %v679, 4294901760
    %4263 = vmatpush.msra.mxu0 %v4262
    %v4264 = vand.u32 %v678, 4294901760
    %4265 = vmatpush.msra.mxu0 %v4264
    %v4266 = vand.u32 %v677, 4294901760
    %4267 = vmatpush.msra.mxu0 %v4266
    %v4268 = vand.u32 %v676, 4294901760
    %4269 = vmatpush.msra.mxu0 %v4268
    %v4270 = vand.u32 %v675, 4294901760
    %4271 = vmatpush.msra.mxu0 %v4270
    %v4272 = vand.u32 %v674, 4294901760
    %4273 = vmatpush.msra.mxu0 %v4272
    %v4274 = vand.u32 %v673, 4294901760
    %4275 = vmatpush.msra.mxu0 %v4274
    %v4276 = vand.u32 %v672, 4294901760
    %4277 = vmatpush.msra.mxu0 %v4276
    %v4278 = vand.u32 %v671, 4294901760
    %4279 = vmatpush.msra.mxu0 %v4278
    %v4280 = vand.u32 %v528, 4294901760
    %v4281 = vsub.f32 %v528, %v4280
    %v4282 = vand.u32 %v4281, 4294901760
    %4283 = vmatmul.f32.gmra.mxu0 %v4282
    %v4284 = vpop.f32.mrf.mxu0
    %v4285 = vadd.f32 %v3931, %v4284
    %v4286 = vand.u32 %v530, 4294901760
    %v4287 = vsub.f32 %v530, %v4286
    %v4288 = vand.u32 %v4287, 4294901760
    %4289 = vmatmul.f32.gmra.mxu0 %v4288
    %v4290 = vpop.f32.mrf.mxu0
    %v4291 = vadd.f32 %v3936, %v4290
    %v4292 = vand.u32 %v532, 4294901760
    %v4293 = vsub.f32 %v532, %v4292
    %v4294 = vand.u32 %v4293, 4294901760
    %4295 = vmatmul.f32.gmra.mxu0 %v4294
    %v4296 = vpop.f32.mrf.mxu0
    %v4297 = vadd.f32 %v3941, %v4296
    %v4298 = vand.u32 %v534, 4294901760
    %v4299 = vsub.f32 %v534, %v4298
    %v4300 = vand.u32 %v4299, 4294901760
    %4301 = vmatmul.f32.gmra.mxu0 %v4300
    %v4302 = vpop.f32.mrf.mxu0
    %v4303 = vadd.f32 %v3946, %v4302
    %v4304 = vand.u32 %v536, 4294901760
    %v4305 = vsub.f32 %v536, %v4304
    %v4306 = vand.u32 %v4305, 4294901760
    %4307 = vmatmul.f32.gmra.mxu0 %v4306
    %v4308 = vpop.f32.mrf.mxu0
    %v4309 = vadd.f32 %v3951, %v4308
    %v4310 = vand.u32 %v538, 4294901760
    %v4311 = vsub.f32 %v538, %v4310
    %v4312 = vand.u32 %v4311, 4294901760
    %4313 = vmatmul.f32.gmra.mxu0 %v4312
    %v4314 = vpop.f32.mrf.mxu0
    %v4315 = vadd.f32 %v3956, %v4314
    %v4316 = vand.u32 %v540, 4294901760
    %v4317 = vsub.f32 %v540, %v4316
    %v4318 = vand.u32 %v4317, 4294901760
    %4319 = vmatmul.f32.gmra.mxu0 %v4318
    %v4320 = vpop.f32.mrf.mxu0
    %v4321 = vadd.f32 %v3961, %v4320
    %v4322 = vand.u32 %v542, 4294901760
    %v4323 = vsub.f32 %v542, %v4322
    %v4324 = vand.u32 %v4323, 4294901760
    %4325 = vmatmul.f32.gmra.mxu0 %v4324
    %v4326 = vpop.f32.mrf.mxu0
    %v4327 = vadd.f32 %v3966, %v4326
    %v4328 = vand.u32 %v544, 4294901760
    %v4329 = vsub.f32 %v544, %v4328
    %v4330 = vand.u32 %v4329, 4294901760
    %4331 = vmatmul.f32.gmra.mxu0 %v4330
    %v4332 = vpop.f32.mrf.mxu0
    %v4333 = vadd.f32 %v3971, %v4332
    %v4334 = vand.u32 %v546, 4294901760
    %v4335 = vsub.f32 %v546, %v4334
    %v4336 = vand.u32 %v4335, 4294901760
    %4337 = vmatmul.f32.gmra.mxu0 %v4336
    %v4338 = vpop.f32.mrf.mxu0
    %v4339 = vadd.f32 %v3976, %v4338
    %v4340 = vand.u32 %v548, 4294901760
    %v4341 = vsub.f32 %v548, %v4340
    %v4342 = vand.u32 %v4341, 4294901760
    %4343 = vmatmul.f32.gmra.mxu0 %v4342
    %v4344 = vpop.f32.mrf.mxu0
    %v4345 = vadd.f32 %v3981, %v4344
    %v4346 = vand.u32 %v550, 4294901760
    %v4347 = vsub.f32 %v550, %v4346
    %v4348 = vand.u32 %v4347, 4294901760
    %4349 = vmatmul.f32.gmra.mxu0 %v4348
    %v4350 = vpop.f32.mrf.mxu0
    %v4351 = vadd.f32 %v3986, %v4350
    %v4352 = vand.u32 %v552, 4294901760
    %v4353 = vsub.f32 %v552, %v4352
    %v4354 = vand.u32 %v4353, 4294901760
    %4355 = vmatmul.f32.gmra.mxu0 %v4354
    %v4356 = vpop.f32.mrf.mxu0
    %v4357 = vadd.f32 %v3991, %v4356
    %v4358 = vand.u32 %v554, 4294901760
    %v4359 = vsub.f32 %v554, %v4358
    %v4360 = vand.u32 %v4359, 4294901760
    %4361 = vmatmul.f32.gmra.mxu0 %v4360
    %v4362 = vpop.f32.mrf.mxu0
    %v4363 = vadd.f32 %v3996, %v4362
    %v4364 = vand.u32 %v556, 4294901760
    %v4365 = vsub.f32 %v556, %v4364
    %v4366 = vand.u32 %v4365, 4294901760
    %4367 = vmatmul.f32.gmra.mxu0 %v4366
    %v4368 = vpop.f32.mrf.mxu0
    %v4369 = vadd.f32 %v4001, %v4368
    %v4370 = vand.u32 %v558, 4294901760
    %v4371 = vsub.f32 %v558, %v4370
    %v4372 = vand.u32 %v4371, 4294901760
    %4373 = vmatmul.f32.gmra.mxu0 %v4372
    %v4374 = vpop.f32.mrf.mxu0
    %v4375 = vadd.f32 %v4006, %v4374
    %v4376 = vand.u32 %v560, 4294901760
    %v4377 = vsub.f32 %v560, %v4376
    %v4378 = vand.u32 %v4377, 4294901760
    %4379 = vmatmul.f32.gmra.mxu0 %v4378
    %v4380 = vpop.f32.mrf.mxu0
    %v4381 = vadd.f32 %v4011, %v4380
    %v4382 = vand.u32 %v562, 4294901760
    %v4383 = vsub.f32 %v562, %v4382
    %v4384 = vand.u32 %v4383, 4294901760
    %4385 = vmatmul.f32.gmra.mxu0 %v4384
    %v4386 = vpop.f32.mrf.mxu0
    %v4387 = vadd.f32 %v4016, %v4386
    %v4388 = vand.u32 %v564, 4294901760
    %v4389 = vsub.f32 %v564, %v4388
    %v4390 = vand.u32 %v4389, 4294901760
    %4391 = vmatmul.f32.gmra.mxu0 %v4390
    %v4392 = vpop.f32.mrf.mxu0
    %v4393 = vadd.f32 %v4021, %v4392
    %v4394 = vand.u32 %v566, 4294901760
    %v4395 = vsub.f32 %v566, %v4394
    %v4396 = vand.u32 %v4395, 4294901760
    %4397 = vmatmul.f32.gmra.mxu0 %v4396
    %v4398 = vpop.f32.mrf.mxu0
    %v4399 = vadd.f32 %v4026, %v4398
    %v4400 = vand.u32 %v568, 4294901760
    %v4401 = vsub.f32 %v568, %v4400
    %v4402 = vand.u32 %v4401, 4294901760
    %4403 = vmatmul.f32.gmra.mxu0 %v4402
    %v4404 = vpop.f32.mrf.mxu0
    %v4405 = vadd.f32 %v4031, %v4404
    %v4406 = vand.u32 %v570, 4294901760
    %v4407 = vsub.f32 %v570, %v4406
    %v4408 = vand.u32 %v4407, 4294901760
    %4409 = vmatmul.f32.gmra.mxu0 %v4408
    %v4410 = vpop.f32.mrf.mxu0
    %v4411 = vadd.f32 %v4036, %v4410
    %v4412 = vand.u32 %v572, 4294901760
    %v4413 = vsub.f32 %v572, %v4412
    %v4414 = vand.u32 %v4413, 4294901760
    %4415 = vmatmul.f32.gmra.mxu0 %v4414
    %v4416 = vpop.f32.mrf.mxu0
    %v4417 = vadd.f32 %v4041, %v4416
    %v4418 = vand.u32 %v574, 4294901760
    %v4419 = vsub.f32 %v574, %v4418
    %v4420 = vand.u32 %v4419, 4294901760
    %4421 = vmatmul.f32.gmra.mxu0 %v4420
    %v4422 = vpop.f32.mrf.mxu0
    %v4423 = vadd.f32 %v4046, %v4422
    %v4424 = vand.u32 %v576, 4294901760
    %v4425 = vsub.f32 %v576, %v4424
    %v4426 = vand.u32 %v4425, 4294901760
    %4427 = vmatmul.f32.gmra.mxu0 %v4426
    %v4428 = vpop.f32.mrf.mxu0
    %v4429 = vadd.f32 %v4051, %v4428
    %v4430 = vand.u32 %v578, 4294901760
    %v4431 = vsub.f32 %v578, %v4430
    %v4432 = vand.u32 %v4431, 4294901760
    %4433 = vmatmul.f32.gmra.mxu0 %v4432
    %v4434 = vpop.f32.mrf.mxu0
    %v4435 = vadd.f32 %v4056, %v4434
    %v4436 = vand.u32 %v580, 4294901760
    %v4437 = vsub.f32 %v580, %v4436
    %v4438 = vand.u32 %v4437, 4294901760
    %4439 = vmatmul.f32.gmra.mxu0 %v4438
    %v4440 = vpop.f32.mrf.mxu0
    %v4441 = vadd.f32 %v4061, %v4440
    %v4442 = vand.u32 %v582, 4294901760
    %v4443 = vsub.f32 %v582, %v4442
    %v4444 = vand.u32 %v4443, 4294901760
    %4445 = vmatmul.f32.gmra.mxu0 %v4444
    %v4446 = vpop.f32.mrf.mxu0
    %v4447 = vadd.f32 %v4066, %v4446
    %v4448 = vand.u32 %v584, 4294901760
    %v4449 = vsub.f32 %v584, %v4448
    %v4450 = vand.u32 %v4449, 4294901760
    %4451 = vmatmul.f32.gmra.mxu0 %v4450
    %v4452 = vpop.f32.mrf.mxu0
    %v4453 = vadd.f32 %v4071, %v4452
    %v4454 = vand.u32 %v586, 4294901760
    %v4455 = vsub.f32 %v586, %v4454
    %v4456 = vand.u32 %v4455, 4294901760
    %4457 = vmatmul.f32.gmra.mxu0 %v4456
    %v4458 = vpop.f32.mrf.mxu0
    %v4459 = vadd.f32 %v4076, %v4458
    %v4460 = vand.u32 %v588, 4294901760
    %v4461 = vsub.f32 %v588, %v4460
    %v4462 = vand.u32 %v4461, 4294901760
    %4463 = vmatmul.f32.gmra.mxu0 %v4462
    %v4464 = vpop.f32.mrf.mxu0
    %v4465 = vadd.f32 %v4081, %v4464
    %v4466 = vand.u32 %v590, 4294901760
    %v4467 = vsub.f32 %v590, %v4466
    %v4468 = vand.u32 %v4467, 4294901760
    %4469 = vmatmul.f32.gmra.mxu0 %v4468
    %v4470 = vpop.f32.mrf.mxu0
    %v4471 = vadd.f32 %v4086, %v4470
    %v4472 = vand.u32 %v592, 4294901760
    %v4473 = vsub.f32 %v592, %v4472
    %v4474 = vand.u32 %v4473, 4294901760
    %4475 = vmatmul.f32.gmra.mxu0 %v4474
    %v4476 = vpop.f32.mrf.mxu0
    %v4477 = vadd.f32 %v4091, %v4476
    %v4478 = vand.u32 %v594, 4294901760
    %v4479 = vsub.f32 %v594, %v4478
    %v4480 = vand.u32 %v4479, 4294901760
    %4481 = vmatmul.f32.gmra.mxu0 %v4480
    %v4482 = vpop.f32.mrf.mxu0
    %v4483 = vadd.f32 %v4096, %v4482
    %v4484 = vand.u32 %v596, 4294901760
    %v4485 = vsub.f32 %v596, %v4484
    %v4486 = vand.u32 %v4485, 4294901760
    %4487 = vmatmul.f32.gmra.mxu0 %v4486
    %v4488 = vpop.f32.mrf.mxu0
    %v4489 = vadd.f32 %v4101, %v4488
    %v4490 = vand.u32 %v598, 4294901760
    %v4491 = vsub.f32 %v598, %v4490
    %v4492 = vand.u32 %v4491, 4294901760
    %4493 = vmatmul.f32.gmra.mxu0 %v4492
    %v4494 = vpop.f32.mrf.mxu0
    %v4495 = vadd.f32 %v4106, %v4494
    %v4496 = vand.u32 %v600, 4294901760
    %v4497 = vsub.f32 %v600, %v4496
    %v4498 = vand.u32 %v4497, 4294901760
    %4499 = vmatmul.f32.gmra.mxu0 %v4498
    %v4500 = vpop.f32.mrf.mxu0
    %v4501 = vadd.f32 %v4111, %v4500
    %v4502 = vand.u32 %v602, 4294901760
    %v4503 = vsub.f32 %v602, %v4502
    %v4504 = vand.u32 %v4503, 4294901760
    %4505 = vmatmul.f32.gmra.mxu0 %v4504
    %v4506 = vpop.f32.mrf.mxu0
    %v4507 = vadd.f32 %v4116, %v4506
    %v4508 = vand.u32 %v604, 4294901760
    %v4509 = vsub.f32 %v604, %v4508
    %v4510 = vand.u32 %v4509, 4294901760
    %4511 = vmatmul.f32.gmra.mxu0 %v4510
    %v4512 = vpop.f32.mrf.mxu0
    %v4513 = vadd.f32 %v4121, %v4512
    %v4514 = vand.u32 %v606, 4294901760
    %v4515 = vsub.f32 %v606, %v4514
    %v4516 = vand.u32 %v4515, 4294901760
    %4517 = vmatmul.f32.gmra.mxu0 %v4516
    %v4518 = vpop.f32.mrf.mxu0
    %v4519 = vadd.f32 %v4126, %v4518
    %v4520 = vand.u32 %v608, 4294901760
    %v4521 = vsub.f32 %v608, %v4520
    %v4522 = vand.u32 %v4521, 4294901760
    %4523 = vmatmul.f32.gmra.mxu0 %v4522
    %v4524 = vpop.f32.mrf.mxu0
    %v4525 = vadd.f32 %v4131, %v4524
    %v4526 = vand.u32 %v610, 4294901760
    %v4527 = vsub.f32 %v610, %v4526
    %v4528 = vand.u32 %v4527, 4294901760
    %4529 = vmatmul.f32.gmra.mxu0 %v4528
    %v4530 = vpop.f32.mrf.mxu0
    %v4531 = vadd.f32 %v4136, %v4530
    %v4532 = vand.u32 %v612, 4294901760
    %v4533 = vsub.f32 %v612, %v4532
    %v4534 = vand.u32 %v4533, 4294901760
    %4535 = vmatmul.f32.gmra.mxu0 %v4534
    %v4536 = vpop.f32.mrf.mxu0
    %v4537 = vadd.f32 %v4141, %v4536
    %v4538 = vand.u32 %v614, 4294901760
    %v4539 = vsub.f32 %v614, %v4538
    %v4540 = vand.u32 %v4539, 4294901760
    %4541 = vmatmul.f32.gmra.mxu0 %v4540
    %v4542 = vpop.f32.mrf.mxu0
    %v4543 = vadd.f32 %v4146, %v4542
    %v4544 = vand.u32 %v616, 4294901760
    %v4545 = vsub.f32 %v616, %v4544
    %v4546 = vand.u32 %v4545, 4294901760
    %4547 = vmatmul.f32.gmra.mxu0 %v4546
    %v4548 = vpop.f32.mrf.mxu0
    %v4549 = vadd.f32 %v4151, %v4548
    %v4550 = vand.u32 %v618, 4294901760
    %v4551 = vsub.f32 %v618, %v4550
    %v4552 = vand.u32 %v4551, 4294901760
    %4553 = vmatmul.f32.gmra.mxu0 %v4552
    %v4554 = vpop.f32.mrf.mxu0
    %v4555 = vadd.f32 %v4156, %v4554
    %v4556 = vand.u32 %v620, 4294901760
    %v4557 = vsub.f32 %v620, %v4556
    %v4558 = vand.u32 %v4557, 4294901760
    %4559 = vmatmul.f32.gmra.mxu0 %v4558
    %v4560 = vpop.f32.mrf.mxu0
    %v4561 = vadd.f32 %v4161, %v4560
    %v4562 = vand.u32 %v622, 4294901760
    %v4563 = vsub.f32 %v622, %v4562
    %v4564 = vand.u32 %v4563, 4294901760
    %4565 = vmatmul.f32.gmra.mxu0 %v4564
    %v4566 = vpop.f32.mrf.mxu0
    %v4567 = vadd.f32 %v4166, %v4566
    %v4568 = vand.u32 %v624, 4294901760
    %v4569 = vsub.f32 %v624, %v4568
    %v4570 = vand.u32 %v4569, 4294901760
    %4571 = vmatmul.f32.gmra.mxu0 %v4570
    %v4572 = vpop.f32.mrf.mxu0
    %v4573 = vadd.f32 %v4171, %v4572
    %v4574 = vand.u32 %v626, 4294901760
    %v4575 = vsub.f32 %v626, %v4574
    %v4576 = vand.u32 %v4575, 4294901760
    %4577 = vmatmul.f32.gmra.mxu0 %v4576
    %v4578 = vpop.f32.mrf.mxu0
    %v4579 = vadd.f32 %v4176, %v4578
    %v4580 = vand.u32 %v628, 4294901760
    %v4581 = vsub.f32 %v628, %v4580
    %v4582 = vand.u32 %v4581, 4294901760
    %4583 = vmatmul.f32.gmra.mxu0 %v4582
    %v4584 = vpop.f32.mrf.mxu0
    %v4585 = vadd.f32 %v4181, %v4584
    %v4586 = vand.u32 %v630, 4294901760
    %v4587 = vsub.f32 %v630, %v4586
    %v4588 = vand.u32 %v4587, 4294901760
    %4589 = vmatmul.f32.gmra.mxu0 %v4588
    %v4590 = vpop.f32.mrf.mxu0
    %v4591 = vadd.f32 %v4186, %v4590
    %v4592 = vand.u32 %v632, 4294901760
    %v4593 = vsub.f32 %v632, %v4592
    %v4594 = vand.u32 %v4593, 4294901760
    %4595 = vmatmul.f32.gmra.mxu0 %v4594
    %v4596 = vpop.f32.mrf.mxu0
    %v4597 = vadd.f32 %v4191, %v4596
    %v4598 = vand.u32 %v634, 4294901760
    %v4599 = vsub.f32 %v634, %v4598
    %v4600 = vand.u32 %v4599, 4294901760
    %4601 = vmatmul.f32.gmra.mxu0 %v4600
    %v4602 = vpop.f32.mrf.mxu0
    %v4603 = vadd.f32 %v4196, %v4602
    %v4604 = vand.u32 %v636, 4294901760
    %v4605 = vsub.f32 %v636, %v4604
    %v4606 = vand.u32 %v4605, 4294901760
    %4607 = vmatmul.f32.gmra.mxu0 %v4606
    %v4608 = vpop.f32.mrf.mxu0
    %v4609 = vadd.f32 %v4201, %v4608
    %v4610 = vand.u32 %v638, 4294901760
    %v4611 = vsub.f32 %v638, %v4610
    %v4612 = vand.u32 %v4611, 4294901760
    %4613 = vmatmul.f32.gmra.mxu0 %v4612
    %v4614 = vpop.f32.mrf.mxu0
    %v4615 = vadd.f32 %v4206, %v4614
    %v4616 = vand.u32 %v640, 4294901760
    %v4617 = vsub.f32 %v640, %v4616
    %v4618 = vand.u32 %v4617, 4294901760
    %4619 = vmatmul.f32.gmra.mxu0 %v4618
    %v4620 = vpop.f32.mrf.mxu0
    %v4621 = vadd.f32 %v4211, %v4620
    %v4622 = vand.u32 %v642, 4294901760
    %v4623 = vsub.f32 %v642, %v4622
    %v4624 = vand.u32 %v4623, 4294901760
    %4625 = vmatmul.f32.gmra.mxu0 %v4624
    %v4626 = vpop.f32.mrf.mxu0
    %v4627 = vadd.f32 %v4216, %v4626
    %v4628 = vand.u32 %v644, 4294901760
    %v4629 = vsub.f32 %v644, %v4628
    %v4630 = vand.u32 %v4629, 4294901760
    %4631 = vmatmul.f32.gmra.mxu0 %v4630
    %v4632 = vpop.f32.mrf.mxu0
    %v4633 = vadd.f32 %v4221, %v4632
    %v4634 = vand.u32 %v646, 4294901760
    %v4635 = vsub.f32 %v646, %v4634
    %v4636 = vand.u32 %v4635, 4294901760
    %4637 = vmatmul.f32.gmra.mxu0 %v4636
    %v4638 = vpop.f32.mrf.mxu0
    %v4639 = vadd.f32 %v4226, %v4638
    %v4640 = vand.u32 %v648, 4294901760
    %v4641 = vsub.f32 %v648, %v4640
    %v4642 = vand.u32 %v4641, 4294901760
    %4643 = vmatmul.f32.gmra.mxu0 %v4642
    %v4644 = vpop.f32.mrf.mxu0
    %v4645 = vadd.f32 %v4231, %v4644
    %v4646 = vand.u32 %v650, 4294901760
    %v4647 = vsub.f32 %v650, %v4646
    %v4648 = vand.u32 %v4647, 4294901760
    %4649 = vmatmul.f32.gmra.mxu0 %v4648
    %v4650 = vpop.f32.mrf.mxu0
    %v4651 = vadd.f32 %v4236, %v4650
    %v4652 = vand.u32 %v652, 4294901760
    %v4653 = vsub.f32 %v652, %v4652
    %v4654 = vand.u32 %v4653, 4294901760
    %4655 = vmatmul.f32.gmra.mxu0 %v4654
    %v4656 = vpop.f32.mrf.mxu0
    %v4657 = vadd.f32 %v4241, %v4656
    %v4658 = vand.u32 %v654, 4294901760
    %v4659 = vsub.f32 %v654, %v4658
    %v4660 = vand.u32 %v4659, 4294901760
    %4661 = vmatmul.f32.gmra.mxu0 %v4660
    %v4662 = vpop.f32.mrf.mxu0
    %v4663 = vadd.f32 %v4246, %v4662
    %4664 = vdwg.mxu0
    %v4665 = vand.u32 %v686, 4294901760
    %v4666 = vsub.f32 %v686, %v4665
    %v4667 = vand.u32 %v4666, 4294901760
    %4668 = vmatpush.msra.mxu0 %v4667
    %v4669 = vand.u32 %v685, 4294901760
    %v4670 = vsub.f32 %v685, %v4669
    %v4671 = vand.u32 %v4670, 4294901760
    %4672 = vmatpush.msra.mxu0 %v4671
    %v4673 = vand.u32 %v684, 4294901760
    %v4674 = vsub.f32 %v684, %v4673
    %v4675 = vand.u32 %v4674, 4294901760
    %4676 = vmatpush.msra.mxu0 %v4675
    %v4677 = vand.u32 %v683, 4294901760
    %v4678 = vsub.f32 %v683, %v4677
    %v4679 = vand.u32 %v4678, 4294901760
    %4680 = vmatpush.msra.mxu0 %v4679
    %v4681 = vand.u32 %v682, 4294901760
    %v4682 = vsub.f32 %v682, %v4681
    %v4683 = vand.u32 %v4682, 4294901760
    %4684 = vmatpush.msra.mxu0 %v4683
    %v4685 = vand.u32 %v681, 4294901760
    %v4686 = vsub.f32 %v681, %v4685
    %v4687 = vand.u32 %v4686, 4294901760
    %4688 = vmatpush.msra.mxu0 %v4687
    %v4689 = vand.u32 %v680, 4294901760
    %v4690 = vsub.f32 %v680, %v4689
    %v4691 = vand.u32 %v4690, 4294901760
    %4692 = vmatpush.msra.mxu0 %v4691
    %v4693 = vand.u32 %v679, 4294901760
    %v4694 = vsub.f32 %v679, %v4693
    %v4695 = vand.u32 %v4694, 4294901760
    %4696 = vmatpush.msra.mxu0 %v4695
    %v4697 = vand.u32 %v678, 4294901760
    %v4698 = vsub.f32 %v678, %v4697
    %v4699 = vand.u32 %v4698, 4294901760
    %4700 = vmatpush.msra.mxu0 %v4699
    %v4701 = vand.u32 %v677, 4294901760
    %v4702 = vsub.f32 %v677, %v4701
    %v4703 = vand.u32 %v4702, 4294901760
    %4704 = vmatpush.msra.mxu0 %v4703
    %v4705 = vand.u32 %v676, 4294901760
    %v4706 = vsub.f32 %v676, %v4705
    %v4707 = vand.u32 %v4706, 4294901760
    %4708 = vmatpush.msra.mxu0 %v4707
    %v4709 = vand.u32 %v675, 4294901760
    %v4710 = vsub.f32 %v675, %v4709
    %v4711 = vand.u32 %v4710, 4294901760
    %4712 = vmatpush.msra.mxu0 %v4711
    %v4713 = vand.u32 %v674, 4294901760
    %v4714 = vsub.f32 %v674, %v4713
    %v4715 = vand.u32 %v4714, 4294901760
    %4716 = vmatpush.msra.mxu0 %v4715
    %v4717 = vand.u32 %v673, 4294901760
    %v4718 = vsub.f32 %v673, %v4717
    %v4719 = vand.u32 %v4718, 4294901760
    %4720 = vmatpush.msra.mxu0 %v4719
    %v4721 = vand.u32 %v672, 4294901760
    %v4722 = vsub.f32 %v672, %v4721
    %v4723 = vand.u32 %v4722, 4294901760
    %4724 = vmatpush.msra.mxu0 %v4723
    %v4725 = vand.u32 %v671, 4294901760
    %v4726 = vsub.f32 %v671, %v4725
    %v4727 = vand.u32 %v4726, 4294901760
    %4728 = vmatpush.msra.mxu0 %v4727
    %v4729 = vand.u32 %v528, 4294901760
    %4730 = vmatmul.f32.gmra.mxu0 %v4729
    %v4731 = vpop.f32.mrf.mxu0
    %v4732 = vadd.f32 %v4285, %v4731
    %v4733 = vand.u32 %v530, 4294901760
    %4734 = vmatmul.f32.gmra.mxu0 %v4733
    %v4735 = vpop.f32.mrf.mxu0
    %v4736 = vadd.f32 %v4291, %v4735
    %v4737 = vand.u32 %v532, 4294901760
    %4738 = vmatmul.f32.gmra.mxu0 %v4737
    %v4739 = vpop.f32.mrf.mxu0
    %v4740 = vadd.f32 %v4297, %v4739
    %v4741 = vand.u32 %v534, 4294901760
    %4742 = vmatmul.f32.gmra.mxu0 %v4741
    %v4743 = vpop.f32.mrf.mxu0
    %v4744 = vadd.f32 %v4303, %v4743
    %v4745 = vand.u32 %v536, 4294901760
    %4746 = vmatmul.f32.gmra.mxu0 %v4745
    %v4747 = vpop.f32.mrf.mxu0
    %v4748 = vadd.f32 %v4309, %v4747
    %v4749 = vand.u32 %v538, 4294901760
    %4750 = vmatmul.f32.gmra.mxu0 %v4749
    %v4751 = vpop.f32.mrf.mxu0
    %v4752 = vadd.f32 %v4315, %v4751
    %v4753 = vand.u32 %v540, 4294901760
    %4754 = vmatmul.f32.gmra.mxu0 %v4753
    %v4755 = vpop.f32.mrf.mxu0
    %v4756 = vadd.f32 %v4321, %v4755
    %v4757 = vand.u32 %v542, 4294901760
    %4758 = vmatmul.f32.gmra.mxu0 %v4757
    %v4759 = vpop.f32.mrf.mxu0
    %v4760 = vadd.f32 %v4327, %v4759
    %v4761 = vand.u32 %v544, 4294901760
    %4762 = vmatmul.f32.gmra.mxu0 %v4761
    %v4763 = vpop.f32.mrf.mxu0
    %v4764 = vadd.f32 %v4333, %v4763
    %v4765 = vand.u32 %v546, 4294901760
    %4766 = vmatmul.f32.gmra.mxu0 %v4765
    %v4767 = vpop.f32.mrf.mxu0
    %v4768 = vadd.f32 %v4339, %v4767
    %v4769 = vand.u32 %v548, 4294901760
    %4770 = vmatmul.f32.gmra.mxu0 %v4769
    %v4771 = vpop.f32.mrf.mxu0
    %v4772 = vadd.f32 %v4345, %v4771
    %v4773 = vand.u32 %v550, 4294901760
    %4774 = vmatmul.f32.gmra.mxu0 %v4773
    %v4775 = vpop.f32.mrf.mxu0
    %v4776 = vadd.f32 %v4351, %v4775
    %v4777 = vand.u32 %v552, 4294901760
    %4778 = vmatmul.f32.gmra.mxu0 %v4777
    %v4779 = vpop.f32.mrf.mxu0
    %v4780 = vadd.f32 %v4357, %v4779
    %v4781 = vand.u32 %v554, 4294901760
    %4782 = vmatmul.f32.gmra.mxu0 %v4781
    %v4783 = vpop.f32.mrf.mxu0
    %v4784 = vadd.f32 %v4363, %v4783
    %v4785 = vand.u32 %v556, 4294901760
    %4786 = vmatmul.f32.gmra.mxu0 %v4785
    %v4787 = vpop.f32.mrf.mxu0
    %v4788 = vadd.f32 %v4369, %v4787
    %v4789 = vand.u32 %v558, 4294901760
    %4790 = vmatmul.f32.gmra.mxu0 %v4789
    %v4791 = vpop.f32.mrf.mxu0
    %v4792 = vadd.f32 %v4375, %v4791
    %v4793 = vand.u32 %v560, 4294901760
    %4794 = vmatmul.f32.gmra.mxu0 %v4793
    %v4795 = vpop.f32.mrf.mxu0
    %v4796 = vadd.f32 %v4381, %v4795
    %v4797 = vand.u32 %v562, 4294901760
    %4798 = vmatmul.f32.gmra.mxu0 %v4797
    %v4799 = vpop.f32.mrf.mxu0
    %v4800 = vadd.f32 %v4387, %v4799
    %v4801 = vand.u32 %v564, 4294901760
    %4802 = vmatmul.f32.gmra.mxu0 %v4801
    %v4803 = vpop.f32.mrf.mxu0
    %v4804 = vadd.f32 %v4393, %v4803
    %v4805 = vand.u32 %v566, 4294901760
    %4806 = vmatmul.f32.gmra.mxu0 %v4805
    %v4807 = vpop.f32.mrf.mxu0
    %v4808 = vadd.f32 %v4399, %v4807
    %v4809 = vand.u32 %v568, 4294901760
    %4810 = vmatmul.f32.gmra.mxu0 %v4809
    %v4811 = vpop.f32.mrf.mxu0
    %v4812 = vadd.f32 %v4405, %v4811
    %v4813 = vand.u32 %v570, 4294901760
    %4814 = vmatmul.f32.gmra.mxu0 %v4813
    %v4815 = vpop.f32.mrf.mxu0
    %v4816 = vadd.f32 %v4411, %v4815
    %v4817 = vand.u32 %v572, 4294901760
    %4818 = vmatmul.f32.gmra.mxu0 %v4817
    %v4819 = vpop.f32.mrf.mxu0
    %v4820 = vadd.f32 %v4417, %v4819
    %v4821 = vand.u32 %v574, 4294901760
    %4822 = vmatmul.f32.gmra.mxu0 %v4821
    %v4823 = vpop.f32.mrf.mxu0
    %v4824 = vadd.f32 %v4423, %v4823
    %v4825 = vand.u32 %v576, 4294901760
    %4826 = vmatmul.f32.gmra.mxu0 %v4825
    %v4827 = vpop.f32.mrf.mxu0
    %v4828 = vadd.f32 %v4429, %v4827
    %v4829 = vand.u32 %v578, 4294901760
    %4830 = vmatmul.f32.gmra.mxu0 %v4829
    %v4831 = vpop.f32.mrf.mxu0
    %v4832 = vadd.f32 %v4435, %v4831
    %v4833 = vand.u32 %v580, 4294901760
    %4834 = vmatmul.f32.gmra.mxu0 %v4833
    %v4835 = vpop.f32.mrf.mxu0
    %v4836 = vadd.f32 %v4441, %v4835
    %v4837 = vand.u32 %v582, 4294901760
    %4838 = vmatmul.f32.gmra.mxu0 %v4837
    %v4839 = vpop.f32.mrf.mxu0
    %v4840 = vadd.f32 %v4447, %v4839
    %v4841 = vand.u32 %v584, 4294901760
    %4842 = vmatmul.f32.gmra.mxu0 %v4841
    %v4843 = vpop.f32.mrf.mxu0
    %v4844 = vadd.f32 %v4453, %v4843
    %v4845 = vand.u32 %v586, 4294901760
    %4846 = vmatmul.f32.gmra.mxu0 %v4845
    %v4847 = vpop.f32.mrf.mxu0
    %v4848 = vadd.f32 %v4459, %v4847
    %v4849 = vand.u32 %v588, 4294901760
    %4850 = vmatmul.f32.gmra.mxu0 %v4849
    %v4851 = vpop.f32.mrf.mxu0
    %v4852 = vadd.f32 %v4465, %v4851
    %v4853 = vand.u32 %v590, 4294901760
    %4854 = vmatmul.f32.gmra.mxu0 %v4853
    %v4855 = vpop.f32.mrf.mxu0
    %v4856 = vadd.f32 %v4471, %v4855
    %v4857 = vand.u32 %v592, 4294901760
    %4858 = vmatmul.f32.gmra.mxu0 %v4857
    %v4859 = vpop.f32.mrf.mxu0
    %v4860 = vadd.f32 %v4477, %v4859
    %v4861 = vand.u32 %v594, 4294901760
    %4862 = vmatmul.f32.gmra.mxu0 %v4861
    %v4863 = vpop.f32.mrf.mxu0
    %v4864 = vadd.f32 %v4483, %v4863
    %v4865 = vand.u32 %v596, 4294901760
    %4866 = vmatmul.f32.gmra.mxu0 %v4865
    %v4867 = vpop.f32.mrf.mxu0
    %v4868 = vadd.f32 %v4489, %v4867
    %v4869 = vand.u32 %v598, 4294901760
    %4870 = vmatmul.f32.gmra.mxu0 %v4869
    %v4871 = vpop.f32.mrf.mxu0
    %v4872 = vadd.f32 %v4495, %v4871
    %v4873 = vand.u32 %v600, 4294901760
    %4874 = vmatmul.f32.gmra.mxu0 %v4873
    %v4875 = vpop.f32.mrf.mxu0
    %v4876 = vadd.f32 %v4501, %v4875
    %v4877 = vand.u32 %v602, 4294901760
    %4878 = vmatmul.f32.gmra.mxu0 %v4877
    %v4879 = vpop.f32.mrf.mxu0
    %v4880 = vadd.f32 %v4507, %v4879
    %v4881 = vand.u32 %v604, 4294901760
    %4882 = vmatmul.f32.gmra.mxu0 %v4881
    %v4883 = vpop.f32.mrf.mxu0
    %v4884 = vadd.f32 %v4513, %v4883
    %v4885 = vand.u32 %v606, 4294901760
    %4886 = vmatmul.f32.gmra.mxu0 %v4885
    %v4887 = vpop.f32.mrf.mxu0
    %v4888 = vadd.f32 %v4519, %v4887
    %v4889 = vand.u32 %v608, 4294901760
    %4890 = vmatmul.f32.gmra.mxu0 %v4889
    %v4891 = vpop.f32.mrf.mxu0
    %v4892 = vadd.f32 %v4525, %v4891
    %v4893 = vand.u32 %v610, 4294901760
    %4894 = vmatmul.f32.gmra.mxu0 %v4893
    %v4895 = vpop.f32.mrf.mxu0
    %v4896 = vadd.f32 %v4531, %v4895
    %v4897 = vand.u32 %v612, 4294901760
    %4898 = vmatmul.f32.gmra.mxu0 %v4897
    %v4899 = vpop.f32.mrf.mxu0
    %v4900 = vadd.f32 %v4537, %v4899
    %v4901 = vand.u32 %v614, 4294901760
    %4902 = vmatmul.f32.gmra.mxu0 %v4901
    %v4903 = vpop.f32.mrf.mxu0
    %v4904 = vadd.f32 %v4543, %v4903
    %v4905 = vand.u32 %v616, 4294901760
    %4906 = vmatmul.f32.gmra.mxu0 %v4905
    %v4907 = vpop.f32.mrf.mxu0
    %v4908 = vadd.f32 %v4549, %v4907
    %v4909 = vand.u32 %v618, 4294901760
    %4910 = vmatmul.f32.gmra.mxu0 %v4909
    %v4911 = vpop.f32.mrf.mxu0
    %v4912 = vadd.f32 %v4555, %v4911
    %v4913 = vand.u32 %v620, 4294901760
    %4914 = vmatmul.f32.gmra.mxu0 %v4913
    %v4915 = vpop.f32.mrf.mxu0
    %v4916 = vadd.f32 %v4561, %v4915
    %v4917 = vand.u32 %v622, 4294901760
    %4918 = vmatmul.f32.gmra.mxu0 %v4917
    %v4919 = vpop.f32.mrf.mxu0
    %v4920 = vadd.f32 %v4567, %v4919
    %v4921 = vand.u32 %v624, 4294901760
    %4922 = vmatmul.f32.gmra.mxu0 %v4921
    %v4923 = vpop.f32.mrf.mxu0
    %v4924 = vadd.f32 %v4573, %v4923
    %v4925 = vand.u32 %v626, 4294901760
    %4926 = vmatmul.f32.gmra.mxu0 %v4925
    %v4927 = vpop.f32.mrf.mxu0
    %v4928 = vadd.f32 %v4579, %v4927
    %v4929 = vand.u32 %v628, 4294901760
    %4930 = vmatmul.f32.gmra.mxu0 %v4929
    %v4931 = vpop.f32.mrf.mxu0
    %v4932 = vadd.f32 %v4585, %v4931
    %v4933 = vand.u32 %v630, 4294901760
    %4934 = vmatmul.f32.gmra.mxu0 %v4933
    %v4935 = vpop.f32.mrf.mxu0
    %v4936 = vadd.f32 %v4591, %v4935
    %v4937 = vand.u32 %v632, 4294901760
    %4938 = vmatmul.f32.gmra.mxu0 %v4937
    %v4939 = vpop.f32.mrf.mxu0
    %v4940 = vadd.f32 %v4597, %v4939
    %v4941 = vand.u32 %v634, 4294901760
    %4942 = vmatmul.f32.gmra.mxu0 %v4941
    %v4943 = vpop.f32.mrf.mxu0
    %v4944 = vadd.f32 %v4603, %v4943
    %v4945 = vand.u32 %v636, 4294901760
    %4946 = vmatmul.f32.gmra.mxu0 %v4945
    %v4947 = vpop.f32.mrf.mxu0
    %v4948 = vadd.f32 %v4609, %v4947
    %v4949 = vand.u32 %v638, 4294901760
    %4950 = vmatmul.f32.gmra.mxu0 %v4949
    %v4951 = vpop.f32.mrf.mxu0
    %v4952 = vadd.f32 %v4615, %v4951
    %v4953 = vand.u32 %v640, 4294901760
    %4954 = vmatmul.f32.gmra.mxu0 %v4953
    %v4955 = vpop.f32.mrf.mxu0
    %v4956 = vadd.f32 %v4621, %v4955
    %v4957 = vand.u32 %v642, 4294901760
    %4958 = vmatmul.f32.gmra.mxu0 %v4957
    %v4959 = vpop.f32.mrf.mxu0
    %v4960 = vadd.f32 %v4627, %v4959
    %v4961 = vand.u32 %v644, 4294901760
    %4962 = vmatmul.f32.gmra.mxu0 %v4961
    %v4963 = vpop.f32.mrf.mxu0
    %v4964 = vadd.f32 %v4633, %v4963
    %v4965 = vand.u32 %v646, 4294901760
    %4966 = vmatmul.f32.gmra.mxu0 %v4965
    %v4967 = vpop.f32.mrf.mxu0
    %v4968 = vadd.f32 %v4639, %v4967
    %v4969 = vand.u32 %v648, 4294901760
    %4970 = vmatmul.f32.gmra.mxu0 %v4969
    %v4971 = vpop.f32.mrf.mxu0
    %v4972 = vadd.f32 %v4645, %v4971
    %v4973 = vand.u32 %v650, 4294901760
    %4974 = vmatmul.f32.gmra.mxu0 %v4973
    %v4975 = vpop.f32.mrf.mxu0
    %v4976 = vadd.f32 %v4651, %v4975
    %v4977 = vand.u32 %v652, 4294901760
    %4978 = vmatmul.f32.gmra.mxu0 %v4977
    %v4979 = vpop.f32.mrf.mxu0
    %v4980 = vadd.f32 %v4657, %v4979
    %v4981 = vand.u32 %v654, 4294901760
    %4982 = vmatmul.f32.gmra.mxu0 %v4981
    %v4983 = vpop.f32.mrf.mxu0
    %v4984 = vadd.f32 %v4663, %v4983
    %4985 = vdwg.mxu0
    %v4986 = vand.u32 %v686, 4294901760
    %4987 = vmatpush.msra.mxu0 %v4986
    %v4988 = vand.u32 %v685, 4294901760
    %4989 = vmatpush.msra.mxu0 %v4988
    %v4990 = vand.u32 %v684, 4294901760
    %4991 = vmatpush.msra.mxu0 %v4990
    %v4992 = vand.u32 %v683, 4294901760
    %4993 = vmatpush.msra.mxu0 %v4992
    %v4994 = vand.u32 %v682, 4294901760
    %4995 = vmatpush.msra.mxu0 %v4994
    %v4996 = vand.u32 %v681, 4294901760
    %4997 = vmatpush.msra.mxu0 %v4996
    %v4998 = vand.u32 %v680, 4294901760
    %4999 = vmatpush.msra.mxu0 %v4998
    %v5000 = vand.u32 %v679, 4294901760
    %5001 = vmatpush.msra.mxu0 %v5000
    %v5002 = vand.u32 %v678, 4294901760
    %5003 = vmatpush.msra.mxu0 %v5002
    %v5004 = vand.u32 %v677, 4294901760
    %5005 = vmatpush.msra.mxu0 %v5004
    %v5006 = vand.u32 %v676, 4294901760
    %5007 = vmatpush.msra.mxu0 %v5006
    %v5008 = vand.u32 %v675, 4294901760
    %5009 = vmatpush.msra.mxu0 %v5008
    %v5010 = vand.u32 %v674, 4294901760
    %5011 = vmatpush.msra.mxu0 %v5010
    %v5012 = vand.u32 %v673, 4294901760
    %5013 = vmatpush.msra.mxu0 %v5012
    %v5014 = vand.u32 %v672, 4294901760
    %5015 = vmatpush.msra.mxu0 %v5014
    %v5016 = vand.u32 %v671, 4294901760
    %5017 = vmatpush.msra.mxu0 %v5016
    %v5018 = vand.u32 %v528, 4294901760
    %5019 = vmatmul.f32.gmra.mxu0 %v5018
    %v5020 = vpop.f32.mrf.mxu0
    %v5021 = vadd.f32 %v4732, %v5020
    %v5022 = vand.u32 %v530, 4294901760
    %5023 = vmatmul.f32.gmra.mxu0 %v5022
    %v5024 = vpop.f32.mrf.mxu0
    %v5025 = vadd.f32 %v4736, %v5024
    %v5026 = vand.u32 %v532, 4294901760
    %5027 = vmatmul.f32.gmra.mxu0 %v5026
    %v5028 = vpop.f32.mrf.mxu0
    %v5029 = vadd.f32 %v4740, %v5028
    %v5030 = vand.u32 %v534, 4294901760
    %5031 = vmatmul.f32.gmra.mxu0 %v5030
    %v5032 = vpop.f32.mrf.mxu0
    %v5033 = vadd.f32 %v4744, %v5032
    %v5034 = vand.u32 %v536, 4294901760
    %5035 = vmatmul.f32.gmra.mxu0 %v5034
    %v5036 = vpop.f32.mrf.mxu0
    %v5037 = vadd.f32 %v4748, %v5036
    %v5038 = vand.u32 %v538, 4294901760
    %5039 = vmatmul.f32.gmra.mxu0 %v5038
    %v5040 = vpop.f32.mrf.mxu0
    %v5041 = vadd.f32 %v4752, %v5040
    %v5042 = vand.u32 %v540, 4294901760
    %5043 = vmatmul.f32.gmra.mxu0 %v5042
    %v5044 = vpop.f32.mrf.mxu0
    %v5045 = vadd.f32 %v4756, %v5044
    %v5046 = vand.u32 %v542, 4294901760
    %5047 = vmatmul.f32.gmra.mxu0 %v5046
    %v5048 = vpop.f32.mrf.mxu0
    %v5049 = vadd.f32 %v4760, %v5048
    %v5050 = vand.u32 %v544, 4294901760
    %5051 = vmatmul.f32.gmra.mxu0 %v5050
    %v5052 = vpop.f32.mrf.mxu0
    %v5053 = vadd.f32 %v4764, %v5052
    %v5054 = vand.u32 %v546, 4294901760
    %5055 = vmatmul.f32.gmra.mxu0 %v5054
    %v5056 = vpop.f32.mrf.mxu0
    %v5057 = vadd.f32 %v4768, %v5056
    %v5058 = vand.u32 %v548, 4294901760
    %5059 = vmatmul.f32.gmra.mxu0 %v5058
    %v5060 = vpop.f32.mrf.mxu0
    %v5061 = vadd.f32 %v4772, %v5060
    %v5062 = vand.u32 %v550, 4294901760
    %5063 = vmatmul.f32.gmra.mxu0 %v5062
    %v5064 = vpop.f32.mrf.mxu0
    %v5065 = vadd.f32 %v4776, %v5064
    %v5066 = vand.u32 %v552, 4294901760
    %5067 = vmatmul.f32.gmra.mxu0 %v5066
    %v5068 = vpop.f32.mrf.mxu0
    %v5069 = vadd.f32 %v4780, %v5068
    %v5070 = vand.u32 %v554, 4294901760
    %5071 = vmatmul.f32.gmra.mxu0 %v5070
    %v5072 = vpop.f32.mrf.mxu0
    %v5073 = vadd.f32 %v4784, %v5072
    %v5074 = vand.u32 %v556, 4294901760
    %5075 = vmatmul.f32.gmra.mxu0 %v5074
    %v5076 = vpop.f32.mrf.mxu0
    %v5077 = vadd.f32 %v4788, %v5076
    %v5078 = vand.u32 %v558, 4294901760
    %5079 = vmatmul.f32.gmra.mxu0 %v5078
    %v5080 = vpop.f32.mrf.mxu0
    %v5081 = vadd.f32 %v4792, %v5080
    %v5082 = vand.u32 %v560, 4294901760
    %5083 = vmatmul.f32.gmra.mxu0 %v5082
    %v5084 = vpop.f32.mrf.mxu0
    %v5085 = vadd.f32 %v4796, %v5084
    %v5086 = vand.u32 %v562, 4294901760
    %5087 = vmatmul.f32.gmra.mxu0 %v5086
    %v5088 = vpop.f32.mrf.mxu0
    %v5089 = vadd.f32 %v4800, %v5088
    %v5090 = vand.u32 %v564, 4294901760
    %5091 = vmatmul.f32.gmra.mxu0 %v5090
    %v5092 = vpop.f32.mrf.mxu0
    %v5093 = vadd.f32 %v4804, %v5092
    %v5094 = vand.u32 %v566, 4294901760
    %5095 = vmatmul.f32.gmra.mxu0 %v5094
    %v5096 = vpop.f32.mrf.mxu0
    %v5097 = vadd.f32 %v4808, %v5096
    %v5098 = vand.u32 %v568, 4294901760
    %5099 = vmatmul.f32.gmra.mxu0 %v5098
    %v5100 = vpop.f32.mrf.mxu0
    %v5101 = vadd.f32 %v4812, %v5100
    %v5102 = vand.u32 %v570, 4294901760
    %5103 = vmatmul.f32.gmra.mxu0 %v5102
    %v5104 = vpop.f32.mrf.mxu0
    %v5105 = vadd.f32 %v4816, %v5104
    %v5106 = vand.u32 %v572, 4294901760
    %5107 = vmatmul.f32.gmra.mxu0 %v5106
    %v5108 = vpop.f32.mrf.mxu0
    %v5109 = vadd.f32 %v4820, %v5108
    %v5110 = vand.u32 %v574, 4294901760
    %5111 = vmatmul.f32.gmra.mxu0 %v5110
    %v5112 = vpop.f32.mrf.mxu0
    %v5113 = vadd.f32 %v4824, %v5112
    %v5114 = vand.u32 %v576, 4294901760
    %5115 = vmatmul.f32.gmra.mxu0 %v5114
    %v5116 = vpop.f32.mrf.mxu0
    %v5117 = vadd.f32 %v4828, %v5116
    %v5118 = vand.u32 %v578, 4294901760
    %5119 = vmatmul.f32.gmra.mxu0 %v5118
    %v5120 = vpop.f32.mrf.mxu0
    %v5121 = vadd.f32 %v4832, %v5120
    %v5122 = vand.u32 %v580, 4294901760
    %5123 = vmatmul.f32.gmra.mxu0 %v5122
    %v5124 = vpop.f32.mrf.mxu0
    %v5125 = vadd.f32 %v4836, %v5124
    %v5126 = vand.u32 %v582, 4294901760
    %5127 = vmatmul.f32.gmra.mxu0 %v5126
    %v5128 = vpop.f32.mrf.mxu0
    %v5129 = vadd.f32 %v4840, %v5128
    %v5130 = vand.u32 %v584, 4294901760
    %5131 = vmatmul.f32.gmra.mxu0 %v5130
    %v5132 = vpop.f32.mrf.mxu0
    %v5133 = vadd.f32 %v4844, %v5132
    %v5134 = vand.u32 %v586, 4294901760
    %5135 = vmatmul.f32.gmra.mxu0 %v5134
    %v5136 = vpop.f32.mrf.mxu0
    %v5137 = vadd.f32 %v4848, %v5136
    %v5138 = vand.u32 %v588, 4294901760
    %5139 = vmatmul.f32.gmra.mxu0 %v5138
    %v5140 = vpop.f32.mrf.mxu0
    %v5141 = vadd.f32 %v4852, %v5140
    %v5142 = vand.u32 %v590, 4294901760
    %5143 = vmatmul.f32.gmra.mxu0 %v5142
    %v5144 = vpop.f32.mrf.mxu0
    %v5145 = vadd.f32 %v4856, %v5144
    %v5146 = vand.u32 %v592, 4294901760
    %5147 = vmatmul.f32.gmra.mxu0 %v5146
    %v5148 = vpop.f32.mrf.mxu0
    %v5149 = vadd.f32 %v4860, %v5148
    %v5150 = vand.u32 %v594, 4294901760
    %5151 = vmatmul.f32.gmra.mxu0 %v5150
    %v5152 = vpop.f32.mrf.mxu0
    %v5153 = vadd.f32 %v4864, %v5152
    %v5154 = vand.u32 %v596, 4294901760
    %5155 = vmatmul.f32.gmra.mxu0 %v5154
    %v5156 = vpop.f32.mrf.mxu0
    %v5157 = vadd.f32 %v4868, %v5156
    %v5158 = vand.u32 %v598, 4294901760
    %5159 = vmatmul.f32.gmra.mxu0 %v5158
    %v5160 = vpop.f32.mrf.mxu0
    %v5161 = vadd.f32 %v4872, %v5160
    %v5162 = vand.u32 %v600, 4294901760
    %5163 = vmatmul.f32.gmra.mxu0 %v5162
    %v5164 = vpop.f32.mrf.mxu0
    %v5165 = vadd.f32 %v4876, %v5164
    %v5166 = vand.u32 %v602, 4294901760
    %5167 = vmatmul.f32.gmra.mxu0 %v5166
    %v5168 = vpop.f32.mrf.mxu0
    %v5169 = vadd.f32 %v4880, %v5168
    %v5170 = vand.u32 %v604, 4294901760
    %5171 = vmatmul.f32.gmra.mxu0 %v5170
    %v5172 = vpop.f32.mrf.mxu0
    %v5173 = vadd.f32 %v4884, %v5172
    %v5174 = vand.u32 %v606, 4294901760
    %5175 = vmatmul.f32.gmra.mxu0 %v5174
    %v5176 = vpop.f32.mrf.mxu0
    %v5177 = vadd.f32 %v4888, %v5176
    %v5178 = vand.u32 %v608, 4294901760
    %5179 = vmatmul.f32.gmra.mxu0 %v5178
    %v5180 = vpop.f32.mrf.mxu0
    %v5181 = vadd.f32 %v4892, %v5180
    %v5182 = vand.u32 %v610, 4294901760
    %5183 = vmatmul.f32.gmra.mxu0 %v5182
    %v5184 = vpop.f32.mrf.mxu0
    %v5185 = vadd.f32 %v4896, %v5184
    %v5186 = vand.u32 %v612, 4294901760
    %5187 = vmatmul.f32.gmra.mxu0 %v5186
    %v5188 = vpop.f32.mrf.mxu0
    %v5189 = vadd.f32 %v4900, %v5188
    %v5190 = vand.u32 %v614, 4294901760
    %5191 = vmatmul.f32.gmra.mxu0 %v5190
    %v5192 = vpop.f32.mrf.mxu0
    %v5193 = vadd.f32 %v4904, %v5192
    %v5194 = vand.u32 %v616, 4294901760
    %5195 = vmatmul.f32.gmra.mxu0 %v5194
    %v5196 = vpop.f32.mrf.mxu0
    %v5197 = vadd.f32 %v4908, %v5196
    %v5198 = vand.u32 %v618, 4294901760
    %5199 = vmatmul.f32.gmra.mxu0 %v5198
    %v5200 = vpop.f32.mrf.mxu0
    %v5201 = vadd.f32 %v4912, %v5200
    %v5202 = vand.u32 %v620, 4294901760
    %5203 = vmatmul.f32.gmra.mxu0 %v5202
    %v5204 = vpop.f32.mrf.mxu0
    %v5205 = vadd.f32 %v4916, %v5204
    %v5206 = vand.u32 %v622, 4294901760
    %5207 = vmatmul.f32.gmra.mxu0 %v5206
    %v5208 = vpop.f32.mrf.mxu0
    %v5209 = vadd.f32 %v4920, %v5208
    %v5210 = vand.u32 %v624, 4294901760
    %5211 = vmatmul.f32.gmra.mxu0 %v5210
    %v5212 = vpop.f32.mrf.mxu0
    %v5213 = vadd.f32 %v4924, %v5212
    %v5214 = vand.u32 %v626, 4294901760
    %5215 = vmatmul.f32.gmra.mxu0 %v5214
    %v5216 = vpop.f32.mrf.mxu0
    %v5217 = vadd.f32 %v4928, %v5216
    %v5218 = vand.u32 %v628, 4294901760
    %5219 = vmatmul.f32.gmra.mxu0 %v5218
    %v5220 = vpop.f32.mrf.mxu0
    %v5221 = vadd.f32 %v4932, %v5220
    %v5222 = vand.u32 %v630, 4294901760
    %5223 = vmatmul.f32.gmra.mxu0 %v5222
    %v5224 = vpop.f32.mrf.mxu0
    %v5225 = vadd.f32 %v4936, %v5224
    %v5226 = vand.u32 %v632, 4294901760
    %5227 = vmatmul.f32.gmra.mxu0 %v5226
    %v5228 = vpop.f32.mrf.mxu0
    %v5229 = vadd.f32 %v4940, %v5228
    %v5230 = vand.u32 %v634, 4294901760
    %5231 = vmatmul.f32.gmra.mxu0 %v5230
    %v5232 = vpop.f32.mrf.mxu0
    %v5233 = vadd.f32 %v4944, %v5232
    %v5234 = vand.u32 %v636, 4294901760
    %5235 = vmatmul.f32.gmra.mxu0 %v5234
    %v5236 = vpop.f32.mrf.mxu0
    %v5237 = vadd.f32 %v4948, %v5236
    %v5238 = vand.u32 %v638, 4294901760
    %5239 = vmatmul.f32.gmra.mxu0 %v5238
    %v5240 = vpop.f32.mrf.mxu0
    %v5241 = vadd.f32 %v4952, %v5240
    %v5242 = vand.u32 %v640, 4294901760
    %5243 = vmatmul.f32.gmra.mxu0 %v5242
    %v5244 = vpop.f32.mrf.mxu0
    %v5245 = vadd.f32 %v4956, %v5244
    %v5246 = vand.u32 %v642, 4294901760
    %5247 = vmatmul.f32.gmra.mxu0 %v5246
    %v5248 = vpop.f32.mrf.mxu0
    %v5249 = vadd.f32 %v4960, %v5248
    %v5250 = vand.u32 %v644, 4294901760
    %5251 = vmatmul.f32.gmra.mxu0 %v5250
    %v5252 = vpop.f32.mrf.mxu0
    %v5253 = vadd.f32 %v4964, %v5252
    %v5254 = vand.u32 %v646, 4294901760
    %5255 = vmatmul.f32.gmra.mxu0 %v5254
    %v5256 = vpop.f32.mrf.mxu0
    %v5257 = vadd.f32 %v4968, %v5256
    %v5258 = vand.u32 %v648, 4294901760
    %5259 = vmatmul.f32.gmra.mxu0 %v5258
    %v5260 = vpop.f32.mrf.mxu0
    %v5261 = vadd.f32 %v4972, %v5260
    %v5262 = vand.u32 %v650, 4294901760
    %5263 = vmatmul.f32.gmra.mxu0 %v5262
    %v5264 = vpop.f32.mrf.mxu0
    %v5265 = vadd.f32 %v4976, %v5264
    %v5266 = vand.u32 %v652, 4294901760
    %5267 = vmatmul.f32.gmra.mxu0 %v5266
    %v5268 = vpop.f32.mrf.mxu0
    %v5269 = vadd.f32 %v4980, %v5268
    %v5270 = vand.u32 %v654, 4294901760
    %5271 = vmatmul.f32.gmra.mxu0 %v5270
    %v5272 = vpop.f32.mrf.mxu0
    %v5273 = vadd.f32 %v4984, %v5272
    %5274 = vdwg.mxu0
    %5275 = vst [vmem:[#allocation3] sm:$0xff] %v5021
    %5276 = vst [vmem:[#allocation3 + $0x8] sm:$0xff] %v5025
    %5277 = vst [vmem:[#allocation3 + $0x10] sm:$0xff] %v5029
    %5278 = vst [vmem:[#allocation3 + $0x18] sm:$0xff] %v5033
    %5279 = vst [vmem:[#allocation3 + $0x20] sm:$0xff] %v5037
    %5280 = vst [vmem:[#allocation3 + $0x28] sm:$0xff] %v5041
    %5281 = vst [vmem:[#allocation3 + $0x30] sm:$0xff] %v5045
    %5282 = vst [vmem:[#allocation3 + $0x38] sm:$0xff] %v5049
    %5283 = vst [vmem:[#allocation3 + $0x40] sm:$0xff] %v5053
    %5284 = vst [vmem:[#allocation3 + $0x48] sm:$0xff] %v5057
    %5285 = vst [vmem:[#allocation3 + $0x50] sm:$0xff] %v5061
    %5286 = vst [vmem:[#allocation3 + $0x58] sm:$0xff] %v5065
    %5287 = vst [vmem:[#allocation3 + $0x60] sm:$0xff] %v5069
    %5288 = vst [vmem:[#allocation3 + $0x68] sm:$0xff] %v5073
    %5289 = vst [vmem:[#allocation3 + $0x70] sm:$0xff] %v5077
    %5290 = vst [vmem:[#allocation3 + $0x78] sm:$0xff] %v5081
    %5291 = vst [vmem:[#allocation3 + $0x80] sm:$0xff] %v5085
    %5292 = vst [vmem:[#allocation3 + $0x88] sm:$0xff] %v5089
    %5293 = vst [vmem:[#allocation3 + $0x90] sm:$0xff] %v5093
    %5294 = vst [vmem:[#allocation3 + $0x98] sm:$0xff] %v5097
    %5295 = vst [vmem:[#allocation3 + $0xa0] sm:$0xff] %v5101
    %5296 = vst [vmem:[#allocation3 + $0xa8] sm:$0xff] %v5105
    %5297 = vst [vmem:[#allocation3 + $0xb0] sm:$0xff] %v5109
    %5298 = vst [vmem:[#allocation3 + $0xb8] sm:$0xff] %v5113
    %5299 = vst [vmem:[#allocation3 + $0xc0] sm:$0xff] %v5117
    %5300 = vst [vmem:[#allocation3 + $0xc8] sm:$0xff] %v5121
    %5301 = vst [vmem:[#allocation3 + $0xd0] sm:$0xff] %v5125
    %5302 = vst [vmem:[#allocation3 + $0xd8] sm:$0xff] %v5129
    %5303 = vst [vmem:[#allocation3 + $0xe0] sm:$0xff] %v5133
    %5304 = vst [vmem:[#allocation3 + $0xe8] sm:$0xff] %v5137
    %5305 = vst [vmem:[#allocation3 + $0xf0] sm:$0xff] %v5141
    %5306 = vst [vmem:[#allocation3 + $0xf8] sm:$0xff] %v5145
    %5307 = vst [vmem:[#allocation3 + $0x100] sm:$0xff] %v5149
    %5308 = vst [vmem:[#allocation3 + $0x108] sm:$0xff] %v5153
    %5309 = vst [vmem:[#allocation3 + $0x110] sm:$0xff] %v5157
    %5310 = vst [vmem:[#allocation3 + $0x118] sm:$0xff] %v5161
    %5311 = vst [vmem:[#allocation3 + $0x120] sm:$0xff] %v5165
    %5312 = vst [vmem:[#allocation3 + $0x128] sm:$0xff] %v5169
    %5313 = vst [vmem:[#allocation3 + $0x130] sm:$0xff] %v5173
    %5314 = vst [vmem:[#allocation3 + $0x138] sm:$0xff] %v5177
    %5315 = vst [vmem:[#allocation3 + $0x140] sm:$0xff] %v5181
    %5316 = vst [vmem:[#allocation3 + $0x148] sm:$0xff] %v5185
    %5317 = vst [vmem:[#allocation3 + $0x150] sm:$0xff] %v5189
    %5318 = vst [vmem:[#allocation3 + $0x158] sm:$0xff] %v5193
    %5319 = vst [vmem:[#allocation3 + $0x160] sm:$0xff] %v5197
    %5320 = vst [vmem:[#allocation3 + $0x168] sm:$0xff] %v5201
    %5321 = vst [vmem:[#allocation3 + $0x170] sm:$0xff] %v5205
    %5322 = vst [vmem:[#allocation3 + $0x178] sm:$0xff] %v5209
    %5323 = vst [vmem:[#allocation3 + $0x180] sm:$0xff] %v5213
    %5324 = vst [vmem:[#allocation3 + $0x188] sm:$0xff] %v5217
    %5325 = vst [vmem:[#allocation3 + $0x190] sm:$0xff] %v5221
    %5326 = vst [vmem:[#allocation3 + $0x198] sm:$0xff] %v5225
    %5327 = vst [vmem:[#allocation3 + $0x1a0] sm:$0xff] %v5229
    %5328 = vst [vmem:[#allocation3 + $0x1a8] sm:$0xff] %v5233
    %5329 = vst [vmem:[#allocation3 + $0x1b0] sm:$0xff] %v5237
    %5330 = vst [vmem:[#allocation3 + $0x1b8] sm:$0xff] %v5241
    %5331 = vst [vmem:[#allocation3 + $0x1c0] sm:$0xff] %v5245
    %5332 = vst [vmem:[#allocation3 + $0x1c8] sm:$0xff] %v5249
    %5333 = vst [vmem:[#allocation3 + $0x1d0] sm:$0xff] %v5253
    %5334 = vst [vmem:[#allocation3 + $0x1d8] sm:$0xff] %v5257
    %5335 = vst [vmem:[#allocation3 + $0x1e0] sm:$0xff] %v5261
    %5336 = vst [vmem:[#allocation3 + $0x1e8] sm:$0xff] %v5265
    %5337 = vst [vmem:[#allocation3 + $0x1f0] sm:$0xff] %v5269
    %5338 = vst [vmem:[#allocation3 + $0x1f8] sm:$0xff] %v5273
    // Predicated region
    $region10: #{tpu_custom_call.1} parent=1 // pred_check
      _
    $region11: #{tpu_custom_call.1} parent=1 // pred_check_branch
      %5340 = sbr.rel (0) target = $region13
    $region12: #{tpu_custom_call.1} parent=1 // pred_region
      %5342 = vsyncadd [#allocation4], 0
      %s5343 = sshll.u32 [#allocation3], 4
      %s5344 = int_to_ptr.vmem [resolvable:$true] %s5343
      %s5345 = sshll.u32 %s2, 4
      %s5346 = int_to_ptr.hbm [resolvable:$true] %s5345
      %5351 = dma.vmem_to_hbm [thread:$0]  %s5344, 8192, %s5346, [#allocation4], 128, 128, 8
    $region13: #{tpu_custom_call.1} parent=1 // pred_fallthru
      _
    // Predicated region
    $region14: #{tpu_custom_call.1} parent=1 // pred_check
      _
    $region15: #{tpu_custom_call.1} parent=1 // pred_check_branch
      %5353 = sbr.rel (0) target = $region17
    $region16: #{tpu_custom_call.1} parent=1 // pred_region
      %5355 = dma.done [#allocation4], 8192
    $region17: #{tpu_custom_call.1} parent=1 // pred_fallthru
      _
    %5356 = vsyncpa [#allocation4], 1

</llo_original>
